<compile_context>
chip_gen: v7x
topology: tpu7x:2x2x1
jax: 0.10.0
libtpu: 0.0.40
codegen_flags: <defaults>
</compile_context>

<pallas_src>
import functools

import jax
import jax.numpy as jnp
from jax import lax
from jax.experimental import pallas as pl
from jax.experimental.pallas import tpu as pltpu


# ----------------------------- in-kernel math ------------------------------

def _layernorm(x, w, b, eps=1e-5):
    mu = jnp.mean(x, axis=-1, keepdims=True)
    xc = x - mu
    var = jnp.mean(xc * xc, axis=-1, keepdims=True)
    return xc * lax.rsqrt(var + eps) * w + b


def _erf(x):
    # TODO(synk): lax.erf may lack a Mosaic lowering; Abramowitz&Stegun 7.1.26
    # rational approximation (|err| < 1.5e-7) keeps PyTorch's exact-GELU semantics.
    a1, a2, a3, a4, a5 = (0.254829592, -0.284496736, 1.421413741,
                          -1.453152027, 1.061405429)
    p = 0.3275911
    s = jnp.where(x >= 0.0, 1.0, -1.0)
    ax = jnp.abs(x)
    t = 1.0 / (1.0 + p * ax)
    poly = ((((a5 * t + a4) * t + a3) * t + a2) * t + a1) * t
    return s * (1.0 - poly * jnp.exp(-ax * ax))


def _gelu(x):
    # PyTorch nn.GELU() default == exact (erf-based) GELU.
    return 0.5 * x * (1.0 + _erf(x * 0.7071067811865476))


def _softmax(x, axis):
    m = jnp.max(x, axis=axis, keepdims=True)
    e = jnp.exp(x - m)
    return e * pl.reciprocal(jnp.sum(e, axis=axis, keepdims=True), approx=True)


def _lse(x, axis):
    m = jnp.max(x, axis=axis, keepdims=True)
    return m + jnp.log(jnp.sum(jnp.exp(x - m), axis=axis, keepdims=True))


def _sinkhorn_fwd(p, log_a, log_b, u, v, n_iters):
    """Batched Sinkhorn in transposed (bt, K, N) layout.

    p = -C (bt,K,N); log_a/u: (bt,1,N); log_b/v: (bt,K,1).  Returns the final
    potentials plus all per-iteration potentials (tiny residuals for the manual
    reverse sweep).
    """
    us, vs = [], [v]
    for _ in range(n_iters):
        u = log_a - _lse(p + v, axis=1)      # reduce over slots K   -> (bt,1,N)
        v = log_b - _lse(p + u, axis=2)      # reduce over inputs N  -> (bt,K,1)
        us.append(u)
        vs.append(v)
    return u, v, us, vs


def _entropy_grad_and_potentials(C, log_a, log_b, u0, v0, n_sh_iters, inv_kn):
    """d[sum_b mean_{K,N} entr(clip(T_b,1e-20,1))]/dC with T = sinkhorn(C).

    Hand-written reverse sweep replacing in-kernel jax.grad.  Matches the
    PyTorch autograd graph: the warm-start potentials u0/v0 are constants w.r.t.
    the *current* C.  Also returns the final potentials of this Sinkhorn call
    (warm start for the next MESH step / final transport plan).
    """
    p = -C
    u, v, us, vs = _sinkhorn_fwd(p, log_a, log_b, u0, v0, n_sh_iters)
    logT = p + u + v
    T = jnp.exp(logT)
    Tc = jnp.clip(T, 1e-20, 1.0)
    in_range = ((T >= 1e-20) & (T <= 1.0)).astype(T.dtype)   # clamp grad mask
    # d(per-batch mean entropy)/dlogT, clamp and exp folded in.
    g_logT = (-(jnp.log(Tc) + 1.0) * inv_kn) * in_range * T
    grad_p = g_logT
    gu_direct = jnp.sum(g_logT, axis=1, keepdims=True)       # grad wrt u_T (direct)
    gv = jnp.sum(g_logT, axis=2, keepdims=True)              # grad wrt v_T

    for t in range(n_sh_iters, 0, -1):
        u_t, v_t, v_tm1 = us[t - 1], vs[t], vs[t - 1]
        # v_t = log_b - LSE_N(p + u_t); softmax_N(p+u_t) = exp(p + u_t + v_t - log_b)
        c1 = -gv * jnp.exp(p + u_t + v_t - log_b)
        grad_p = grad_p + c1
        gu = jnp.sum(c1, axis=1, keepdims=True)
        if t == n_sh_iters:
            gu = gu + gu_direct
        # u_t = log_a - LSE_K(p + v_{t-1}); softmax_K = exp(p + v_{t-1} + u_t - log_a)
        c2 = -gu * jnp.exp(p + v_tm1 + u_t - log_a)
        grad_p = grad_p + c2
        gv = jnp.sum(c2, axis=2, keepdims=True)               # grad wrt v_{t-1}
    # grad wrt the warm-start v_0 is dropped (constant), matching torch.
    return -grad_p, u, v


# ------------------------------- the kernel --------------------------------

def _slot_attention_kernel(
    # data (per-program blocks)
    x_ref,            # (bt*N, D)  flattened inputs
    slots_init_ref,   # (bt, K, S)
    noise_ref,        # (bt, K, N) transposed noise
    vec_ref,          # (R, Wv)    packed (1, X) parameter rows
    # 2-D weight matrices
    wkv_ref,          # (D, 2S)
    wim1_ref,         # (D, H)
    wsm1_ref,         # (S, H)
    wsm2_ref,         # (H, 1)
    wq_ref,           # (S, S)
    w_ih_ref,         # (S, 3S)
    w_hh_ref,         # (S, 3S)
    wm1_ref,          # (S, H)
    wm2_ref,          # (H, S)
    # output
    out_ref,          # (bt, K, S)
    *, vec_idx, num_slots, num_iterations, n_mesh_iters, mesh_lr, n_sh_iters,
):
    f32 = jnp.float32
    bt, K, S = slots_init_ref.shape
    btN, D = x_ref.shape
    N = btN // bt
    H = wim1_ref.shape[1]
    btK = bt * K
    inv_kn = 1.0 / float(K * N)

    def vrow(name):
        i, w = vec_idx[name]
        return vec_ref[i:i + 1, 0:w]          # (1, w) row from the packed slab

    ln_in_w, ln_in_b = vrow("ln_in_w"), vrow("ln_in_b")
    bim1, wim2_row = vrow("bim1"), vrow("wim2_row")
    mu, log_sigma = vrow("slots_mu"), vrow("slots_log_sigma")
    ln_slot_w, ln_slot_b = vrow("ln_slot_w"), vrow("ln_slot_b")
    bsm1 = vrow("bsm1")
    b_ih, b_hh = vrow("b_ih"), vrow("b_hh")
    ln_mlp_w, ln_mlp_b = vrow("ln_mlp_w"), vrow("ln_mlp_b")
    bm1, bm2 = vrow("bm1"), vrow("bm2")

    # ---------------- batch-fused input side (runs once) ----------------
    x = x_ref[...]
    xn = _layernorm(x, ln_in_w, ln_in_b)
    kv = jnp.dot(xn, wkv_ref[...], preferred_element_type=f32)        # (btN, 2S)
    k = kv[:, 0:S]
    v_feat = kv[:, S:2 * S]
    # TODO(synk): cosine_distance undefined in the reference; assume
    # 1 - cosine_similarity with eps-stabilized L2 norms.
    k_hat = k * lax.rsqrt(jnp.sum(k * k, axis=-1, keepdims=True) + 1e-12)
    k_hat_b = k_hat.reshape(bt, N, S)
    v_b = v_feat.reshape(bt, N, S)

    # input marginals a = K * softmax(mlp_input_marginals(xn)); hoisted out of
    # the iteration loop and computed for all bt batches at once, directly in
    # the lane-dense (bt, 1, N) orientation.
    h_in = _gelu(jnp.dot(xn, wim1_ref[...], preferred_element_type=f32) + bim1)
    h_in_b = h_in.reshape(bt, N, H)
    wim2_b = jnp.broadcast_to(wim2_row.reshape(1, 1, H), (bt, 1, H))
    logits_a = lax.dot_general(wim2_b, h_in_b, (((2,), (2,)), ((0,), (0,))),
                               preferred_element_type=f32)            # (bt,1,N)
    a = num_slots * _softmax(logits_a, axis=2)
    log_a = jnp.log(jnp.maximum(a, 1e-30))                            # (bt,1,N)

    noise = noise_ref[...]                                            # (bt,K,N)
    sig = jnp.exp(log_sigma)                                          # (1,S)
    slots0 = mu + sig * slots_init_ref[...].reshape(btK, S)           # (btK,S)

    # hoisted broadcasts of loop-invariant (1,X) parameter rows (JAX does not
    # CSE broadcast_in_dim; doing it once keeps the filler out of the loop).
    ln_slot_wB = jnp.broadcast_to(ln_slot_w, (btK, S))
    ln_slot_bB = jnp.broadcast_to(ln_slot_b, (btK, S))
    bsm1B = jnp.broadcast_to(bsm1, (btK, H))
    b_ihB = jnp.broadcast_to(b_ih, (btK, 3 * S))
    b_hhB = jnp.broadcast_to(b_hh, (btK, 3 * S))
    ln_mlp_wB = jnp.broadcast_to(ln_mlp_w, (btK, S))
    ln_mlp_bB = jnp.broadcast_to(ln_mlp_b, (btK, S))
    bm1B = jnp.broadcast_to(bm1, (btK, H))
    bm2B = jnp.broadcast_to(bm2, (btK, S))

    wsm1 = wsm1_ref[...]
    wsm2 = wsm2_ref[...]
    wq = wq_ref[...]
    w_ih = w_ih_ref[...]
    w_hh = w_hh_ref[...]
    wm1 = wm1_ref[...]
    wm2 = wm2_ref[...]

    def iteration(_, slots):                   # slots carry: (btK, S)
        slots_prev = slots
        sn = _layernorm(slots, ln_slot_wB, ln_slot_bB)

        # slot marginals b = K * softmax(mlp_slot_marginals(slots), over slots)
        hs = _gelu(jnp.dot(sn, wsm1, preferred_element_type=f32) + bsm1B)
        logits_b = jnp.dot(hs, wsm2, preferred_element_type=f32)      # (btK,1)
        logits_b = logits_b.reshape(bt, K, 1)
        b = num_slots * _softmax(logits_b, axis=1)
        log_b = jnp.log(jnp.maximum(b, 1e-30))                        # (bt,K,1)

        q = jnp.dot(sn, wq, preferred_element_type=f32)               # (btK,S)
        q_hat = q * lax.rsqrt(jnp.sum(q * q, axis=-1, keepdims=True) + 1e-12)
        q_hat_b = q_hat.reshape(bt, K, S)

        # cost^T = K * (1 - cos) in the lane-dense (bt, K, N) layout
        cos = lax.dot_general(q_hat_b, k_hat_b, (((2,), (2,)), ((0,), (0,))),
                              preferred_element_type=f32)             # (bt,K,N)
        cost = num_slots * (1.0 - cos)

        # ---- minimize_entropy_of_sinkhorn (MESH), manual VJP ----
        C_t = cost + 1e-3 * noise
        u_w = jnp.zeros((bt, 1, N), f32)
        v_w = jnp.zeros((bt, K, 1), f32)
        for _mesh in range(n_mesh_iters):
            g, u_w, v_w = _entropy_grad_and_potentials(
                C_t, log_a, log_b, u_w, v_w, n_sh_iters, inv_kn)
            g = g + 1e-20
            s2 = jnp.sum(jnp.sum(g * g, axis=2, keepdims=True),
                         axis=1, keepdims=True)                       # (bt,1,1)
            g = g * lax.rsqrt(jnp.maximum(s2, 1e-24))                 # F.normalize
            C_t = C_t - mesh_lr * g

        # ---- final Sinkhorn with warm-started potentials ----
        u_f, v_f, _us, _vs = _sinkhorn_fwd(-C_t, log_a, log_b, u_w, v_w,
                                           n_sh_iters)
        attn = jnp.exp(-C_t + u_f + v_f)                              # (bt,K,N)

        # updates = attn^T @ v (already transposed -> plain batched matmul)
        updates = lax.dot_general(attn, v_b, (((2,), (1,)), ((0,), (0,))),
                                  preferred_element_type=f32)         # (bt,K,S)
        updates = updates.reshape(btK, S)

        # ---- GRUCell(updates, slots_prev) with fused gate weights ----
        gi = jnp.dot(updates, w_ih, preferred_element_type=f32) + b_ihB
        gh = jnp.dot(slots_prev, w_hh, preferred_element_type=f32) + b_hhB
        r_g = jax.nn.sigmoid(gi[:, 0:S] + gh[:, 0:S])
        z_g = jax.nn.sigmoid(gi[:, S:2 * S] + gh[:, S:2 * S])
        n_g = jnp.tanh(gi[:, 2 * S:3 * S] + r_g * gh[:, 2 * S:3 * S])
        new_slots = (1.0 - z_g) * n_g + z_g * slots_prev

        # ---- residual MLP (Dropout = identity in eval) ----
        sm = _layernorm(new_slots, ln_mlp_wB, ln_mlp_bB)
        hm = _gelu(jnp.dot(sm, wm1, preferred_element_type=f32) + bm1B)
        new_slots = new_slots + jnp.dot(hm, wm2,
                                        preferred_element_type=f32) + bm2B
        return new_slots

    slots = lax.fori_loop(0, num_iterations, iteration, slots0)
    out_ref[...] = slots.reshape(bt, K, S).astype(out_ref.dtype)


# ------------------------------ host wrapper -------------------------------

def init_params(key, in_features, slot_size, mlp_hidden):
    """Deterministic synthetic parameters (nn.Linear weights in (in, out) form)."""
    D, S, H = in_features, slot_size, mlp_hidden
    keys = iter(jax.random.split(key, 32))

    def w(shape, scale):
        return (scale * jax.random.normal(next(keys), shape)).astype(jnp.float32)

    return {
        "ln_in_w": jnp.ones((1, D), jnp.float32),
        "ln_in_b": jnp.zeros((1, D), jnp.float32),
        "wk": w((D, S), D ** -0.5),
        "wv": w((D, S), D ** -0.5),
        "wim1": w((D, H), D ** -0.5),
        "bim1": w((1, H), 0.02),
        "wim2": w((H, 1), H ** -0.5),          # no bias (matches module)
        "slots_mu": w((1, S), 0.5),
        "slots_log_sigma": w((1, S), 0.1),
        "ln_slot_w": jnp.ones((1, S), jnp.float32),
        "ln_slot_b": jnp.zeros((1, S), jnp.float32),
        "wsm1": w((S, H), S ** -0.5),
        "bsm1": w((1, H), 0.02),
        "wsm2": w((1, H), H ** -0.5),          # no bias
        "wq": w((S, S), S ** -0.5),            # bias=False
        "w_ir": w((S, S), S ** -0.5), "w_iz": w((S, S), S ** -0.5),
        "w_in": w((S, S), S ** -0.5),
        "w_hr": w((S, S), S ** -0.5), "w_hz": w((S, S), S ** -0.5),
        "w_hn": w((S, S), S ** -0.5),
        "b_ir": w((1, S), 0.02), "b_iz": w((1, S), 0.02), "b_in": w((1, S), 0.02),
        "b_hr": w((1, S), 0.02), "b_hz": w((1, S), 0.02), "b_hn": w((1, S), 0.02),
        "ln_mlp_w": jnp.ones((1, S), jnp.float32),
        "ln_mlp_b": jnp.zeros((1, S), jnp.float32),
        "wm1": w((S, H), S ** -0.5),
        "bm1": w((1, H), 0.02),
        "wm2": w((H, S), H ** -0.5),
        "bm2": w((1, S), 0.02),
    }


def _pack_params(params, D, S, H):
    """Fuse matmul weights and pack all (1, X) vectors into one VMEM slab."""
    f32 = jnp.float32
    p = {k: jnp.asarray(v, f32) for k, v in params.items()}

    mats = {
        "wkv": jnp.concatenate([p["wk"], p["wv"]], axis=1),                     # (D, 2S)
        "wim1": p["wim1"],
        "wsm1": p["wsm1"],
        "wsm2_col": p["wsm2"].reshape(H, 1),                                    # (H, 1)
        "wq": p["wq"],
        "w_ih": jnp.concatenate([p["w_ir"], p["w_iz"], p["w_in"]], axis=1),     # (S, 3S)
        "w_hh": jnp.concatenate([p["w_hr"], p["w_hz"], p["w_hn"]], axis=1),     # (S, 3S)
        "wm1": p["wm1"],
        "wm2": p["wm2"],
    }

    rows = [
        ("ln_in_w", p["ln_in_w"]), ("ln_in_b", p["ln_in_b"]),
        ("bim1", p["bim1"]), ("wim2_row", p["wim2"].reshape(1, H)),
        ("slots_mu", p["slots_mu"]), ("slots_log_sigma", p["slots_log_sigma"]),
        ("ln_slot_w", p["ln_slot_w"]), ("ln_slot_b", p["ln_slot_b"]),
        ("bsm1", p["bsm1"]),
        ("b_ih", jnp.concatenate([p["b_ir"], p["b_iz"], p["b_in"]], axis=1)),
        ("b_hh", jnp.concatenate([p["b_hr"], p["b_hz"], p["b_hn"]], axis=1)),
        ("ln_mlp_w", p["ln_mlp_w"]), ("ln_mlp_b", p["ln_mlp_b"]),
        ("bm1", p["bm1"]), ("bm2", p["bm2"]),
    ]
    w_max = max(r.shape[1] for _, r in rows)
    lanes = ((w_max + 127) // 128) * 128
    n_rows = ((len(rows) + 7) // 8) * 8
    vec = jnp.zeros((n_rows, lanes), f32)
    vec_idx = {}
    for i, (name, arr) in enumerate(rows):
        w = arr.shape[1]
        vec = vec.at[i, :w].set(arr.reshape(w))
        vec_idx[name] = (i, w)
    return mats, vec, vec_idx


def _bcast_spec(shape):
    nd = len(shape)
    return pl.BlockSpec(shape, lambda i, _nd=nd: (0,) * _nd)


def slot_attention_forward(inputs, slots_init, noise, params, *,
                           num_slots, num_iterations, n_mesh_iters,
                           mesh_lr, n_sh_iters=5, batch_block=None):
    B, N, D = inputs.shape
    _, K, S = slots_init.shape
    H = params["wim1"].shape[1]
    assert noise.shape == (B, N, K)

    if batch_block is None:
        # Split the batch into (at least) two programs when possible so both
        # TensorCores are used on v7x; on single-core chips (v5e/v6e) the extra
        # grid step costs ~0.35 us, negligible.  Each program still fuses `bt`
        # batch elements into one instruction stream.
        batch_block = B // 2 if (B % 2 == 0 and B >= 2) else B
    bt = batch_block
    assert B % bt == 0

    x2d = inputs.reshape(B * N, D).astype(jnp.float32)        # batch folded into M
    noise_t = jnp.transpose(noise, (0, 2, 1)).astype(jnp.float32)   # (B, K, N)
    mats, vec, vec_idx = _pack_params(params, D, S, H)
    mat_list = [mats[k] for k in ("wkv", "wim1", "wsm1", "wsm2_col", "wq",
                                  "w_ih", "w_hh", "wm1", "wm2")]

    kernel = functools.partial(
        _slot_attention_kernel,
        vec_idx=vec_idx, num_slots=num_slots, num_iterations=num_iterations,
        n_mesh_iters=n_mesh_iters, mesh_lr=float(mesh_lr), n_sh_iters=n_sh_iters)

    in_specs = [
        pl.BlockSpec((bt * N, D), lambda i: (i, 0)),
        pl.BlockSpec((bt, K, S), lambda i: (i, 0, 0)),
        pl.BlockSpec((bt, K, N), lambda i: (i, 0, 0)),
        _bcast_spec(vec.shape),
    ] + [_bcast_spec(m.shape) for m in mat_list]

    # Per-program VMEM footprint (double-buffered) ~ 2*bt*(N*D + K*N + 2*K*S)*4 B
    # plus the shared weights — far below the scoped default on v5e/v6e (128 MiB
    # physical) and v7x (64 MiB physical).  Re-derive batch_block / set
    # vmem_limit_bytes when scaling N, D to production sizes.
    return pl.pallas_call(
        kernel,
        out_shape=jax.ShapeDtypeStruct((B, K, S), jnp.float32),
        grid=(B // bt,),
        in_specs=in_specs,
        out_specs=pl.BlockSpec((bt, K, S), lambda i: (i, 0, 0)),
        compiler_params=pltpu.CompilerParams(
            dimension_semantics=("parallel",)),
    )(x2d, slots_init.astype(jnp.float32), noise_t, vec, *mat_list)


if __name__ == "__main__":
    # small, module-consistent shapes
    B, N, D = 2, 64, 32          # batch, num_inputs, in_features
    K, S, H = 4, 32, 32          # num_slots, slot_size, mlp_hidden_size
    num_iterations = 2
    n_mesh_iters = 2
    mesh_lr = 1.0

    key = jax.random.PRNGKey(0)
    k_in, k_slots, k_noise, k_par = jax.random.split(key, 4)
    inputs = jax.random.normal(k_in, (B, N, D), jnp.float32)
    # torch.randn draws inside forward() -> supplied deterministically here.
    slots_init = jax.random.normal(k_slots, (B, K, S), jnp.float32)
    noise = jax.random.normal(k_noise, (B, N, K), jnp.float32)
    params = init_params(k_par, D, S, H)

    out = slot_attention_forward(
        inputs, slots_init, noise, params,
        num_slots=K, num_iterations=num_iterations,
        n_mesh_iters=n_mesh_iters, mesh_lr=mesh_lr)
    out = jax.block_until_ready(out)

    assert out.shape == (B, K, S), out.shape
    assert bool(jnp.all(jnp.isfinite(out)))
    print("KERNEL_OK")
</pallas_src>

<mosaic_0001>
module attributes {stable_mosaic.version = 11 : i64} {
  func.func @_slot_attention_kernel(%arg0: i32, %arg1: memref<64x32xf32, #tpu.memory_space<vmem>>, %arg2: memref<1x4x32xf32, #tpu.memory_space<vmem>>, %arg3: memref<1x4x64xf32, #tpu.memory_space<vmem>>, %arg4: memref<16x128xf32, #tpu.memory_space<vmem>>, %arg5: memref<32x64xf32, #tpu.memory_space<vmem>>, %arg6: memref<32x32xf32, #tpu.memory_space<vmem>>, %arg7: memref<32x32xf32, #tpu.memory_space<vmem>>, %arg8: memref<32x1xf32, #tpu.memory_space<vmem>>, %arg9: memref<32x32xf32, #tpu.memory_space<vmem>>, %arg10: memref<32x96xf32, #tpu.memory_space<vmem>>, %arg11: memref<32x96xf32, #tpu.memory_space<vmem>>, %arg12: memref<32x32xf32, #tpu.memory_space<vmem>>, %arg13: memref<32x32xf32, #tpu.memory_space<vmem>>, %arg14: memref<1x4x32xf32, #tpu.memory_space<vmem>>) attributes {dimension_semantics = [#tpu.dimension_semantics<parallel>], iteration_bounds = array<i64: 2>, scalar_prefetch = 0 : i64, scratch_operands = 0 : i64, tpu.core_type = #tpu.core_type<tc>, window_params = [{transform_indices = @transform_0, window_bounds = array<i64: 64, 32>}, {transform_indices = @transform_1, window_bounds = array<i64: 1, 4, 32>}, {transform_indices = @transform_2, window_bounds = array<i64: 1, 4, 64>}, {pipeline_mode = #tpu.pipeline_mode<synchronous>, transform_indices = @transform_3, window_bounds = array<i64: 16, 128>}, {pipeline_mode = #tpu.pipeline_mode<synchronous>, transform_indices = @transform_4, window_bounds = array<i64: 32, 64>}, {pipeline_mode = #tpu.pipeline_mode<synchronous>, transform_indices = @transform_5, window_bounds = array<i64: 32, 32>}, {pipeline_mode = #tpu.pipeline_mode<synchronous>, transform_indices = @transform_6, window_bounds = array<i64: 32, 32>}, {pipeline_mode = #tpu.pipeline_mode<synchronous>, transform_indices = @transform_7, window_bounds = array<i64: 32, 1>}, {pipeline_mode = #tpu.pipeline_mode<synchronous>, transform_indices = @transform_8, window_bounds = array<i64: 32, 32>}, {pipeline_mode = #tpu.pipeline_mode<synchronous>, transform_indices = @transform_9, window_bounds = array<i64: 32, 96>}, {pipeline_mode = #tpu.pipeline_mode<synchronous>, transform_indices = @transform_10, window_bounds = array<i64: 32, 96>}, {pipeline_mode = #tpu.pipeline_mode<synchronous>, transform_indices = @transform_11, window_bounds = array<i64: 32, 32>}, {pipeline_mode = #tpu.pipeline_mode<synchronous>, transform_indices = @transform_12, window_bounds = array<i64: 32, 32>}, {transform_indices = @transform_13, window_bounds = array<i64: 1, 4, 32>}]} {
    %c0 = arith.constant 0 : index
    %c0_0 = arith.constant 0 : index
    %0 = vector.load %arg4[%c0, %c0_0] : memref<16x128xf32, #tpu.memory_space<vmem>>, vector<1x32xf32>
    %c1 = arith.constant 1 : index
    %c0_1 = arith.constant 0 : index
    %1 = vector.load %arg4[%c1, %c0_1] : memref<16x128xf32, #tpu.memory_space<vmem>>, vector<1x32xf32>
    %c2 = arith.constant 2 : index
    %c0_2 = arith.constant 0 : index
    %2 = vector.load %arg4[%c2, %c0_2] : memref<16x128xf32, #tpu.memory_space<vmem>>, vector<1x32xf32>
    %c3 = arith.constant 3 : index
    %c0_3 = arith.constant 0 : index
    %3 = vector.load %arg4[%c3, %c0_3] : memref<16x128xf32, #tpu.memory_space<vmem>>, vector<1x32xf32>
    %c4 = arith.constant 4 : index
    %c0_4 = arith.constant 0 : index
    %4 = vector.load %arg4[%c4, %c0_4] : memref<16x128xf32, #tpu.memory_space<vmem>>, vector<1x32xf32>
    %c5 = arith.constant 5 : index
    %c0_5 = arith.constant 0 : index
    %5 = vector.load %arg4[%c5, %c0_5] : memref<16x128xf32, #tpu.memory_space<vmem>>, vector<1x32xf32>
    %c6 = arith.constant 6 : index
    %c0_6 = arith.constant 0 : index
    %6 = vector.load %arg4[%c6, %c0_6] : memref<16x128xf32, #tpu.memory_space<vmem>>, vector<1x32xf32>
    %c7 = arith.constant 7 : index
    %c0_7 = arith.constant 0 : index
    %7 = vector.load %arg4[%c7, %c0_7] : memref<16x128xf32, #tpu.memory_space<vmem>>, vector<1x32xf32>
    %c8 = arith.constant 8 : index
    %c0_8 = arith.constant 0 : index
    %8 = vector.load %arg4[%c8, %c0_8] : memref<16x128xf32, #tpu.memory_space<vmem>>, vector<1x32xf32>
    %c9 = arith.constant 9 : index
    %c0_9 = arith.constant 0 : index
    %9 = vector.load %arg4[%c9, %c0_9] : memref<16x128xf32, #tpu.memory_space<vmem>>, vector<1x96xf32>
    %c10 = arith.constant 10 : index
    %c0_10 = arith.constant 0 : index
    %10 = vector.load %arg4[%c10, %c0_10] : memref<16x128xf32, #tpu.memory_space<vmem>>, vector<1x96xf32>
    %c11 = arith.constant 11 : index
    %c0_11 = arith.constant 0 : index
    %11 = vector.load %arg4[%c11, %c0_11] : memref<16x128xf32, #tpu.memory_space<vmem>>, vector<1x32xf32>
    %c12 = arith.constant 12 : index
    %c0_12 = arith.constant 0 : index
    %12 = vector.load %arg4[%c12, %c0_12] : memref<16x128xf32, #tpu.memory_space<vmem>>, vector<1x32xf32>
    %c13 = arith.constant 13 : index
    %c0_13 = arith.constant 0 : index
    %13 = vector.load %arg4[%c13, %c0_13] : memref<16x128xf32, #tpu.memory_space<vmem>>, vector<1x32xf32>
    %c14 = arith.constant 14 : index
    %c0_14 = arith.constant 0 : index
    %14 = vector.load %arg4[%c14, %c0_14] : memref<16x128xf32, #tpu.memory_space<vmem>>, vector<1x32xf32>
    %c0_15 = arith.constant 0 : index
    %c0_16 = arith.constant 0 : index
    %15 = vector.load %arg1[%c0_15, %c0_16] : memref<64x32xf32, #tpu.memory_space<vmem>>, vector<64x32xf32>
    %cst = arith.constant dense<0.000000e+00> : vector<64xf32>
    %16 = vector.multi_reduction <add>, %15, %cst [1] : vector<64x32xf32> to vector<64xf32>
    %17 = vector.shape_cast %16 : vector<64xf32> to vector<64x1xf32>
    %cst_17 = arith.constant 3.200000e+01 : f32
    %18 = vector.broadcast %cst_17 : f32 to vector<64x1xf32>
    %19 = arith.divf %17, %18 : vector<64x1xf32>
    %20 = vector.broadcast %19 : vector<64x1xf32> to vector<64x32xf32>
    %21 = arith.subf %15, %20 : vector<64x32xf32>
    %22 = arith.mulf %21, %21 : vector<64x32xf32>
    %cst_18 = arith.constant dense<0.000000e+00> : vector<64xf32>
    %23 = vector.multi_reduction <add>, %22, %cst_18 [1] : vector<64x32xf32> to vector<64xf32>
    %24 = vector.shape_cast %23 : vector<64xf32> to vector<64x1xf32>
    %cst_19 = arith.constant 3.200000e+01 : f32
    %25 = vector.broadcast %cst_19 : f32 to vector<64x1xf32>
    %26 = arith.divf %24, %25 : vector<64x1xf32>
    %cst_20 = arith.constant 9.99999974E-6 : f32
    %27 = vector.broadcast %cst_20 : f32 to vector<64x1xf32>
    %28 = arith.addf %26, %27 : vector<64x1xf32>
    %29 = math.rsqrt %28 : vector<64x1xf32>
    %30 = vector.broadcast %29 : vector<64x1xf32> to vector<64x32xf32>
    %31 = arith.mulf %21, %30 : vector<64x32xf32>
    %32 = vector.broadcast %0 : vector<1x32xf32> to vector<64x32xf32>
    %33 = arith.mulf %31, %32 : vector<64x32xf32>
    %34 = vector.broadcast %1 : vector<1x32xf32> to vector<64x32xf32>
    %35 = arith.addf %33, %34 : vector<64x32xf32>
    %c0_21 = arith.constant 0 : index
    %c0_22 = arith.constant 0 : index
    %36 = vector.load %arg5[%c0_21, %c0_22] : memref<32x64xf32, #tpu.memory_space<vmem>>, vector<32x64xf32>
    %cst_23 = arith.constant dense<0.000000e+00> : vector<64x64xf32>
    %37 = tpu.matmul %35, %36, %cst_23 {dimension_numbers = #tpu.dot_dimension_numbers<[1], [0], [0], [1], [0, 0, 1, 1], [], []>} : vector<64x32xf32>, vector<32x64xf32>, vector<64x64xf32> -> vector<64x64xf32>
    %38 = vector.extract_strided_slice %37 {offsets = [0, 0], sizes = [64, 32], strides = [1, 1]} : vector<64x64xf32> to vector<64x32xf32>
    %39 = vector.extract_strided_slice %37 {offsets = [0, 32], sizes = [64, 32], strides = [1, 1]} : vector<64x64xf32> to vector<64x32xf32>
    %40 = arith.mulf %38, %38 : vector<64x32xf32>
    %cst_24 = arith.constant dense<0.000000e+00> : vector<64xf32>
    %41 = vector.multi_reduction <add>, %40, %cst_24 [1] : vector<64x32xf32> to vector<64xf32>
    %42 = vector.shape_cast %41 : vector<64xf32> to vector<64x1xf32>
    %cst_25 = arith.constant 9.99999996E-13 : f32
    %43 = vector.broadcast %cst_25 : f32 to vector<64x1xf32>
    %44 = arith.addf %42, %43 : vector<64x1xf32>
    %45 = math.rsqrt %44 : vector<64x1xf32>
    %46 = vector.broadcast %45 : vector<64x1xf32> to vector<64x32xf32>
    %47 = arith.mulf %38, %46 : vector<64x32xf32>
    %48 = vector.shape_cast %47 : vector<64x32xf32> to vector<1x64x32xf32>
    %49 = vector.shape_cast %39 : vector<64x32xf32> to vector<1x64x32xf32>
    %c0_26 = arith.constant 0 : index
    %c0_27 = arith.constant 0 : index
    %50 = vector.load %arg6[%c0_26, %c0_27] : memref<32x32xf32, #tpu.memory_space<vmem>>, vector<32x32xf32>
    %cst_28 = arith.constant dense<0.000000e+00> : vector<64x32xf32>
    %51 = tpu.matmul %35, %50, %cst_28 {dimension_numbers = #tpu.dot_dimension_numbers<[1], [0], [0], [1], [0, 0, 1, 1], [], []>} : vector<64x32xf32>, vector<32x32xf32>, vector<64x32xf32> -> vector<64x32xf32>
    %52 = vector.broadcast %2 : vector<1x32xf32> to vector<64x32xf32>
    %53 = arith.addf %51, %52 : vector<64x32xf32>
    %cst_29 = arith.constant 5.000000e-01 : f32
    %54 = vector.broadcast %cst_29 : f32 to vector<64x32xf32>
    %55 = arith.mulf %54, %53 : vector<64x32xf32>
    %cst_30 = arith.constant 0.707106769 : f32
    %56 = vector.broadcast %cst_30 : f32 to vector<64x32xf32>
    %57 = arith.mulf %53, %56 : vector<64x32xf32>
    %cst_31 = arith.constant 0.000000e+00 : f32
    %58 = vector.broadcast %cst_31 : f32 to vector<64x32xf32>
    %59 = arith.cmpf oge, %57, %58 : vector<64x32xf32>
    %cst_32 = arith.constant 1.000000e+00 : f32
    %cst_33 = arith.constant -1.000000e+00 : f32
    %60 = vector.broadcast %cst_32 : f32 to vector<64x32xf32>
    %61 = vector.broadcast %cst_33 : f32 to vector<64x32xf32>
    %62 = arith.select %59, %60, %61 : vector<64x32xi1>, vector<64x32xf32>
    %63 = math.absf %57 : vector<64x32xf32>
    %cst_34 = arith.constant 0.327591091 : f32
    %64 = vector.broadcast %cst_34 : f32 to vector<64x32xf32>
    %65 = arith.mulf %64, %63 : vector<64x32xf32>
    %cst_35 = arith.constant 1.000000e+00 : f32
    %66 = vector.broadcast %cst_35 : f32 to vector<64x32xf32>
    %67 = arith.addf %66, %65 : vector<64x32xf32>
    %cst_36 = arith.constant 1.000000e+00 : f32
    %68 = vector.broadcast %cst_36 : f32 to vector<64x32xf32>
    %69 = arith.divf %68, %67 : vector<64x32xf32>
    %cst_37 = arith.constant 1.06140542 : f32
    %70 = vector.broadcast %cst_37 : f32 to vector<64x32xf32>
    %71 = arith.mulf %70, %69 : vector<64x32xf32>
    %cst_38 = arith.constant -1.45315206 : f32
    %72 = vector.broadcast %cst_38 : f32 to vector<64x32xf32>
    %73 = arith.addf %71, %72 : vector<64x32xf32>
    %74 = arith.mulf %73, %69 : vector<64x32xf32>
    %cst_39 = arith.constant 1.42141378 : f32
    %75 = vector.broadcast %cst_39 : f32 to vector<64x32xf32>
    %76 = arith.addf %74, %75 : vector<64x32xf32>
    %77 = arith.mulf %76, %69 : vector<64x32xf32>
    %cst_40 = arith.constant -0.284496725 : f32
    %78 = vector.broadcast %cst_40 : f32 to vector<64x32xf32>
    %79 = arith.addf %77, %78 : vector<64x32xf32>
    %80 = arith.mulf %79, %69 : vector<64x32xf32>
    %cst_41 = arith.constant 0.254829586 : f32
    %81 = vector.broadcast %cst_41 : f32 to vector<64x32xf32>
    %82 = arith.addf %80, %81 : vector<64x32xf32>
    %83 = arith.mulf %82, %69 : vector<64x32xf32>
    %cst_42 = arith.constant 0.000000e+00 : f32
    %84 = vector.broadcast %cst_42 : f32 to vector<64x32xf32>
    %85 = arith.subf %84, %63 : vector<64x32xf32>
    %86 = arith.mulf %85, %63 : vector<64x32xf32>
    %87 = math.exp %86 : vector<64x32xf32>
    %88 = arith.mulf %83, %87 : vector<64x32xf32>
    %cst_43 = arith.constant 1.000000e+00 : f32
    %89 = vector.broadcast %cst_43 : f32 to vector<64x32xf32>
    %90 = arith.subf %89, %88 : vector<64x32xf32>
    %91 = arith.mulf %62, %90 : vector<64x32xf32>
    %cst_44 = arith.constant 1.000000e+00 : f32
    %92 = vector.broadcast %cst_44 : f32 to vector<64x32xf32>
    %93 = arith.addf %92, %91 : vector<64x32xf32>
    %94 = arith.mulf %55, %93 : vector<64x32xf32>
    %95 = vector.shape_cast %94 : vector<64x32xf32> to vector<1x64x32xf32>
    %96 = vector.shape_cast %3 : vector<1x32xf32> to vector<1x1x32xf32>
    %cst_45 = arith.constant dense<0.000000e+00> : vector<1x1x64xf32>
    %97 = tpu.matmul %96, %95, %cst_45 {dimension_numbers = #tpu.dot_dimension_numbers<[2], [2], [1], [1], [0, 0, 0, 1, 1, 1], [0], [0]>} : vector<1x1x32xf32>, vector<1x64x32xf32>, vector<1x1x64xf32> -> vector<1x1x64xf32>
    %cst_46 = arith.constant dense<0xFF800000> : vector<1x1xf32>
    %98 = vector.multi_reduction <maximumf>, %97, %cst_46 [2] : vector<1x1x64xf32> to vector<1x1xf32>
    %99 = vector.shape_cast %98 : vector<1x1xf32> to vector<1x1x1xf32>
    %100 = vector.broadcast %99 : vector<1x1x1xf32> to vector<1x1x64xf32>
    %101 = arith.subf %97, %100 : vector<1x1x64xf32>
    %102 = math.exp %101 : vector<1x1x64xf32>
    %cst_47 = arith.constant dense<0.000000e+00> : vector<1x1xf32>
    %103 = vector.multi_reduction <add>, %102, %cst_47 [2] : vector<1x1x64xf32> to vector<1x1xf32>
    %104 = vector.shape_cast %103 : vector<1x1xf32> to vector<1x1x1xf32>
    %105 = tpu.reciprocal %104 {approx = true} : vector<1x1x1xf32> -> vector<1x1x1xf32>
    %106 = vector.broadcast %105 : vector<1x1x1xf32> to vector<1x1x64xf32>
    %107 = arith.mulf %102, %106 : vector<1x1x64xf32>
    %cst_48 = arith.constant 4.000000e+00 : f32
    %108 = vector.broadcast %cst_48 : f32 to vector<1x1x64xf32>
    %109 = arith.mulf %108, %107 : vector<1x1x64xf32>
    %cst_49 = arith.constant 1.000000e-30 : f32
    %110 = vector.broadcast %cst_49 : f32 to vector<1x1x64xf32>
    %111 = arith.maximumf %109, %110 : vector<1x1x64xf32>
    %112 = math.log %111 : vector<1x1x64xf32>
    %c0_50 = arith.constant 0 : index
    %c0_51 = arith.constant 0 : index
    %c0_52 = arith.constant 0 : index
    %113 = vector.load %arg3[%c0_50, %c0_51, %c0_52] : memref<1x4x64xf32, #tpu.memory_space<vmem>>, vector<1x4x64xf32>
    %114 = math.exp %5 : vector<1x32xf32>
    %c0_53 = arith.constant 0 : index
    %c0_54 = arith.constant 0 : index
    %c0_55 = arith.constant 0 : index
    %115 = vector.load %arg2[%c0_53, %c0_54, %c0_55] : memref<1x4x32xf32, #tpu.memory_space<vmem>>, vector<1x4x32xf32>
    %116 = vector.shape_cast %115 : vector<1x4x32xf32> to vector<4x32xf32>
    %117 = vector.broadcast %114 : vector<1x32xf32> to vector<4x32xf32>
    %118 = arith.mulf %117, %116 : vector<4x32xf32>
    %119 = vector.broadcast %4 : vector<1x32xf32> to vector<4x32xf32>
    %120 = arith.addf %119, %118 : vector<4x32xf32>
    %121 = vector.shape_cast %6 : vector<1x32xf32> to vector<1x32xf32>
    %122 = vector.broadcast %121 : vector<1x32xf32> to vector<4x32xf32>
    %123 = vector.shape_cast %7 : vector<1x32xf32> to vector<1x32xf32>
    %124 = vector.broadcast %123 : vector<1x32xf32> to vector<4x32xf32>
    %125 = vector.shape_cast %8 : vector<1x32xf32> to vector<1x32xf32>
    %126 = vector.broadcast %125 : vector<1x32xf32> to vector<4x32xf32>
    %127 = vector.shape_cast %9 : vector<1x96xf32> to vector<1x96xf32>
    %128 = vector.broadcast %127 : vector<1x96xf32> to vector<4x96xf32>
    %129 = vector.shape_cast %10 : vector<1x96xf32> to vector<1x96xf32>
    %130 = vector.broadcast %129 : vector<1x96xf32> to vector<4x96xf32>
    %131 = vector.shape_cast %11 : vector<1x32xf32> to vector<1x32xf32>
    %132 = vector.broadcast %131 : vector<1x32xf32> to vector<4x32xf32>
    %133 = vector.shape_cast %12 : vector<1x32xf32> to vector<1x32xf32>
    %134 = vector.broadcast %133 : vector<1x32xf32> to vector<4x32xf32>
    %135 = vector.shape_cast %13 : vector<1x32xf32> to vector<1x32xf32>
    %136 = vector.broadcast %135 : vector<1x32xf32> to vector<4x32xf32>
    %137 = vector.shape_cast %14 : vector<1x32xf32> to vector<1x32xf32>
    %138 = vector.broadcast %137 : vector<1x32xf32> to vector<4x32xf32>
    %c0_56 = arith.constant 0 : index
    %c0_57 = arith.constant 0 : index
    %139 = vector.load %arg7[%c0_56, %c0_57] : memref<32x32xf32, #tpu.memory_space<vmem>>, vector<32x32xf32>
    %c0_58 = arith.constant 0 : index
    %c0_59 = arith.constant 0 : index
    %140 = vector.load %arg8[%c0_58, %c0_59] : memref<32x1xf32, #tpu.memory_space<vmem>>, vector<32x1xf32>
    %c0_60 = arith.constant 0 : index
    %c0_61 = arith.constant 0 : index
    %141 = vector.load %arg9[%c0_60, %c0_61] : memref<32x32xf32, #tpu.memory_space<vmem>>, vector<32x32xf32>
    %c0_62 = arith.constant 0 : index
    %c0_63 = arith.constant 0 : index
    %142 = vector.load %arg10[%c0_62, %c0_63] : memref<32x96xf32, #tpu.memory_space<vmem>>, vector<32x96xf32>
    %c0_64 = arith.constant 0 : index
    %c0_65 = arith.constant 0 : index
    %143 = vector.load %arg11[%c0_64, %c0_65] : memref<32x96xf32, #tpu.memory_space<vmem>>, vector<32x96xf32>
    %c0_66 = arith.constant 0 : index
    %c0_67 = arith.constant 0 : index
    %144 = vector.load %arg12[%c0_66, %c0_67] : memref<32x32xf32, #tpu.memory_space<vmem>>, vector<32x32xf32>
    %c0_68 = arith.constant 0 : index
    %c0_69 = arith.constant 0 : index
    %145 = vector.load %arg13[%c0_68, %c0_69] : memref<32x32xf32, #tpu.memory_space<vmem>>, vector<32x32xf32>
    %c0_i32 = arith.constant 0 : i32
    %c2_i32 = arith.constant 2 : i32
    %146 = arith.addi %c0_i32, %c2_i32 : i32
    %c1_i32 = arith.constant 1 : i32
    %147 = scf.for %arg15 = %c0_i32 to %146 step %c1_i32 iter_args(%arg16 = %120) -> (vector<4x32xf32>)  : i32 {
      %cst_73 = arith.constant dense<0.000000e+00> : vector<4xf32>
      %150 = vector.multi_reduction <add>, %arg16, %cst_73 [1] : vector<4x32xf32> to vector<4xf32>
      %151 = vector.shape_cast %150 : vector<4xf32> to vector<4x1xf32>
      %cst_74 = arith.constant 3.200000e+01 : f32
      %152 = vector.broadcast %cst_74 : f32 to vector<4x1xf32>
      %153 = arith.divf %151, %152 : vector<4x1xf32>
      %154 = vector.broadcast %153 : vector<4x1xf32> to vector<4x32xf32>
      %155 = arith.subf %arg16, %154 : vector<4x32xf32>
      %156 = arith.mulf %155, %155 : vector<4x32xf32>
      %cst_75 = arith.constant dense<0.000000e+00> : vector<4xf32>
      %157 = vector.multi_reduction <add>, %156, %cst_75 [1] : vector<4x32xf32> to vector<4xf32>
      %158 = vector.shape_cast %157 : vector<4xf32> to vector<4x1xf32>
      %cst_76 = arith.constant 3.200000e+01 : f32
      %159 = vector.broadcast %cst_76 : f32 to vector<4x1xf32>
      %160 = arith.divf %158, %159 : vector<4x1xf32>
      %cst_77 = arith.constant 9.99999974E-6 : f32
      %161 = vector.broadcast %cst_77 : f32 to vector<4x1xf32>
      %162 = arith.addf %160, %161 : vector<4x1xf32>
      %163 = math.rsqrt %162 : vector<4x1xf32>
      %164 = vector.broadcast %163 : vector<4x1xf32> to vector<4x32xf32>
      %165 = arith.mulf %155, %164 : vector<4x32xf32>
      %166 = arith.mulf %165, %122 : vector<4x32xf32>
      %167 = arith.addf %166, %124 : vector<4x32xf32>
      %cst_78 = arith.constant dense<0.000000e+00> : vector<4x32xf32>
      %168 = tpu.matmul %167, %139, %cst_78 {dimension_numbers = #tpu.dot_dimension_numbers<[1], [0], [0], [1], [0, 0, 1, 1], [], []>} : vector<4x32xf32>, vector<32x32xf32>, vector<4x32xf32> -> vector<4x32xf32>
      %169 = arith.addf %168, %126 : vector<4x32xf32>
      %cst_79 = arith.constant 5.000000e-01 : f32
      %170 = vector.broadcast %cst_79 : f32 to vector<4x32xf32>
      %171 = arith.mulf %170, %169 : vector<4x32xf32>
      %cst_80 = arith.constant 0.707106769 : f32
      %172 = vector.broadcast %cst_80 : f32 to vector<4x32xf32>
      %173 = arith.mulf %169, %172 : vector<4x32xf32>
      %cst_81 = arith.constant 0.000000e+00 : f32
      %174 = vector.broadcast %cst_81 : f32 to vector<4x32xf32>
      %175 = arith.cmpf oge, %173, %174 : vector<4x32xf32>
      %cst_82 = arith.constant 1.000000e+00 : f32
      %cst_83 = arith.constant -1.000000e+00 : f32
      %176 = vector.broadcast %cst_82 : f32 to vector<4x32xf32>
      %177 = vector.broadcast %cst_83 : f32 to vector<4x32xf32>
      %178 = arith.select %175, %176, %177 : vector<4x32xi1>, vector<4x32xf32>
      %179 = math.absf %173 : vector<4x32xf32>
      %cst_84 = arith.constant 0.327591091 : f32
      %180 = vector.broadcast %cst_84 : f32 to vector<4x32xf32>
      %181 = arith.mulf %180, %179 : vector<4x32xf32>
      %cst_85 = arith.constant 1.000000e+00 : f32
      %182 = vector.broadcast %cst_85 : f32 to vector<4x32xf32>
      %183 = arith.addf %182, %181 : vector<4x32xf32>
      %cst_86 = arith.constant 1.000000e+00 : f32
      %184 = vector.broadcast %cst_86 : f32 to vector<4x32xf32>
      %185 = arith.divf %184, %183 : vector<4x32xf32>
      %cst_87 = arith.constant 1.06140542 : f32
      %186 = vector.broadcast %cst_87 : f32 to vector<4x32xf32>
      %187 = arith.mulf %186, %185 : vector<4x32xf32>
      %cst_88 = arith.constant -1.45315206 : f32
      %188 = vector.broadcast %cst_88 : f32 to vector<4x32xf32>
      %189 = arith.addf %187, %188 : vector<4x32xf32>
      %190 = arith.mulf %189, %185 : vector<4x32xf32>
      %cst_89 = arith.constant 1.42141378 : f32
      %191 = vector.broadcast %cst_89 : f32 to vector<4x32xf32>
      %192 = arith.addf %190, %191 : vector<4x32xf32>
      %193 = arith.mulf %192, %185 : vector<4x32xf32>
      %cst_90 = arith.constant -0.284496725 : f32
      %194 = vector.broadcast %cst_90 : f32 to vector<4x32xf32>
      %195 = arith.addf %193, %194 : vector<4x32xf32>
      %196 = arith.mulf %195, %185 : vector<4x32xf32>
      %cst_91 = arith.constant 0.254829586 : f32
      %197 = vector.broadcast %cst_91 : f32 to vector<4x32xf32>
      %198 = arith.addf %196, %197 : vector<4x32xf32>
      %199 = arith.mulf %198, %185 : vector<4x32xf32>
      %cst_92 = arith.constant 0.000000e+00 : f32
      %200 = vector.broadcast %cst_92 : f32 to vector<4x32xf32>
      %201 = arith.subf %200, %179 : vector<4x32xf32>
      %202 = arith.mulf %201, %179 : vector<4x32xf32>
      %203 = math.exp %202 : vector<4x32xf32>
      %204 = arith.mulf %199, %203 : vector<4x32xf32>
      %cst_93 = arith.constant 1.000000e+00 : f32
      %205 = vector.broadcast %cst_93 : f32 to vector<4x32xf32>
      %206 = arith.subf %205, %204 : vector<4x32xf32>
      %207 = arith.mulf %178, %206 : vector<4x32xf32>
      %cst_94 = arith.constant 1.000000e+00 : f32
      %208 = vector.broadcast %cst_94 : f32 to vector<4x32xf32>
      %209 = arith.addf %208, %207 : vector<4x32xf32>
      %210 = arith.mulf %171, %209 : vector<4x32xf32>
      %cst_95 = arith.constant dense<0.000000e+00> : vector<4x1xf32>
      %211 = tpu.matmul %210, %140, %cst_95 {dimension_numbers = #tpu.dot_dimension_numbers<[1], [0], [0], [1], [0, 0, 1, 1], [], []>} : vector<4x32xf32>, vector<32x1xf32>, vector<4x1xf32> -> vector<4x1xf32>
      %212 = vector.shape_cast %211 : vector<4x1xf32> to vector<1x4x1xf32>
      %cst_96 = arith.constant dense<0xFF800000> : vector<1x1xf32>
      %213 = vector.multi_reduction <maximumf>, %212, %cst_96 [1] : vector<1x4x1xf32> to vector<1x1xf32>
      %214 = vector.shape_cast %213 : vector<1x1xf32> to vector<1x1x1xf32>
      %215 = vector.broadcast %214 : vector<1x1x1xf32> to vector<1x4x1xf32>
      %216 = arith.subf %212, %215 : vector<1x4x1xf32>
      %217 = math.exp %216 : vector<1x4x1xf32>
      %cst_97 = arith.constant dense<0.000000e+00> : vector<1x1xf32>
      %218 = vector.multi_reduction <add>, %217, %cst_97 [1] : vector<1x4x1xf32> to vector<1x1xf32>
      %219 = vector.shape_cast %218 : vector<1x1xf32> to vector<1x1x1xf32>
      %220 = tpu.reciprocal %219 {approx = true} : vector<1x1x1xf32> -> vector<1x1x1xf32>
      %221 = vector.broadcast %220 : vector<1x1x1xf32> to vector<1x4x1xf32>
      %222 = arith.mulf %217, %221 : vector<1x4x1xf32>
      %cst_98 = arith.constant 4.000000e+00 : f32
      %223 = vector.broadcast %cst_98 : f32 to vector<1x4x1xf32>
      %224 = arith.mulf %223, %222 : vector<1x4x1xf32>
      %cst_99 = arith.constant 1.000000e-30 : f32
      %225 = vector.broadcast %cst_99 : f32 to vector<1x4x1xf32>
      %226 = arith.maximumf %224, %225 : vector<1x4x1xf32>
      %227 = math.log %226 : vector<1x4x1xf32>
      %cst_100 = arith.constant dense<0.000000e+00> : vector<4x32xf32>
      %228 = tpu.matmul %167, %141, %cst_100 {dimension_numbers = #tpu.dot_dimension_numbers<[1], [0], [0], [1], [0, 0, 1, 1], [], []>} : vector<4x32xf32>, vector<32x32xf32>, vector<4x32xf32> -> vector<4x32xf32>
      %229 = arith.mulf %228, %228 : vector<4x32xf32>
      %cst_101 = arith.constant dense<0.000000e+00> : vector<4xf32>
      %230 = vector.multi_reduction <add>, %229, %cst_101 [1] : vector<4x32xf32> to vector<4xf32>
      %231 = vector.shape_cast %230 : vector<4xf32> to vector<4x1xf32>
      %cst_102 = arith.constant 9.99999996E-13 : f32
      %232 = vector.broadcast %cst_102 : f32 to vector<4x1xf32>
      %233 = arith.addf %231, %232 : vector<4x1xf32>
      %234 = math.rsqrt %233 : vector<4x1xf32>
      %235 = vector.broadcast %234 : vector<4x1xf32> to vector<4x32xf32>
      %236 = arith.mulf %228, %235 : vector<4x32xf32>
      %237 = vector.shape_cast %236 : vector<4x32xf32> to vector<1x4x32xf32>
      %cst_103 = arith.constant dense<0.000000e+00> : vector<1x4x64xf32>
      %238 = tpu.matmul %237, %48, %cst_103 {dimension_numbers = #tpu.dot_dimension_numbers<[2], [2], [1], [1], [0, 0, 0, 1, 1, 1], [0], [0]>} : vector<1x4x32xf32>, vector<1x64x32xf32>, vector<1x4x64xf32> -> vector<1x4x64xf32>
      %cst_104 = arith.constant 1.000000e+00 : f32
      %239 = vector.broadcast %cst_104 : f32 to vector<1x4x64xf32>
      %240 = arith.subf %239, %238 : vector<1x4x64xf32>
      %cst_105 = arith.constant 4.000000e+00 : f32
      %241 = vector.broadcast %cst_105 : f32 to vector<1x4x64xf32>
      %242 = arith.mulf %241, %240 : vector<1x4x64xf32>
      %cst_106 = arith.constant 1.000000e-03 : f32
      %243 = vector.broadcast %cst_106 : f32 to vector<1x4x64xf32>
      %244 = arith.mulf %243, %113 : vector<1x4x64xf32>
      %245 = arith.addf %242, %244 : vector<1x4x64xf32>
      %cst_107 = arith.constant 0.000000e+00 : f32
      %246 = vector.broadcast %cst_107 : f32 to vector<1x4x1xf32>
      %cst_108 = arith.constant 0.000000e+00 : f32
      %247 = vector.broadcast %cst_108 : f32 to vector<1x4x64xf32>
      %248 = arith.subf %247, %245 : vector<1x4x64xf32>
      %249 = vector.broadcast %246 : vector<1x4x1xf32> to vector<1x4x64xf32>
      %250 = arith.addf %248, %249 : vector<1x4x64xf32>
      %cst_109 = arith.constant dense<0xFF800000> : vector<1x64xf32>
      %251 = vector.multi_reduction <maximumf>, %250, %cst_109 [1] : vector<1x4x64xf32> to vector<1x64xf32>
      %252 = vector.shape_cast %251 : vector<1x64xf32> to vector<1x1x64xf32>
      %253 = vector.broadcast %252 : vector<1x1x64xf32> to vector<1x4x64xf32>
      %254 = arith.subf %250, %253 : vector<1x4x64xf32>
      %255 = math.exp %254 : vector<1x4x64xf32>
      %cst_110 = arith.constant dense<0.000000e+00> : vector<1x64xf32>
      %256 = vector.multi_reduction <add>, %255, %cst_110 [1] : vector<1x4x64xf32> to vector<1x64xf32>
      %257 = vector.shape_cast %256 : vector<1x64xf32> to vector<1x1x64xf32>
      %258 = math.log %257 : vector<1x1x64xf32>
      %259 = arith.addf %252, %258 : vector<1x1x64xf32>
      %260 = arith.subf %112, %259 : vector<1x1x64xf32>
      %261 = vector.broadcast %260 : vector<1x1x64xf32> to vector<1x4x64xf32>
      %262 = arith.addf %248, %261 : vector<1x4x64xf32>
      %cst_111 = arith.constant dense<0xFF800000> : vector<1x4xf32>
      %263 = vector.multi_reduction <maximumf>, %262, %cst_111 [2] : vector<1x4x64xf32> to vector<1x4xf32>
      %264 = vector.shape_cast %263 : vector<1x4xf32> to vector<1x4x1xf32>
      %265 = vector.broadcast %264 : vector<1x4x1xf32> to vector<1x4x64xf32>
      %266 = arith.subf %262, %265 : vector<1x4x64xf32>
      %267 = math.exp %266 : vector<1x4x64xf32>
      %cst_112 = arith.constant dense<0.000000e+00> : vector<1x4xf32>
      %268 = vector.multi_reduction <add>, %267, %cst_112 [2] : vector<1x4x64xf32> to vector<1x4xf32>
      %269 = vector.shape_cast %268 : vector<1x4xf32> to vector<1x4x1xf32>
      %270 = math.log %269 : vector<1x4x1xf32>
      %271 = arith.addf %264, %270 : vector<1x4x1xf32>
      %272 = arith.subf %227, %271 : vector<1x4x1xf32>
      %273 = vector.broadcast %272 : vector<1x4x1xf32> to vector<1x4x64xf32>
      %274 = arith.addf %248, %273 : vector<1x4x64xf32>
      %cst_113 = arith.constant dense<0xFF800000> : vector<1x64xf32>
      %275 = vector.multi_reduction <maximumf>, %274, %cst_113 [1] : vector<1x4x64xf32> to vector<1x64xf32>
      %276 = vector.shape_cast %275 : vector<1x64xf32> to vector<1x1x64xf32>
      %277 = vector.broadcast %276 : vector<1x1x64xf32> to vector<1x4x64xf32>
      %278 = arith.subf %274, %277 : vector<1x4x64xf32>
      %279 = math.exp %278 : vector<1x4x64xf32>
      %cst_114 = arith.constant dense<0.000000e+00> : vector<1x64xf32>
      %280 = vector.multi_reduction <add>, %279, %cst_114 [1] : vector<1x4x64xf32> to vector<1x64xf32>
      %281 = vector.shape_cast %280 : vector<1x64xf32> to vector<1x1x64xf32>
      %282 = math.log %281 : vector<1x1x64xf32>
      %283 = arith.addf %276, %282 : vector<1x1x64xf32>
      %284 = arith.subf %112, %283 : vector<1x1x64xf32>
      %285 = vector.broadcast %284 : vector<1x1x64xf32> to vector<1x4x64xf32>
      %286 = arith.addf %248, %285 : vector<1x4x64xf32>
      %cst_115 = arith.constant dense<0xFF800000> : vector<1x4xf32>
      %287 = vector.multi_reduction <maximumf>, %286, %cst_115 [2] : vector<1x4x64xf32> to vector<1x4xf32>
      %288 = vector.shape_cast %287 : vector<1x4xf32> to vector<1x4x1xf32>
      %289 = vector.broadcast %288 : vector<1x4x1xf32> to vector<1x4x64xf32>
      %290 = arith.subf %286, %289 : vector<1x4x64xf32>
      %291 = math.exp %290 : vector<1x4x64xf32>
      %cst_116 = arith.constant dense<0.000000e+00> : vector<1x4xf32>
      %292 = vector.multi_reduction <add>, %291, %cst_116 [2] : vector<1x4x64xf32> to vector<1x4xf32>
      %293 = vector.shape_cast %292 : vector<1x4xf32> to vector<1x4x1xf32>
      %294 = math.log %293 : vector<1x4x1xf32>
      %295 = arith.addf %288, %294 : vector<1x4x1xf32>
      %296 = arith.subf %227, %295 : vector<1x4x1xf32>
      %297 = vector.broadcast %296 : vector<1x4x1xf32> to vector<1x4x64xf32>
      %298 = arith.addf %248, %297 : vector<1x4x64xf32>
      %cst_117 = arith.constant dense<0xFF800000> : vector<1x64xf32>
      %299 = vector.multi_reduction <maximumf>, %298, %cst_117 [1] : vector<1x4x64xf32> to vector<1x64xf32>
      %300 = vector.shape_cast %299 : vector<1x64xf32> to vector<1x1x64xf32>
      %301 = vector.broadcast %300 : vector<1x1x64xf32> to vector<1x4x64xf32>
      %302 = arith.subf %298, %301 : vector<1x4x64xf32>
      %303 = math.exp %302 : vector<1x4x64xf32>
      %cst_118 = arith.constant dense<0.000000e+00> : vector<1x64xf32>
      %304 = vector.multi_reduction <add>, %303, %cst_118 [1] : vector<1x4x64xf32> to vector<1x64xf32>
      %305 = vector.shape_cast %304 : vector<1x64xf32> to vector<1x1x64xf32>
      %306 = math.log %305 : vector<1x1x64xf32>
      %307 = arith.addf %300, %306 : vector<1x1x64xf32>
      %308 = arith.subf %112, %307 : vector<1x1x64xf32>
      %309 = vector.broadcast %308 : vector<1x1x64xf32> to vector<1x4x64xf32>
      %310 = arith.addf %248, %309 : vector<1x4x64xf32>
      %cst_119 = arith.constant dense<0xFF800000> : vector<1x4xf32>
      %311 = vector.multi_reduction <maximumf>, %310, %cst_119 [2] : vector<1x4x64xf32> to vector<1x4xf32>
      %312 = vector.shape_cast %311 : vector<1x4xf32> to vector<1x4x1xf32>
      %313 = vector.broadcast %312 : vector<1x4x1xf32> to vector<1x4x64xf32>
      %314 = arith.subf %310, %313 : vector<1x4x64xf32>
      %315 = math.exp %314 : vector<1x4x64xf32>
      %cst_120 = arith.constant dense<0.000000e+00> : vector<1x4xf32>
      %316 = vector.multi_reduction <add>, %315, %cst_120 [2] : vector<1x4x64xf32> to vector<1x4xf32>
      %317 = vector.shape_cast %316 : vector<1x4xf32> to vector<1x4x1xf32>
      %318 = math.log %317 : vector<1x4x1xf32>
      %319 = arith.addf %312, %318 : vector<1x4x1xf32>
      %320 = arith.subf %227, %319 : vector<1x4x1xf32>
      %321 = vector.broadcast %320 : vector<1x4x1xf32> to vector<1x4x64xf32>
      %322 = arith.addf %248, %321 : vector<1x4x64xf32>
      %cst_121 = arith.constant dense<0xFF800000> : vector<1x64xf32>
      %323 = vector.multi_reduction <maximumf>, %322, %cst_121 [1] : vector<1x4x64xf32> to vector<1x64xf32>
      %324 = vector.shape_cast %323 : vector<1x64xf32> to vector<1x1x64xf32>
      %325 = vector.broadcast %324 : vector<1x1x64xf32> to vector<1x4x64xf32>
      %326 = arith.subf %322, %325 : vector<1x4x64xf32>
      %327 = math.exp %326 : vector<1x4x64xf32>
      %cst_122 = arith.constant dense<0.000000e+00> : vector<1x64xf32>
      %328 = vector.multi_reduction <add>, %327, %cst_122 [1] : vector<1x4x64xf32> to vector<1x64xf32>
      %329 = vector.shape_cast %328 : vector<1x64xf32> to vector<1x1x64xf32>
      %330 = math.log %329 : vector<1x1x64xf32>
      %331 = arith.addf %324, %330 : vector<1x1x64xf32>
      %332 = arith.subf %112, %331 : vector<1x1x64xf32>
      %333 = vector.broadcast %332 : vector<1x1x64xf32> to vector<1x4x64xf32>
      %334 = arith.addf %248, %333 : vector<1x4x64xf32>
      %cst_123 = arith.constant dense<0xFF800000> : vector<1x4xf32>
      %335 = vector.multi_reduction <maximumf>, %334, %cst_123 [2] : vector<1x4x64xf32> to vector<1x4xf32>
      %336 = vector.shape_cast %335 : vector<1x4xf32> to vector<1x4x1xf32>
      %337 = vector.broadcast %336 : vector<1x4x1xf32> to vector<1x4x64xf32>
      %338 = arith.subf %334, %337 : vector<1x4x64xf32>
      %339 = math.exp %338 : vector<1x4x64xf32>
      %cst_124 = arith.constant dense<0.000000e+00> : vector<1x4xf32>
      %340 = vector.multi_reduction <add>, %339, %cst_124 [2] : vector<1x4x64xf32> to vector<1x4xf32>
      %341 = vector.shape_cast %340 : vector<1x4xf32> to vector<1x4x1xf32>
      %342 = math.log %341 : vector<1x4x1xf32>
      %343 = arith.addf %336, %342 : vector<1x4x1xf32>
      %344 = arith.subf %227, %343 : vector<1x4x1xf32>
      %345 = vector.broadcast %344 : vector<1x4x1xf32> to vector<1x4x64xf32>
      %346 = arith.addf %248, %345 : vector<1x4x64xf32>
      %cst_125 = arith.constant dense<0xFF800000> : vector<1x64xf32>
      %347 = vector.multi_reduction <maximumf>, %346, %cst_125 [1] : vector<1x4x64xf32> to vector<1x64xf32>
      %348 = vector.shape_cast %347 : vector<1x64xf32> to vector<1x1x64xf32>
      %349 = vector.broadcast %348 : vector<1x1x64xf32> to vector<1x4x64xf32>
      %350 = arith.subf %346, %349 : vector<1x4x64xf32>
      %351 = math.exp %350 : vector<1x4x64xf32>
      %cst_126 = arith.constant dense<0.000000e+00> : vector<1x64xf32>
      %352 = vector.multi_reduction <add>, %351, %cst_126 [1] : vector<1x4x64xf32> to vector<1x64xf32>
      %353 = vector.shape_cast %352 : vector<1x64xf32> to vector<1x1x64xf32>
      %354 = math.log %353 : vector<1x1x64xf32>
      %355 = arith.addf %348, %354 : vector<1x1x64xf32>
      %356 = arith.subf %112, %355 : vector<1x1x64xf32>
      %357 = vector.broadcast %356 : vector<1x1x64xf32> to vector<1x4x64xf32>
      %358 = arith.addf %248, %357 : vector<1x4x64xf32>
      %cst_127 = arith.constant dense<0xFF800000> : vector<1x4xf32>
      %359 = vector.multi_reduction <maximumf>, %358, %cst_127 [2] : vector<1x4x64xf32> to vector<1x4xf32>
      %360 = vector.shape_cast %359 : vector<1x4xf32> to vector<1x4x1xf32>
      %361 = vector.broadcast %360 : vector<1x4x1xf32> to vector<1x4x64xf32>
      %362 = arith.subf %358, %361 : vector<1x4x64xf32>
      %363 = math.exp %362 : vector<1x4x64xf32>
      %cst_128 = arith.constant dense<0.000000e+00> : vector<1x4xf32>
      %364 = vector.multi_reduction <add>, %363, %cst_128 [2] : vector<1x4x64xf32> to vector<1x4xf32>
      %365 = vector.shape_cast %364 : vector<1x4xf32> to vector<1x4x1xf32>
      %366 = math.log %365 : vector<1x4x1xf32>
      %367 = arith.addf %360, %366 : vector<1x4x1xf32>
      %368 = arith.subf %227, %367 : vector<1x4x1xf32>
      %369 = vector.broadcast %356 : vector<1x1x64xf32> to vector<1x4x64xf32>
      %370 = arith.addf %248, %369 : vector<1x4x64xf32>
      %371 = vector.broadcast %368 : vector<1x4x1xf32> to vector<1x4x64xf32>
      %372 = arith.addf %370, %371 : vector<1x4x64xf32>
      %373 = math.exp %372 : vector<1x4x64xf32>
      %cst_129 = arith.constant 9.99999968E-21 : f32
      %cst_130 = arith.constant 1.000000e+00 : f32
      %374 = vector.broadcast %cst_129 : f32 to vector<1x4x64xf32>
      %375 = arith.maximumf %374, %373 : vector<1x4x64xf32>
      %376 = vector.broadcast %cst_130 : f32 to vector<1x4x64xf32>
      %377 = arith.minimumf %376, %375 : vector<1x4x64xf32>
      %cst_131 = arith.constant 9.99999968E-21 : f32
      %378 = vector.broadcast %cst_131 : f32 to vector<1x4x64xf32>
      %379 = arith.cmpf oge, %373, %378 : vector<1x4x64xf32>
      %cst_132 = arith.constant 1.000000e+00 : f32
      %380 = vector.broadcast %cst_132 : f32 to vector<1x4x64xf32>
      %381 = arith.cmpf ole, %373, %380 : vector<1x4x64xf32>
      %382 = arith.andi %379, %381 : vector<1x4x64xi1>
      %383 = arith.extui %382 : vector<1x4x64xi1> to vector<1x4x64xi32>
      %384 = arith.sitofp %383 : vector<1x4x64xi32> to vector<1x4x64xf32>
      %385 = math.log %377 : vector<1x4x64xf32>
      %cst_133 = arith.constant 1.000000e+00 : f32
      %386 = vector.broadcast %cst_133 : f32 to vector<1x4x64xf32>
      %387 = arith.addf %385, %386 : vector<1x4x64xf32>
      %cst_134 = arith.constant 0.000000e+00 : f32
      %388 = vector.broadcast %cst_134 : f32 to vector<1x4x64xf32>
      %389 = arith.subf %388, %387 : vector<1x4x64xf32>
      %cst_135 = arith.constant 3.906250e-03 : f32
      %390 = vector.broadcast %cst_135 : f32 to vector<1x4x64xf32>
      %391 = arith.mulf %389, %390 : vector<1x4x64xf32>
      %392 = arith.mulf %391, %384 : vector<1x4x64xf32>
      %393 = arith.mulf %392, %373 : vector<1x4x64xf32>
      %cst_136 = arith.constant dense<0.000000e+00> : vector<1x64xf32>
      %394 = vector.multi_reduction <add>, %393, %cst_136 [1] : vector<1x4x64xf32> to vector<1x64xf32>
      %395 = vector.shape_cast %394 : vector<1x64xf32> to vector<1x1x64xf32>
      %cst_137 = arith.constant dense<0.000000e+00> : vector<1x4xf32>
      %396 = vector.multi_reduction <add>, %393, %cst_137 [2] : vector<1x4x64xf32> to vector<1x4xf32>
      %397 = vector.shape_cast %396 : vector<1x4xf32> to vector<1x4x1xf32>
      %cst_138 = arith.constant 0.000000e+00 : f32
      %398 = vector.broadcast %cst_138 : f32 to vector<1x4x1xf32>
      %399 = arith.subf %398, %397 : vector<1x4x1xf32>
      %400 = vector.broadcast %356 : vector<1x1x64xf32> to vector<1x4x64xf32>
      %401 = arith.addf %248, %400 : vector<1x4x64xf32>
      %402 = vector.broadcast %368 : vector<1x4x1xf32> to vector<1x4x64xf32>
      %403 = arith.addf %401, %402 : vector<1x4x64xf32>
      %404 = vector.broadcast %227 : vector<1x4x1xf32> to vector<1x4x64xf32>
      %405 = arith.subf %403, %404 : vector<1x4x64xf32>
      %406 = math.exp %405 : vector<1x4x64xf32>
      %407 = vector.broadcast %399 : vector<1x4x1xf32> to vector<1x4x64xf32>
      %408 = arith.mulf %407, %406 : vector<1x4x64xf32>
      %409 = arith.addf %393, %408 : vector<1x4x64xf32>
      %cst_139 = arith.constant dense<0.000000e+00> : vector<1x64xf32>
      %410 = vector.multi_reduction <add>, %408, %cst_139 [1] : vector<1x4x64xf32> to vector<1x64xf32>
      %411 = vector.shape_cast %410 : vector<1x64xf32> to vector<1x1x64xf32>
      %412 = arith.addf %411, %395 : vector<1x1x64xf32>
      %cst_140 = arith.constant 0.000000e+00 : f32
      %413 = vector.broadcast %cst_140 : f32 to vector<1x1x64xf32>
      %414 = arith.subf %413, %412 : vector<1x1x64xf32>
      %415 = vector.broadcast %344 : vector<1x4x1xf32> to vector<1x4x64xf32>
      %416 = arith.addf %248, %415 : vector<1x4x64xf32>
      %417 = vector.broadcast %356 : vector<1x1x64xf32> to vector<1x4x64xf32>
      %418 = arith.addf %416, %417 : vector<1x4x64xf32>
      %419 = vector.broadcast %112 : vector<1x1x64xf32> to vector<1x4x64xf32>
      %420 = arith.subf %418, %419 : vector<1x4x64xf32>
      %421 = math.exp %420 : vector<1x4x64xf32>
      %422 = vector.broadcast %414 : vector<1x1x64xf32> to vector<1x4x64xf32>
      %423 = arith.mulf %422, %421 : vector<1x4x64xf32>
      %424 = arith.addf %409, %423 : vector<1x4x64xf32>
      %cst_141 = arith.constant dense<0.000000e+00> : vector<1x4xf32>
      %425 = vector.multi_reduction <add>, %423, %cst_141 [2] : vector<1x4x64xf32> to vector<1x4xf32>
      %426 = vector.shape_cast %425 : vector<1x4xf32> to vector<1x4x1xf32>
      %cst_142 = arith.constant 0.000000e+00 : f32
      %427 = vector.broadcast %cst_142 : f32 to vector<1x4x1xf32>
      %428 = arith.subf %427, %426 : vector<1x4x1xf32>
      %429 = vector.broadcast %332 : vector<1x1x64xf32> to vector<1x4x64xf32>
      %430 = arith.addf %248, %429 : vector<1x4x64xf32>
      %431 = vector.broadcast %344 : vector<1x4x1xf32> to vector<1x4x64xf32>
      %432 = arith.addf %430, %431 : vector<1x4x64xf32>
      %433 = vector.broadcast %227 : vector<1x4x1xf32> to vector<1x4x64xf32>
      %434 = arith.subf %432, %433 : vector<1x4x64xf32>
      %435 = math.exp %434 : vector<1x4x64xf32>
      %436 = vector.broadcast %428 : vector<1x4x1xf32> to vector<1x4x64xf32>
      %437 = arith.mulf %436, %435 : vector<1x4x64xf32>
      %438 = arith.addf %424, %437 : vector<1x4x64xf32>
      %cst_143 = arith.constant dense<0.000000e+00> : vector<1x64xf32>
      %439 = vector.multi_reduction <add>, %437, %cst_143 [1] : vector<1x4x64xf32> to vector<1x64xf32>
      %440 = vector.shape_cast %439 : vector<1x64xf32> to vector<1x1x64xf32>
      %cst_144 = arith.constant 0.000000e+00 : f32
      %441 = vector.broadcast %cst_144 : f32 to vector<1x1x64xf32>
      %442 = arith.subf %441, %440 : vector<1x1x64xf32>
      %443 = vector.broadcast %320 : vector<1x4x1xf32> to vector<1x4x64xf32>
      %444 = arith.addf %248, %443 : vector<1x4x64xf32>
      %445 = vector.broadcast %332 : vector<1x1x64xf32> to vector<1x4x64xf32>
      %446 = arith.addf %444, %445 : vector<1x4x64xf32>
      %447 = vector.broadcast %112 : vector<1x1x64xf32> to vector<1x4x64xf32>
      %448 = arith.subf %446, %447 : vector<1x4x64xf32>
      %449 = math.exp %448 : vector<1x4x64xf32>
      %450 = vector.broadcast %442 : vector<1x1x64xf32> to vector<1x4x64xf32>
      %451 = arith.mulf %450, %449 : vector<1x4x64xf32>
      %452 = arith.addf %438, %451 : vector<1x4x64xf32>
      %cst_145 = arith.constant dense<0.000000e+00> : vector<1x4xf32>
      %453 = vector.multi_reduction <add>, %451, %cst_145 [2] : vector<1x4x64xf32> to vector<1x4xf32>
      %454 = vector.shape_cast %453 : vector<1x4xf32> to vector<1x4x1xf32>
      %cst_146 = arith.constant 0.000000e+00 : f32
      %455 = vector.broadcast %cst_146 : f32 to vector<1x4x1xf32>
      %456 = arith.subf %455, %454 : vector<1x4x1xf32>
      %457 = vector.broadcast %308 : vector<1x1x64xf32> to vector<1x4x64xf32>
      %458 = arith.addf %248, %457 : vector<1x4x64xf32>
      %459 = vector.broadcast %320 : vector<1x4x1xf32> to vector<1x4x64xf32>
      %460 = arith.addf %458, %459 : vector<1x4x64xf32>
      %461 = vector.broadcast %227 : vector<1x4x1xf32> to vector<1x4x64xf32>
      %462 = arith.subf %460, %461 : vector<1x4x64xf32>
      %463 = math.exp %462 : vector<1x4x64xf32>
      %464 = vector.broadcast %456 : vector<1x4x1xf32> to vector<1x4x64xf32>
      %465 = arith.mulf %464, %463 : vector<1x4x64xf32>
      %466 = arith.addf %452, %465 : vector<1x4x64xf32>
      %cst_147 = arith.constant dense<0.000000e+00> : vector<1x64xf32>
      %467 = vector.multi_reduction <add>, %465, %cst_147 [1] : vector<1x4x64xf32> to vector<1x64xf32>
      %468 = vector.shape_cast %467 : vector<1x64xf32> to vector<1x1x64xf32>
      %cst_148 = arith.constant 0.000000e+00 : f32
      %469 = vector.broadcast %cst_148 : f32 to vector<1x1x64xf32>
      %470 = arith.subf %469, %468 : vector<1x1x64xf32>
      %471 = vector.broadcast %296 : vector<1x4x1xf32> to vector<1x4x64xf32>
      %472 = arith.addf %248, %471 : vector<1x4x64xf32>
      %473 = vector.broadcast %308 : vector<1x1x64xf32> to vector<1x4x64xf32>
      %474 = arith.addf %472, %473 : vector<1x4x64xf32>
      %475 = vector.broadcast %112 : vector<1x1x64xf32> to vector<1x4x64xf32>
      %476 = arith.subf %474, %475 : vector<1x4x64xf32>
      %477 = math.exp %476 : vector<1x4x64xf32>
      %478 = vector.broadcast %470 : vector<1x1x64xf32> to vector<1x4x64xf32>
      %479 = arith.mulf %478, %477 : vector<1x4x64xf32>
      %480 = arith.addf %466, %479 : vector<1x4x64xf32>
      %cst_149 = arith.constant dense<0.000000e+00> : vector<1x4xf32>
      %481 = vector.multi_reduction <add>, %479, %cst_149 [2] : vector<1x4x64xf32> to vector<1x4xf32>
      %482 = vector.shape_cast %481 : vector<1x4xf32> to vector<1x4x1xf32>
      %cst_150 = arith.constant 0.000000e+00 : f32
      %483 = vector.broadcast %cst_150 : f32 to vector<1x4x1xf32>
      %484 = arith.subf %483, %482 : vector<1x4x1xf32>
      %485 = vector.broadcast %284 : vector<1x1x64xf32> to vector<1x4x64xf32>
      %486 = arith.addf %248, %485 : vector<1x4x64xf32>
      %487 = vector.broadcast %296 : vector<1x4x1xf32> to vector<1x4x64xf32>
      %488 = arith.addf %486, %487 : vector<1x4x64xf32>
      %489 = vector.broadcast %227 : vector<1x4x1xf32> to vector<1x4x64xf32>
      %490 = arith.subf %488, %489 : vector<1x4x64xf32>
      %491 = math.exp %490 : vector<1x4x64xf32>
      %492 = vector.broadcast %484 : vector<1x4x1xf32> to vector<1x4x64xf32>
      %493 = arith.mulf %492, %491 : vector<1x4x64xf32>
      %494 = arith.addf %480, %493 : vector<1x4x64xf32>
      %cst_151 = arith.constant dense<0.000000e+00> : vector<1x64xf32>
      %495 = vector.multi_reduction <add>, %493, %cst_151 [1] : vector<1x4x64xf32> to vector<1x64xf32>
      %496 = vector.shape_cast %495 : vector<1x64xf32> to vector<1x1x64xf32>
      %cst_152 = arith.constant 0.000000e+00 : f32
      %497 = vector.broadcast %cst_152 : f32 to vector<1x1x64xf32>
      %498 = arith.subf %497, %496 : vector<1x1x64xf32>
      %499 = vector.broadcast %272 : vector<1x4x1xf32> to vector<1x4x64xf32>
      %500 = arith.addf %248, %499 : vector<1x4x64xf32>
      %501 = vector.broadcast %284 : vector<1x1x64xf32> to vector<1x4x64xf32>
      %502 = arith.addf %500, %501 : vector<1x4x64xf32>
      %503 = vector.broadcast %112 : vector<1x1x64xf32> to vector<1x4x64xf32>
      %504 = arith.subf %502, %503 : vector<1x4x64xf32>
      %505 = math.exp %504 : vector<1x4x64xf32>
      %506 = vector.broadcast %498 : vector<1x1x64xf32> to vector<1x4x64xf32>
      %507 = arith.mulf %506, %505 : vector<1x4x64xf32>
      %508 = arith.addf %494, %507 : vector<1x4x64xf32>
      %cst_153 = arith.constant dense<0.000000e+00> : vector<1x4xf32>
      %509 = vector.multi_reduction <add>, %507, %cst_153 [2] : vector<1x4x64xf32> to vector<1x4xf32>
      %510 = vector.shape_cast %509 : vector<1x4xf32> to vector<1x4x1xf32>
      %cst_154 = arith.constant 0.000000e+00 : f32
      %511 = vector.broadcast %cst_154 : f32 to vector<1x4x1xf32>
      %512 = arith.subf %511, %510 : vector<1x4x1xf32>
      %513 = vector.broadcast %260 : vector<1x1x64xf32> to vector<1x4x64xf32>
      %514 = arith.addf %248, %513 : vector<1x4x64xf32>
      %515 = vector.broadcast %272 : vector<1x4x1xf32> to vector<1x4x64xf32>
      %516 = arith.addf %514, %515 : vector<1x4x64xf32>
      %517 = vector.broadcast %227 : vector<1x4x1xf32> to vector<1x4x64xf32>
      %518 = arith.subf %516, %517 : vector<1x4x64xf32>
      %519 = math.exp %518 : vector<1x4x64xf32>
      %520 = vector.broadcast %512 : vector<1x4x1xf32> to vector<1x4x64xf32>
      %521 = arith.mulf %520, %519 : vector<1x4x64xf32>
      %522 = arith.addf %508, %521 : vector<1x4x64xf32>
      %cst_155 = arith.constant dense<0.000000e+00> : vector<1x64xf32>
      %523 = vector.multi_reduction <add>, %521, %cst_155 [1] : vector<1x4x64xf32> to vector<1x64xf32>
      %524 = vector.shape_cast %523 : vector<1x64xf32> to vector<1x1x64xf32>
      %cst_156 = arith.constant 0.000000e+00 : f32
      %525 = vector.broadcast %cst_156 : f32 to vector<1x1x64xf32>
      %526 = arith.subf %525, %524 : vector<1x1x64xf32>
      %527 = vector.broadcast %246 : vector<1x4x1xf32> to vector<1x4x64xf32>
      %528 = arith.addf %248, %527 : vector<1x4x64xf32>
      %529 = vector.broadcast %260 : vector<1x1x64xf32> to vector<1x4x64xf32>
      %530 = arith.addf %528, %529 : vector<1x4x64xf32>
      %531 = vector.broadcast %112 : vector<1x1x64xf32> to vector<1x4x64xf32>
      %532 = arith.subf %530, %531 : vector<1x4x64xf32>
      %533 = math.exp %532 : vector<1x4x64xf32>
      %534 = vector.broadcast %526 : vector<1x1x64xf32> to vector<1x4x64xf32>
      %535 = arith.mulf %534, %533 : vector<1x4x64xf32>
      %536 = arith.addf %522, %535 : vector<1x4x64xf32>
      %cst_157 = arith.constant 0.000000e+00 : f32
      %537 = vector.broadcast %cst_157 : f32 to vector<1x4x64xf32>
      %538 = arith.subf %537, %536 : vector<1x4x64xf32>
      %cst_158 = arith.constant 9.99999968E-21 : f32
      %539 = vector.broadcast %cst_158 : f32 to vector<1x4x64xf32>
      %540 = arith.addf %538, %539 : vector<1x4x64xf32>
      %541 = arith.mulf %540, %540 : vector<1x4x64xf32>
      %cst_159 = arith.constant dense<0.000000e+00> : vector<1x4xf32>
      %542 = vector.multi_reduction <add>, %541, %cst_159 [2] : vector<1x4x64xf32> to vector<1x4xf32>
      %543 = vector.shape_cast %542 : vector<1x4xf32> to vector<1x4x1xf32>
      %cst_160 = arith.constant dense<0.000000e+00> : vector<1x1xf32>
      %544 = vector.multi_reduction <add>, %543, %cst_160 [1] : vector<1x4x1xf32> to vector<1x1xf32>
      %545 = vector.shape_cast %544 : vector<1x1xf32> to vector<1x1x1xf32>
      %cst_161 = arith.constant 1.000000e-24 : f32
      %546 = vector.broadcast %cst_161 : f32 to vector<1x1x1xf32>
      %547 = arith.maximumf %545, %546 : vector<1x1x1xf32>
      %548 = math.rsqrt %547 : vector<1x1x1xf32>
      %549 = vector.broadcast %548 : vector<1x1x1xf32> to vector<1x4x64xf32>
      %550 = arith.mulf %540, %549 : vector<1x4x64xf32>
      %cst_162 = arith.constant 1.000000e+00 : f32
      %551 = vector.broadcast %cst_162 : f32 to vector<1x4x64xf32>
      %552 = arith.mulf %551, %550 : vector<1x4x64xf32>
      %553 = arith.subf %245, %552 : vector<1x4x64xf32>
      %cst_163 = arith.constant 0.000000e+00 : f32
      %554 = vector.broadcast %cst_163 : f32 to vector<1x4x64xf32>
      %555 = arith.subf %554, %553 : vector<1x4x64xf32>
      %556 = vector.broadcast %368 : vector<1x4x1xf32> to vector<1x4x64xf32>
      %557 = arith.addf %555, %556 : vector<1x4x64xf32>
      %cst_164 = arith.constant dense<0xFF800000> : vector<1x64xf32>
      %558 = vector.multi_reduction <maximumf>, %557, %cst_164 [1] : vector<1x4x64xf32> to vector<1x64xf32>
      %559 = vector.shape_cast %558 : vector<1x64xf32> to vector<1x1x64xf32>
      %560 = vector.broadcast %559 : vector<1x1x64xf32> to vector<1x4x64xf32>
      %561 = arith.subf %557, %560 : vector<1x4x64xf32>
      %562 = math.exp %561 : vector<1x4x64xf32>
      %cst_165 = arith.constant dense<0.000000e+00> : vector<1x64xf32>
      %563 = vector.multi_reduction <add>, %562, %cst_165 [1] : vector<1x4x64xf32> to vector<1x64xf32>
      %564 = vector.shape_cast %563 : vector<1x64xf32> to vector<1x1x64xf32>
      %565 = math.log %564 : vector<1x1x64xf32>
      %566 = arith.addf %559, %565 : vector<1x1x64xf32>
      %567 = arith.subf %112, %566 : vector<1x1x64xf32>
      %568 = vector.broadcast %567 : vector<1x1x64xf32> to vector<1x4x64xf32>
      %569 = arith.addf %555, %568 : vector<1x4x64xf32>
      %cst_166 = arith.constant dense<0xFF800000> : vector<1x4xf32>
      %570 = vector.multi_reduction <maximumf>, %569, %cst_166 [2] : vector<1x4x64xf32> to vector<1x4xf32>
      %571 = vector.shape_cast %570 : vector<1x4xf32> to vector<1x4x1xf32>
      %572 = vector.broadcast %571 : vector<1x4x1xf32> to vector<1x4x64xf32>
      %573 = arith.subf %569, %572 : vector<1x4x64xf32>
      %574 = math.exp %573 : vector<1x4x64xf32>
      %cst_167 = arith.constant dense<0.000000e+00> : vector<1x4xf32>
      %575 = vector.multi_reduction <add>, %574, %cst_167 [2] : vector<1x4x64xf32> to vector<1x4xf32>
      %576 = vector.shape_cast %575 : vector<1x4xf32> to vector<1x4x1xf32>
      %577 = math.log %576 : vector<1x4x1xf32>
      %578 = arith.addf %571, %577 : vector<1x4x1xf32>
      %579 = arith.subf %227, %578 : vector<1x4x1xf32>
      %580 = vector.broadcast %579 : vector<1x4x1xf32> to vector<1x4x64xf32>
      %581 = arith.addf %555, %580 : vector<1x4x64xf32>
      %cst_168 = arith.constant dense<0xFF800000> : vector<1x64xf32>
      %582 = vector.multi_reduction <maximumf>, %581, %cst_168 [1] : vector<1x4x64xf32> to vector<1x64xf32>
      %583 = vector.shape_cast %582 : vector<1x64xf32> to vector<1x1x64xf32>
      %584 = vector.broadcast %583 : vector<1x1x64xf32> to vector<1x4x64xf32>
      %585 = arith.subf %581, %584 : vector<1x4x64xf32>
      %586 = math.exp %585 : vector<1x4x64xf32>
      %cst_169 = arith.constant dense<0.000000e+00> : vector<1x64xf32>
      %587 = vector.multi_reduction <add>, %586, %cst_169 [1] : vector<1x4x64xf32> to vector<1x64xf32>
      %588 = vector.shape_cast %587 : vector<1x64xf32> to vector<1x1x64xf32>
      %589 = math.log %588 : vector<1x1x64xf32>
      %590 = arith.addf %583, %589 : vector<1x1x64xf32>
      %591 = arith.subf %112, %590 : vector<1x1x64xf32>
      %592 = vector.broadcast %591 : vector<1x1x64xf32> to vector<1x4x64xf32>
      %593 = arith.addf %555, %592 : vector<1x4x64xf32>
      %cst_170 = arith.constant dense<0xFF800000> : vector<1x4xf32>
      %594 = vector.multi_reduction <maximumf>, %593, %cst_170 [2] : vector<1x4x64xf32> to vector<1x4xf32>
      %595 = vector.shape_cast %594 : vector<1x4xf32> to vector<1x4x1xf32>
      %596 = vector.broadcast %595 : vector<1x4x1xf32> to vector<1x4x64xf32>
      %597 = arith.subf %593, %596 : vector<1x4x64xf32>
      %598 = math.exp %597 : vector<1x4x64xf32>
      %cst_171 = arith.constant dense<0.000000e+00> : vector<1x4xf32>
      %599 = vector.multi_reduction <add>, %598, %cst_171 [2] : vector<1x4x64xf32> to vector<1x4xf32>
      %600 = vector.shape_cast %599 : vector<1x4xf32> to vector<1x4x1xf32>
      %601 = math.log %600 : vector<1x4x1xf32>
      %602 = arith.addf %595, %601 : vector<1x4x1xf32>
      %603 = arith.subf %227, %602 : vector<1x4x1xf32>
      %604 = vector.broadcast %603 : vector<1x4x1xf32> to vector<1x4x64xf32>
      %605 = arith.addf %555, %604 : vector<1x4x64xf32>
      %cst_172 = arith.constant dense<0xFF800000> : vector<1x64xf32>
      %606 = vector.multi_reduction <maximumf>, %605, %cst_172 [1] : vector<1x4x64xf32> to vector<1x64xf32>
      %607 = vector.shape_cast %606 : vector<1x64xf32> to vector<1x1x64xf32>
      %608 = vector.broadcast %607 : vector<1x1x64xf32> to vector<1x4x64xf32>
      %609 = arith.subf %605, %608 : vector<1x4x64xf32>
      %610 = math.exp %609 : vector<1x4x64xf32>
      %cst_173 = arith.constant dense<0.000000e+00> : vector<1x64xf32>
      %611 = vector.multi_reduction <add>, %610, %cst_173 [1] : vector<1x4x64xf32> to vector<1x64xf32>
      %612 = vector.shape_cast %611 : vector<1x64xf32> to vector<1x1x64xf32>
      %613 = math.log %612 : vector<1x1x64xf32>
      %614 = arith.addf %607, %613 : vector<1x1x64xf32>
      %615 = arith.subf %112, %614 : vector<1x1x64xf32>
      %616 = vector.broadcast %615 : vector<1x1x64xf32> to vector<1x4x64xf32>
      %617 = arith.addf %555, %616 : vector<1x4x64xf32>
      %cst_174 = arith.constant dense<0xFF800000> : vector<1x4xf32>
      %618 = vector.multi_reduction <maximumf>, %617, %cst_174 [2] : vector<1x4x64xf32> to vector<1x4xf32>
      %619 = vector.shape_cast %618 : vector<1x4xf32> to vector<1x4x1xf32>
      %620 = vector.broadcast %619 : vector<1x4x1xf32> to vector<1x4x64xf32>
      %621 = arith.subf %617, %620 : vector<1x4x64xf32>
      %622 = math.exp %621 : vector<1x4x64xf32>
      %cst_175 = arith.constant dense<0.000000e+00> : vector<1x4xf32>
      %623 = vector.multi_reduction <add>, %622, %cst_175 [2] : vector<1x4x64xf32> to vector<1x4xf32>
      %624 = vector.shape_cast %623 : vector<1x4xf32> to vector<1x4x1xf32>
      %625 = math.log %624 : vector<1x4x1xf32>
      %626 = arith.addf %619, %625 : vector<1x4x1xf32>
      %627 = arith.subf %227, %626 : vector<1x4x1xf32>
      %628 = vector.broadcast %627 : vector<1x4x1xf32> to vector<1x4x64xf32>
      %629 = arith.addf %555, %628 : vector<1x4x64xf32>
      %cst_176 = arith.constant dense<0xFF800000> : vector<1x64xf32>
      %630 = vector.multi_reduction <maximumf>, %629, %cst_176 [1] : vector<1x4x64xf32> to vector<1x64xf32>
      %631 = vector.shape_cast %630 : vector<1x64xf32> to vector<1x1x64xf32>
      %632 = vector.broadcast %631 : vector<1x1x64xf32> to vector<1x4x64xf32>
      %633 = arith.subf %629, %632 : vector<1x4x64xf32>
      %634 = math.exp %633 : vector<1x4x64xf32>
      %cst_177 = arith.constant dense<0.000000e+00> : vector<1x64xf32>
      %635 = vector.multi_reduction <add>, %634, %cst_177 [1] : vector<1x4x64xf32> to vector<1x64xf32>
      %636 = vector.shape_cast %635 : vector<1x64xf32> to vector<1x1x64xf32>
      %637 = math.log %636 : vector<1x1x64xf32>
      %638 = arith.addf %631, %637 : vector<1x1x64xf32>
      %639 = arith.subf %112, %638 : vector<1x1x64xf32>
      %640 = vector.broadcast %639 : vector<1x1x64xf32> to vector<1x4x64xf32>
      %641 = arith.addf %555, %640 : vector<1x4x64xf32>
      %cst_178 = arith.constant dense<0xFF800000> : vector<1x4xf32>
      %642 = vector.multi_reduction <maximumf>, %641, %cst_178 [2] : vector<1x4x64xf32> to vector<1x4xf32>
      %643 = vector.shape_cast %642 : vector<1x4xf32> to vector<1x4x1xf32>
      %644 = vector.broadcast %643 : vector<1x4x1xf32> to vector<1x4x64xf32>
      %645 = arith.subf %641, %644 : vector<1x4x64xf32>
      %646 = math.exp %645 : vector<1x4x64xf32>
      %cst_179 = arith.constant dense<0.000000e+00> : vector<1x4xf32>
      %647 = vector.multi_reduction <add>, %646, %cst_179 [2] : vector<1x4x64xf32> to vector<1x4xf32>
      %648 = vector.shape_cast %647 : vector<1x4xf32> to vector<1x4x1xf32>
      %649 = math.log %648 : vector<1x4x1xf32>
      %650 = arith.addf %643, %649 : vector<1x4x1xf32>
      %651 = arith.subf %227, %650 : vector<1x4x1xf32>
      %652 = vector.broadcast %651 : vector<1x4x1xf32> to vector<1x4x64xf32>
      %653 = arith.addf %555, %652 : vector<1x4x64xf32>
      %cst_180 = arith.constant dense<0xFF800000> : vector<1x64xf32>
      %654 = vector.multi_reduction <maximumf>, %653, %cst_180 [1] : vector<1x4x64xf32> to vector<1x64xf32>
      %655 = vector.shape_cast %654 : vector<1x64xf32> to vector<1x1x64xf32>
      %656 = vector.broadcast %655 : vector<1x1x64xf32> to vector<1x4x64xf32>
      %657 = arith.subf %653, %656 : vector<1x4x64xf32>
      %658 = math.exp %657 : vector<1x4x64xf32>
      %cst_181 = arith.constant dense<0.000000e+00> : vector<1x64xf32>
      %659 = vector.multi_reduction <add>, %658, %cst_181 [1] : vector<1x4x64xf32> to vector<1x64xf32>
      %660 = vector.shape_cast %659 : vector<1x64xf32> to vector<1x1x64xf32>
      %661 = math.log %660 : vector<1x1x64xf32>
      %662 = arith.addf %655, %661 : vector<1x1x64xf32>
      %663 = arith.subf %112, %662 : vector<1x1x64xf32>
      %664 = vector.broadcast %663 : vector<1x1x64xf32> to vector<1x4x64xf32>
      %665 = arith.addf %555, %664 : vector<1x4x64xf32>
      %cst_182 = arith.constant dense<0xFF800000> : vector<1x4xf32>
      %666 = vector.multi_reduction <maximumf>, %665, %cst_182 [2] : vector<1x4x64xf32> to vector<1x4xf32>
      %667 = vector.shape_cast %666 : vector<1x4xf32> to vector<1x4x1xf32>
      %668 = vector.broadcast %667 : vector<1x4x1xf32> to vector<1x4x64xf32>
      %669 = arith.subf %665, %668 : vector<1x4x64xf32>
      %670 = math.exp %669 : vector<1x4x64xf32>
      %cst_183 = arith.constant dense<0.000000e+00> : vector<1x4xf32>
      %671 = vector.multi_reduction <add>, %670, %cst_183 [2] : vector<1x4x64xf32> to vector<1x4xf32>
      %672 = vector.shape_cast %671 : vector<1x4xf32> to vector<1x4x1xf32>
      %673 = math.log %672 : vector<1x4x1xf32>
      %674 = arith.addf %667, %673 : vector<1x4x1xf32>
      %675 = arith.subf %227, %674 : vector<1x4x1xf32>
      %676 = vector.broadcast %663 : vector<1x1x64xf32> to vector<1x4x64xf32>
      %677 = arith.addf %555, %676 : vector<1x4x64xf32>
      %678 = vector.broadcast %675 : vector<1x4x1xf32> to vector<1x4x64xf32>
      %679 = arith.addf %677, %678 : vector<1x4x64xf32>
      %680 = math.exp %679 : vector<1x4x64xf32>
      %cst_184 = arith.constant 9.99999968E-21 : f32
      %cst_185 = arith.constant 1.000000e+00 : f32
      %681 = vector.broadcast %cst_184 : f32 to vector<1x4x64xf32>
      %682 = arith.maximumf %681, %680 : vector<1x4x64xf32>
      %683 = vector.broadcast %cst_185 : f32 to vector<1x4x64xf32>
      %684 = arith.minimumf %683, %682 : vector<1x4x64xf32>
      %cst_186 = arith.constant 9.99999968E-21 : f32
      %685 = vector.broadcast %cst_186 : f32 to vector<1x4x64xf32>
      %686 = arith.cmpf oge, %680, %685 : vector<1x4x64xf32>
      %cst_187 = arith.constant 1.000000e+00 : f32
      %687 = vector.broadcast %cst_187 : f32 to vector<1x4x64xf32>
      %688 = arith.cmpf ole, %680, %687 : vector<1x4x64xf32>
      %689 = arith.andi %686, %688 : vector<1x4x64xi1>
      %690 = arith.extui %689 : vector<1x4x64xi1> to vector<1x4x64xi32>
      %691 = arith.sitofp %690 : vector<1x4x64xi32> to vector<1x4x64xf32>
      %692 = math.log %684 : vector<1x4x64xf32>
      %cst_188 = arith.constant 1.000000e+00 : f32
      %693 = vector.broadcast %cst_188 : f32 to vector<1x4x64xf32>
      %694 = arith.addf %692, %693 : vector<1x4x64xf32>
      %cst_189 = arith.constant 0.000000e+00 : f32
      %695 = vector.broadcast %cst_189 : f32 to vector<1x4x64xf32>
      %696 = arith.subf %695, %694 : vector<1x4x64xf32>
      %cst_190 = arith.constant 3.906250e-03 : f32
      %697 = vector.broadcast %cst_190 : f32 to vector<1x4x64xf32>
      %698 = arith.mulf %696, %697 : vector<1x4x64xf32>
      %699 = arith.mulf %698, %691 : vector<1x4x64xf32>
      %700 = arith.mulf %699, %680 : vector<1x4x64xf32>
      %cst_191 = arith.constant dense<0.000000e+00> : vector<1x64xf32>
      %701 = vector.multi_reduction <add>, %700, %cst_191 [1] : vector<1x4x64xf32> to vector<1x64xf32>
      %702 = vector.shape_cast %701 : vector<1x64xf32> to vector<1x1x64xf32>
      %cst_192 = arith.constant dense<0.000000e+00> : vector<1x4xf32>
      %703 = vector.multi_reduction <add>, %700, %cst_192 [2] : vector<1x4x64xf32> to vector<1x4xf32>
      %704 = vector.shape_cast %703 : vector<1x4xf32> to vector<1x4x1xf32>
      %cst_193 = arith.constant 0.000000e+00 : f32
      %705 = vector.broadcast %cst_193 : f32 to vector<1x4x1xf32>
      %706 = arith.subf %705, %704 : vector<1x4x1xf32>
      %707 = vector.broadcast %663 : vector<1x1x64xf32> to vector<1x4x64xf32>
      %708 = arith.addf %555, %707 : vector<1x4x64xf32>
      %709 = vector.broadcast %675 : vector<1x4x1xf32> to vector<1x4x64xf32>
      %710 = arith.addf %708, %709 : vector<1x4x64xf32>
      %711 = vector.broadcast %227 : vector<1x4x1xf32> to vector<1x4x64xf32>
      %712 = arith.subf %710, %711 : vector<1x4x64xf32>
      %713 = math.exp %712 : vector<1x4x64xf32>
      %714 = vector.broadcast %706 : vector<1x4x1xf32> to vector<1x4x64xf32>
      %715 = arith.mulf %714, %713 : vector<1x4x64xf32>
      %716 = arith.addf %700, %715 : vector<1x4x64xf32>
      %cst_194 = arith.constant dense<0.000000e+00> : vector<1x64xf32>
      %717 = vector.multi_reduction <add>, %715, %cst_194 [1] : vector<1x4x64xf32> to vector<1x64xf32>
      %718 = vector.shape_cast %717 : vector<1x64xf32> to vector<1x1x64xf32>
      %719 = arith.addf %718, %702 : vector<1x1x64xf32>
      %cst_195 = arith.constant 0.000000e+00 : f32
      %720 = vector.broadcast %cst_195 : f32 to vector<1x1x64xf32>
      %721 = arith.subf %720, %719 : vector<1x1x64xf32>
      %722 = vector.broadcast %651 : vector<1x4x1xf32> to vector<1x4x64xf32>
      %723 = arith.addf %555, %722 : vector<1x4x64xf32>
      %724 = vector.broadcast %663 : vector<1x1x64xf32> to vector<1x4x64xf32>
      %725 = arith.addf %723, %724 : vector<1x4x64xf32>
      %726 = vector.broadcast %112 : vector<1x1x64xf32> to vector<1x4x64xf32>
      %727 = arith.subf %725, %726 : vector<1x4x64xf32>
      %728 = math.exp %727 : vector<1x4x64xf32>
      %729 = vector.broadcast %721 : vector<1x1x64xf32> to vector<1x4x64xf32>
      %730 = arith.mulf %729, %728 : vector<1x4x64xf32>
      %731 = arith.addf %716, %730 : vector<1x4x64xf32>
      %cst_196 = arith.constant dense<0.000000e+00> : vector<1x4xf32>
      %732 = vector.multi_reduction <add>, %730, %cst_196 [2] : vector<1x4x64xf32> to vector<1x4xf32>
      %733 = vector.shape_cast %732 : vector<1x4xf32> to vector<1x4x1xf32>
      %cst_197 = arith.constant 0.000000e+00 : f32
      %734 = vector.broadcast %cst_197 : f32 to vector<1x4x1xf32>
      %735 = arith.subf %734, %733 : vector<1x4x1xf32>
      %736 = vector.broadcast %639 : vector<1x1x64xf32> to vector<1x4x64xf32>
      %737 = arith.addf %555, %736 : vector<1x4x64xf32>
      %738 = vector.broadcast %651 : vector<1x4x1xf32> to vector<1x4x64xf32>
      %739 = arith.addf %737, %738 : vector<1x4x64xf32>
      %740 = vector.broadcast %227 : vector<1x4x1xf32> to vector<1x4x64xf32>
      %741 = arith.subf %739, %740 : vector<1x4x64xf32>
      %742 = math.exp %741 : vector<1x4x64xf32>
      %743 = vector.broadcast %735 : vector<1x4x1xf32> to vector<1x4x64xf32>
      %744 = arith.mulf %743, %742 : vector<1x4x64xf32>
      %745 = arith.addf %731, %744 : vector<1x4x64xf32>
      %cst_198 = arith.constant dense<0.000000e+00> : vector<1x64xf32>
      %746 = vector.multi_reduction <add>, %744, %cst_198 [1] : vector<1x4x64xf32> to vector<1x64xf32>
      %747 = vector.shape_cast %746 : vector<1x64xf32> to vector<1x1x64xf32>
      %cst_199 = arith.constant 0.000000e+00 : f32
      %748 = vector.broadcast %cst_199 : f32 to vector<1x1x64xf32>
      %749 = arith.subf %748, %747 : vector<1x1x64xf32>
      %750 = vector.broadcast %627 : vector<1x4x1xf32> to vector<1x4x64xf32>
      %751 = arith.addf %555, %750 : vector<1x4x64xf32>
      %752 = vector.broadcast %639 : vector<1x1x64xf32> to vector<1x4x64xf32>
      %753 = arith.addf %751, %752 : vector<1x4x64xf32>
      %754 = vector.broadcast %112 : vector<1x1x64xf32> to vector<1x4x64xf32>
      %755 = arith.subf %753, %754 : vector<1x4x64xf32>
      %756 = math.exp %755 : vector<1x4x64xf32>
      %757 = vector.broadcast %749 : vector<1x1x64xf32> to vector<1x4x64xf32>
      %758 = arith.mulf %757, %756 : vector<1x4x64xf32>
      %759 = arith.addf %745, %758 : vector<1x4x64xf32>
      %cst_200 = arith.constant dense<0.000000e+00> : vector<1x4xf32>
      %760 = vector.multi_reduction <add>, %758, %cst_200 [2] : vector<1x4x64xf32> to vector<1x4xf32>
      %761 = vector.shape_cast %760 : vector<1x4xf32> to vector<1x4x1xf32>
      %cst_201 = arith.constant 0.000000e+00 : f32
      %762 = vector.broadcast %cst_201 : f32 to vector<1x4x1xf32>
      %763 = arith.subf %762, %761 : vector<1x4x1xf32>
      %764 = vector.broadcast %615 : vector<1x1x64xf32> to vector<1x4x64xf32>
      %765 = arith.addf %555, %764 : vector<1x4x64xf32>
      %766 = vector.broadcast %627 : vector<1x4x1xf32> to vector<1x4x64xf32>
      %767 = arith.addf %765, %766 : vector<1x4x64xf32>
      %768 = vector.broadcast %227 : vector<1x4x1xf32> to vector<1x4x64xf32>
      %769 = arith.subf %767, %768 : vector<1x4x64xf32>
      %770 = math.exp %769 : vector<1x4x64xf32>
      %771 = vector.broadcast %763 : vector<1x4x1xf32> to vector<1x4x64xf32>
      %772 = arith.mulf %771, %770 : vector<1x4x64xf32>
      %773 = arith.addf %759, %772 : vector<1x4x64xf32>
      %cst_202 = arith.constant dense<0.000000e+00> : vector<1x64xf32>
      %774 = vector.multi_reduction <add>, %772, %cst_202 [1] : vector<1x4x64xf32> to vector<1x64xf32>
      %775 = vector.shape_cast %774 : vector<1x64xf32> to vector<1x1x64xf32>
      %cst_203 = arith.constant 0.000000e+00 : f32
      %776 = vector.broadcast %cst_203 : f32 to vector<1x1x64xf32>
      %777 = arith.subf %776, %775 : vector<1x1x64xf32>
      %778 = vector.broadcast %603 : vector<1x4x1xf32> to vector<1x4x64xf32>
      %779 = arith.addf %555, %778 : vector<1x4x64xf32>
      %780 = vector.broadcast %615 : vector<1x1x64xf32> to vector<1x4x64xf32>
      %781 = arith.addf %779, %780 : vector<1x4x64xf32>
      %782 = vector.broadcast %112 : vector<1x1x64xf32> to vector<1x4x64xf32>
      %783 = arith.subf %781, %782 : vector<1x4x64xf32>
      %784 = math.exp %783 : vector<1x4x64xf32>
      %785 = vector.broadcast %777 : vector<1x1x64xf32> to vector<1x4x64xf32>
      %786 = arith.mulf %785, %784 : vector<1x4x64xf32>
      %787 = arith.addf %773, %786 : vector<1x4x64xf32>
      %cst_204 = arith.constant dense<0.000000e+00> : vector<1x4xf32>
      %788 = vector.multi_reduction <add>, %786, %cst_204 [2] : vector<1x4x64xf32> to vector<1x4xf32>
      %789 = vector.shape_cast %788 : vector<1x4xf32> to vector<1x4x1xf32>
      %cst_205 = arith.constant 0.000000e+00 : f32
      %790 = vector.broadcast %cst_205 : f32 to vector<1x4x1xf32>
      %791 = arith.subf %790, %789 : vector<1x4x1xf32>
      %792 = vector.broadcast %591 : vector<1x1x64xf32> to vector<1x4x64xf32>
      %793 = arith.addf %555, %792 : vector<1x4x64xf32>
      %794 = vector.broadcast %603 : vector<1x4x1xf32> to vector<1x4x64xf32>
      %795 = arith.addf %793, %794 : vector<1x4x64xf32>
      %796 = vector.broadcast %227 : vector<1x4x1xf32> to vector<1x4x64xf32>
      %797 = arith.subf %795, %796 : vector<1x4x64xf32>
      %798 = math.exp %797 : vector<1x4x64xf32>
      %799 = vector.broadcast %791 : vector<1x4x1xf32> to vector<1x4x64xf32>
      %800 = arith.mulf %799, %798 : vector<1x4x64xf32>
      %801 = arith.addf %787, %800 : vector<1x4x64xf32>
      %cst_206 = arith.constant dense<0.000000e+00> : vector<1x64xf32>
      %802 = vector.multi_reduction <add>, %800, %cst_206 [1] : vector<1x4x64xf32> to vector<1x64xf32>
      %803 = vector.shape_cast %802 : vector<1x64xf32> to vector<1x1x64xf32>
      %cst_207 = arith.constant 0.000000e+00 : f32
      %804 = vector.broadcast %cst_207 : f32 to vector<1x1x64xf32>
      %805 = arith.subf %804, %803 : vector<1x1x64xf32>
      %806 = vector.broadcast %579 : vector<1x4x1xf32> to vector<1x4x64xf32>
      %807 = arith.addf %555, %806 : vector<1x4x64xf32>
      %808 = vector.broadcast %591 : vector<1x1x64xf32> to vector<1x4x64xf32>
      %809 = arith.addf %807, %808 : vector<1x4x64xf32>
      %810 = vector.broadcast %112 : vector<1x1x64xf32> to vector<1x4x64xf32>
      %811 = arith.subf %809, %810 : vector<1x4x64xf32>
      %812 = math.exp %811 : vector<1x4x64xf32>
      %813 = vector.broadcast %805 : vector<1x1x64xf32> to vector<1x4x64xf32>
      %814 = arith.mulf %813, %812 : vector<1x4x64xf32>
      %815 = arith.addf %801, %814 : vector<1x4x64xf32>
      %cst_208 = arith.constant dense<0.000000e+00> : vector<1x4xf32>
      %816 = vector.multi_reduction <add>, %814, %cst_208 [2] : vector<1x4x64xf32> to vector<1x4xf32>
      %817 = vector.shape_cast %816 : vector<1x4xf32> to vector<1x4x1xf32>
      %cst_209 = arith.constant 0.000000e+00 : f32
      %818 = vector.broadcast %cst_209 : f32 to vector<1x4x1xf32>
      %819 = arith.subf %818, %817 : vector<1x4x1xf32>
      %820 = vector.broadcast %567 : vector<1x1x64xf32> to vector<1x4x64xf32>
      %821 = arith.addf %555, %820 : vector<1x4x64xf32>
      %822 = vector.broadcast %579 : vector<1x4x1xf32> to vector<1x4x64xf32>
      %823 = arith.addf %821, %822 : vector<1x4x64xf32>
      %824 = vector.broadcast %227 : vector<1x4x1xf32> to vector<1x4x64xf32>
      %825 = arith.subf %823, %824 : vector<1x4x64xf32>
      %826 = math.exp %825 : vector<1x4x64xf32>
      %827 = vector.broadcast %819 : vector<1x4x1xf32> to vector<1x4x64xf32>
      %828 = arith.mulf %827, %826 : vector<1x4x64xf32>
      %829 = arith.addf %815, %828 : vector<1x4x64xf32>
      %cst_210 = arith.constant dense<0.000000e+00> : vector<1x64xf32>
      %830 = vector.multi_reduction <add>, %828, %cst_210 [1] : vector<1x4x64xf32> to vector<1x64xf32>
      %831 = vector.shape_cast %830 : vector<1x64xf32> to vector<1x1x64xf32>
      %cst_211 = arith.constant 0.000000e+00 : f32
      %832 = vector.broadcast %cst_211 : f32 to vector<1x1x64xf32>
      %833 = arith.subf %832, %831 : vector<1x1x64xf32>
      %834 = vector.broadcast %368 : vector<1x4x1xf32> to vector<1x4x64xf32>
      %835 = arith.addf %555, %834 : vector<1x4x64xf32>
      %836 = vector.broadcast %567 : vector<1x1x64xf32> to vector<1x4x64xf32>
      %837 = arith.addf %835, %836 : vector<1x4x64xf32>
      %838 = vector.broadcast %112 : vector<1x1x64xf32> to vector<1x4x64xf32>
      %839 = arith.subf %837, %838 : vector<1x4x64xf32>
      %840 = math.exp %839 : vector<1x4x64xf32>
      %841 = vector.broadcast %833 : vector<1x1x64xf32> to vector<1x4x64xf32>
      %842 = arith.mulf %841, %840 : vector<1x4x64xf32>
      %843 = arith.addf %829, %842 : vector<1x4x64xf32>
      %cst_212 = arith.constant 0.000000e+00 : f32
      %844 = vector.broadcast %cst_212 : f32 to vector<1x4x64xf32>
      %845 = arith.subf %844, %843 : vector<1x4x64xf32>
      %cst_213 = arith.constant 9.99999968E-21 : f32
      %846 = vector.broadcast %cst_213 : f32 to vector<1x4x64xf32>
      %847 = arith.addf %845, %846 : vector<1x4x64xf32>
      %848 = arith.mulf %847, %847 : vector<1x4x64xf32>
      %cst_214 = arith.constant dense<0.000000e+00> : vector<1x4xf32>
      %849 = vector.multi_reduction <add>, %848, %cst_214 [2] : vector<1x4x64xf32> to vector<1x4xf32>
      %850 = vector.shape_cast %849 : vector<1x4xf32> to vector<1x4x1xf32>
      %cst_215 = arith.constant dense<0.000000e+00> : vector<1x1xf32>
      %851 = vector.multi_reduction <add>, %850, %cst_215 [1] : vector<1x4x1xf32> to vector<1x1xf32>
      %852 = vector.shape_cast %851 : vector<1x1xf32> to vector<1x1x1xf32>
      %cst_216 = arith.constant 1.000000e-24 : f32
      %853 = vector.broadcast %cst_216 : f32 to vector<1x1x1xf32>
      %854 = arith.maximumf %852, %853 : vector<1x1x1xf32>
      %855 = math.rsqrt %854 : vector<1x1x1xf32>
      %856 = vector.broadcast %855 : vector<1x1x1xf32> to vector<1x4x64xf32>
      %857 = arith.mulf %847, %856 : vector<1x4x64xf32>
      %cst_217 = arith.constant 1.000000e+00 : f32
      %858 = vector.broadcast %cst_217 : f32 to vector<1x4x64xf32>
      %859 = arith.mulf %858, %857 : vector<1x4x64xf32>
      %860 = arith.subf %553, %859 : vector<1x4x64xf32>
      %cst_218 = arith.constant 0.000000e+00 : f32
      %861 = vector.broadcast %cst_218 : f32 to vector<1x4x64xf32>
      %862 = arith.subf %861, %860 : vector<1x4x64xf32>
      %863 = vector.broadcast %675 : vector<1x4x1xf32> to vector<1x4x64xf32>
      %864 = arith.addf %862, %863 : vector<1x4x64xf32>
      %cst_219 = arith.constant dense<0xFF800000> : vector<1x64xf32>
      %865 = vector.multi_reduction <maximumf>, %864, %cst_219 [1] : vector<1x4x64xf32> to vector<1x64xf32>
      %866 = vector.shape_cast %865 : vector<1x64xf32> to vector<1x1x64xf32>
      %867 = vector.broadcast %866 : vector<1x1x64xf32> to vector<1x4x64xf32>
      %868 = arith.subf %864, %867 : vector<1x4x64xf32>
      %869 = math.exp %868 : vector<1x4x64xf32>
      %cst_220 = arith.constant dense<0.000000e+00> : vector<1x64xf32>
      %870 = vector.multi_reduction <add>, %869, %cst_220 [1] : vector<1x4x64xf32> to vector<1x64xf32>
      %871 = vector.shape_cast %870 : vector<1x64xf32> to vector<1x1x64xf32>
      %872 = math.log %871 : vector<1x1x64xf32>
      %873 = arith.addf %866, %872 : vector<1x1x64xf32>
      %874 = arith.subf %112, %873 : vector<1x1x64xf32>
      %875 = vector.broadcast %874 : vector<1x1x64xf32> to vector<1x4x64xf32>
      %876 = arith.addf %862, %875 : vector<1x4x64xf32>
      %cst_221 = arith.constant dense<0xFF800000> : vector<1x4xf32>
      %877 = vector.multi_reduction <maximumf>, %876, %cst_221 [2] : vector<1x4x64xf32> to vector<1x4xf32>
      %878 = vector.shape_cast %877 : vector<1x4xf32> to vector<1x4x1xf32>
      %879 = vector.broadcast %878 : vector<1x4x1xf32> to vector<1x4x64xf32>
      %880 = arith.subf %876, %879 : vector<1x4x64xf32>
      %881 = math.exp %880 : vector<1x4x64xf32>
      %cst_222 = arith.constant dense<0.000000e+00> : vector<1x4xf32>
      %882 = vector.multi_reduction <add>, %881, %cst_222 [2] : vector<1x4x64xf32> to vector<1x4xf32>
      %883 = vector.shape_cast %882 : vector<1x4xf32> to vector<1x4x1xf32>
      %884 = math.log %883 : vector<1x4x1xf32>
      %885 = arith.addf %878, %884 : vector<1x4x1xf32>
      %886 = arith.subf %227, %885 : vector<1x4x1xf32>
      %887 = vector.broadcast %886 : vector<1x4x1xf32> to vector<1x4x64xf32>
      %888 = arith.addf %862, %887 : vector<1x4x64xf32>
      %cst_223 = arith.constant dense<0xFF800000> : vector<1x64xf32>
      %889 = vector.multi_reduction <maximumf>, %888, %cst_223 [1] : vector<1x4x64xf32> to vector<1x64xf32>
      %890 = vector.shape_cast %889 : vector<1x64xf32> to vector<1x1x64xf32>
      %891 = vector.broadcast %890 : vector<1x1x64xf32> to vector<1x4x64xf32>
      %892 = arith.subf %888, %891 : vector<1x4x64xf32>
      %893 = math.exp %892 : vector<1x4x64xf32>
      %cst_224 = arith.constant dense<0.000000e+00> : vector<1x64xf32>
      %894 = vector.multi_reduction <add>, %893, %cst_224 [1] : vector<1x4x64xf32> to vector<1x64xf32>
      %895 = vector.shape_cast %894 : vector<1x64xf32> to vector<1x1x64xf32>
      %896 = math.log %895 : vector<1x1x64xf32>
      %897 = arith.addf %890, %896 : vector<1x1x64xf32>
      %898 = arith.subf %112, %897 : vector<1x1x64xf32>
      %899 = vector.broadcast %898 : vector<1x1x64xf32> to vector<1x4x64xf32>
      %900 = arith.addf %862, %899 : vector<1x4x64xf32>
      %cst_225 = arith.constant dense<0xFF800000> : vector<1x4xf32>
      %901 = vector.multi_reduction <maximumf>, %900, %cst_225 [2] : vector<1x4x64xf32> to vector<1x4xf32>
      %902 = vector.shape_cast %901 : vector<1x4xf32> to vector<1x4x1xf32>
      %903 = vector.broadcast %902 : vector<1x4x1xf32> to vector<1x4x64xf32>
      %904 = arith.subf %900, %903 : vector<1x4x64xf32>
      %905 = math.exp %904 : vector<1x4x64xf32>
      %cst_226 = arith.constant dense<0.000000e+00> : vector<1x4xf32>
      %906 = vector.multi_reduction <add>, %905, %cst_226 [2] : vector<1x4x64xf32> to vector<1x4xf32>
      %907 = vector.shape_cast %906 : vector<1x4xf32> to vector<1x4x1xf32>
      %908 = math.log %907 : vector<1x4x1xf32>
      %909 = arith.addf %902, %908 : vector<1x4x1xf32>
      %910 = arith.subf %227, %909 : vector<1x4x1xf32>
      %911 = vector.broadcast %910 : vector<1x4x1xf32> to vector<1x4x64xf32>
      %912 = arith.addf %862, %911 : vector<1x4x64xf32>
      %cst_227 = arith.constant dense<0xFF800000> : vector<1x64xf32>
      %913 = vector.multi_reduction <maximumf>, %912, %cst_227 [1] : vector<1x4x64xf32> to vector<1x64xf32>
      %914 = vector.shape_cast %913 : vector<1x64xf32> to vector<1x1x64xf32>
      %915 = vector.broadcast %914 : vector<1x1x64xf32> to vector<1x4x64xf32>
      %916 = arith.subf %912, %915 : vector<1x4x64xf32>
      %917 = math.exp %916 : vector<1x4x64xf32>
      %cst_228 = arith.constant dense<0.000000e+00> : vector<1x64xf32>
      %918 = vector.multi_reduction <add>, %917, %cst_228 [1] : vector<1x4x64xf32> to vector<1x64xf32>
      %919 = vector.shape_cast %918 : vector<1x64xf32> to vector<1x1x64xf32>
      %920 = math.log %919 : vector<1x1x64xf32>
      %921 = arith.addf %914, %920 : vector<1x1x64xf32>
      %922 = arith.subf %112, %921 : vector<1x1x64xf32>
      %923 = vector.broadcast %922 : vector<1x1x64xf32> to vector<1x4x64xf32>
      %924 = arith.addf %862, %923 : vector<1x4x64xf32>
      %cst_229 = arith.constant dense<0xFF800000> : vector<1x4xf32>
      %925 = vector.multi_reduction <maximumf>, %924, %cst_229 [2] : vector<1x4x64xf32> to vector<1x4xf32>
      %926 = vector.shape_cast %925 : vector<1x4xf32> to vector<1x4x1xf32>
      %927 = vector.broadcast %926 : vector<1x4x1xf32> to vector<1x4x64xf32>
      %928 = arith.subf %924, %927 : vector<1x4x64xf32>
      %929 = math.exp %928 : vector<1x4x64xf32>
      %cst_230 = arith.constant dense<0.000000e+00> : vector<1x4xf32>
      %930 = vector.multi_reduction <add>, %929, %cst_230 [2] : vector<1x4x64xf32> to vector<1x4xf32>
      %931 = vector.shape_cast %930 : vector<1x4xf32> to vector<1x4x1xf32>
      %932 = math.log %931 : vector<1x4x1xf32>
      %933 = arith.addf %926, %932 : vector<1x4x1xf32>
      %934 = arith.subf %227, %933 : vector<1x4x1xf32>
      %935 = vector.broadcast %934 : vector<1x4x1xf32> to vector<1x4x64xf32>
      %936 = arith.addf %862, %935 : vector<1x4x64xf32>
      %cst_231 = arith.constant dense<0xFF800000> : vector<1x64xf32>
      %937 = vector.multi_reduction <maximumf>, %936, %cst_231 [1] : vector<1x4x64xf32> to vector<1x64xf32>
      %938 = vector.shape_cast %937 : vector<1x64xf32> to vector<1x1x64xf32>
      %939 = vector.broadcast %938 : vector<1x1x64xf32> to vector<1x4x64xf32>
      %940 = arith.subf %936, %939 : vector<1x4x64xf32>
      %941 = math.exp %940 : vector<1x4x64xf32>
      %cst_232 = arith.constant dense<0.000000e+00> : vector<1x64xf32>
      %942 = vector.multi_reduction <add>, %941, %cst_232 [1] : vector<1x4x64xf32> to vector<1x64xf32>
      %943 = vector.shape_cast %942 : vector<1x64xf32> to vector<1x1x64xf32>
      %944 = math.log %943 : vector<1x1x64xf32>
      %945 = arith.addf %938, %944 : vector<1x1x64xf32>
      %946 = arith.subf %112, %945 : vector<1x1x64xf32>
      %947 = vector.broadcast %946 : vector<1x1x64xf32> to vector<1x4x64xf32>
      %948 = arith.addf %862, %947 : vector<1x4x64xf32>
      %cst_233 = arith.constant dense<0xFF800000> : vector<1x4xf32>
      %949 = vector.multi_reduction <maximumf>, %948, %cst_233 [2] : vector<1x4x64xf32> to vector<1x4xf32>
      %950 = vector.shape_cast %949 : vector<1x4xf32> to vector<1x4x1xf32>
      %951 = vector.broadcast %950 : vector<1x4x1xf32> to vector<1x4x64xf32>
      %952 = arith.subf %948, %951 : vector<1x4x64xf32>
      %953 = math.exp %952 : vector<1x4x64xf32>
      %cst_234 = arith.constant dense<0.000000e+00> : vector<1x4xf32>
      %954 = vector.multi_reduction <add>, %953, %cst_234 [2] : vector<1x4x64xf32> to vector<1x4xf32>
      %955 = vector.shape_cast %954 : vector<1x4xf32> to vector<1x4x1xf32>
      %956 = math.log %955 : vector<1x4x1xf32>
      %957 = arith.addf %950, %956 : vector<1x4x1xf32>
      %958 = arith.subf %227, %957 : vector<1x4x1xf32>
      %959 = vector.broadcast %958 : vector<1x4x1xf32> to vector<1x4x64xf32>
      %960 = arith.addf %862, %959 : vector<1x4x64xf32>
      %cst_235 = arith.constant dense<0xFF800000> : vector<1x64xf32>
      %961 = vector.multi_reduction <maximumf>, %960, %cst_235 [1] : vector<1x4x64xf32> to vector<1x64xf32>
      %962 = vector.shape_cast %961 : vector<1x64xf32> to vector<1x1x64xf32>
      %963 = vector.broadcast %962 : vector<1x1x64xf32> to vector<1x4x64xf32>
      %964 = arith.subf %960, %963 : vector<1x4x64xf32>
      %965 = math.exp %964 : vector<1x4x64xf32>
      %cst_236 = arith.constant dense<0.000000e+00> : vector<1x64xf32>
      %966 = vector.multi_reduction <add>, %965, %cst_236 [1] : vector<1x4x64xf32> to vector<1x64xf32>
      %967 = vector.shape_cast %966 : vector<1x64xf32> to vector<1x1x64xf32>
      %968 = math.log %967 : vector<1x1x64xf32>
      %969 = arith.addf %962, %968 : vector<1x1x64xf32>
      %970 = arith.subf %112, %969 : vector<1x1x64xf32>
      %971 = vector.broadcast %970 : vector<1x1x64xf32> to vector<1x4x64xf32>
      %972 = arith.addf %862, %971 : vector<1x4x64xf32>
      %cst_237 = arith.constant dense<0xFF800000> : vector<1x4xf32>
      %973 = vector.multi_reduction <maximumf>, %972, %cst_237 [2] : vector<1x4x64xf32> to vector<1x4xf32>
      %974 = vector.shape_cast %973 : vector<1x4xf32> to vector<1x4x1xf32>
      %975 = vector.broadcast %974 : vector<1x4x1xf32> to vector<1x4x64xf32>
      %976 = arith.subf %972, %975 : vector<1x4x64xf32>
      %977 = math.exp %976 : vector<1x4x64xf32>
      %cst_238 = arith.constant dense<0.000000e+00> : vector<1x4xf32>
      %978 = vector.multi_reduction <add>, %977, %cst_238 [2] : vector<1x4x64xf32> to vector<1x4xf32>
      %979 = vector.shape_cast %978 : vector<1x4xf32> to vector<1x4x1xf32>
      %980 = math.log %979 : vector<1x4x1xf32>
      %981 = arith.addf %974, %980 : vector<1x4x1xf32>
      %982 = arith.subf %227, %981 : vector<1x4x1xf32>
      %cst_239 = arith.constant 0.000000e+00 : f32
      %983 = vector.broadcast %cst_239 : f32 to vector<1x4x64xf32>
      %984 = arith.subf %983, %860 : vector<1x4x64xf32>
      %985 = vector.broadcast %970 : vector<1x1x64xf32> to vector<1x4x64xf32>
      %986 = arith.addf %984, %985 : vector<1x4x64xf32>
      %987 = vector.broadcast %982 : vector<1x4x1xf32> to vector<1x4x64xf32>
      %988 = arith.addf %986, %987 : vector<1x4x64xf32>
      %989 = math.exp %988 : vector<1x4x64xf32>
      %cst_240 = arith.constant dense<0.000000e+00> : vector<1x4x32xf32>
      %990 = tpu.matmul %989, %49, %cst_240 {dimension_numbers = #tpu.dot_dimension_numbers<[2], [1], [1], [2], [0, 0, 0, 1, 1, 2], [0], [0]>} : vector<1x4x64xf32>, vector<1x64x32xf32>, vector<1x4x32xf32> -> vector<1x4x32xf32>
      %991 = vector.shape_cast %990 : vector<1x4x32xf32> to vector<4x32xf32>
      %cst_241 = arith.constant dense<0.000000e+00> : vector<4x96xf32>
      %992 = tpu.matmul %991, %142, %cst_241 {dimension_numbers = #tpu.dot_dimension_numbers<[1], [0], [0], [1], [0, 0, 1, 1], [], []>} : vector<4x32xf32>, vector<32x96xf32>, vector<4x96xf32> -> vector<4x96xf32>
      %993 = arith.addf %992, %128 : vector<4x96xf32>
      %cst_242 = arith.constant dense<0.000000e+00> : vector<4x96xf32>
      %994 = tpu.matmul %arg16, %143, %cst_242 {dimension_numbers = #tpu.dot_dimension_numbers<[1], [0], [0], [1], [0, 0, 1, 1], [], []>} : vector<4x32xf32>, vector<32x96xf32>, vector<4x96xf32> -> vector<4x96xf32>
      %995 = arith.addf %994, %130 : vector<4x96xf32>
      %996 = vector.extract_strided_slice %993 {offsets = [0, 0], sizes = [4, 32], strides = [1, 1]} : vector<4x96xf32> to vector<4x32xf32>
      %997 = vector.extract_strided_slice %995 {offsets = [0, 0], sizes = [4, 32], strides = [1, 1]} : vector<4x96xf32> to vector<4x32xf32>
      %998 = arith.addf %996, %997 : vector<4x32xf32>
      %999 = arith.negf %998 : vector<4x32xf32>
      %1000 = math.exp %999 : vector<4x32xf32>
      %cst_243 = arith.constant 1.000000e+00 : f32
      %1001 = vector.broadcast %cst_243 : f32 to vector<4x32xf32>
      %1002 = arith.addf %1001, %1000 : vector<4x32xf32>
      %1003 = arith.divf %1001, %1002 : vector<4x32xf32>
      %1004 = vector.extract_strided_slice %993 {offsets = [0, 32], sizes = [4, 32], strides = [1, 1]} : vector<4x96xf32> to vector<4x32xf32>
      %1005 = vector.extract_strided_slice %995 {offsets = [0, 32], sizes = [4, 32], strides = [1, 1]} : vector<4x96xf32> to vector<4x32xf32>
      %1006 = arith.addf %1004, %1005 : vector<4x32xf32>
      %1007 = arith.negf %1006 : vector<4x32xf32>
      %1008 = math.exp %1007 : vector<4x32xf32>
      %cst_244 = arith.constant 1.000000e+00 : f32
      %1009 = vector.broadcast %cst_244 : f32 to vector<4x32xf32>
      %1010 = arith.addf %1009, %1008 : vector<4x32xf32>
      %1011 = arith.divf %1009, %1010 : vector<4x32xf32>
      %1012 = vector.extract_strided_slice %993 {offsets = [0, 64], sizes = [4, 32], strides = [1, 1]} : vector<4x96xf32> to vector<4x32xf32>
      %1013 = vector.extract_strided_slice %995 {offsets = [0, 64], sizes = [4, 32], strides = [1, 1]} : vector<4x96xf32> to vector<4x32xf32>
      %1014 = arith.mulf %1003, %1013 : vector<4x32xf32>
      %1015 = arith.addf %1012, %1014 : vector<4x32xf32>
      %1016 = math.tanh %1015 : vector<4x32xf32>
      %cst_245 = arith.constant 1.000000e+00 : f32
      %1017 = vector.broadcast %cst_245 : f32 to vector<4x32xf32>
      %1018 = arith.subf %1017, %1011 : vector<4x32xf32>
      %1019 = arith.mulf %1018, %1016 : vector<4x32xf32>
      %1020 = arith.mulf %1011, %arg16 : vector<4x32xf32>
      %1021 = arith.addf %1019, %1020 : vector<4x32xf32>
      %cst_246 = arith.constant dense<0.000000e+00> : vector<4xf32>
      %1022 = vector.multi_reduction <add>, %1021, %cst_246 [1] : vector<4x32xf32> to vector<4xf32>
      %1023 = vector.shape_cast %1022 : vector<4xf32> to vector<4x1xf32>
      %cst_247 = arith.constant 3.200000e+01 : f32
      %1024 = vector.broadcast %cst_247 : f32 to vector<4x1xf32>
      %1025 = arith.divf %1023, %1024 : vector<4x1xf32>
      %1026 = vector.broadcast %1025 : vector<4x1xf32> to vector<4x32xf32>
      %1027 = arith.subf %1021, %1026 : vector<4x32xf32>
      %1028 = arith.mulf %1027, %1027 : vector<4x32xf32>
      %cst_248 = arith.constant dense<0.000000e+00> : vector<4xf32>
      %1029 = vector.multi_reduction <add>, %1028, %cst_248 [1] : vector<4x32xf32> to vector<4xf32>
      %1030 = vector.shape_cast %1029 : vector<4xf32> to vector<4x1xf32>
      %cst_249 = arith.constant 3.200000e+01 : f32
      %1031 = vector.broadcast %cst_249 : f32 to vector<4x1xf32>
      %1032 = arith.divf %1030, %1031 : vector<4x1xf32>
      %cst_250 = arith.constant 9.99999974E-6 : f32
      %1033 = vector.broadcast %cst_250 : f32 to vector<4x1xf32>
      %1034 = arith.addf %1032, %1033 : vector<4x1xf32>
      %1035 = math.rsqrt %1034 : vector<4x1xf32>
      %1036 = vector.broadcast %1035 : vector<4x1xf32> to vector<4x32xf32>
      %1037 = arith.mulf %1027, %1036 : vector<4x32xf32>
      %1038 = arith.mulf %1037, %132 : vector<4x32xf32>
      %1039 = arith.addf %1038, %134 : vector<4x32xf32>
      %cst_251 = arith.constant dense<0.000000e+00> : vector<4x32xf32>
      %1040 = tpu.matmul %1039, %144, %cst_251 {dimension_numbers = #tpu.dot_dimension_numbers<[1], [0], [0], [1], [0, 0, 1, 1], [], []>} : vector<4x32xf32>, vector<32x32xf32>, vector<4x32xf32> -> vector<4x32xf32>
      %1041 = arith.addf %1040, %136 : vector<4x32xf32>
      %cst_252 = arith.constant 5.000000e-01 : f32
      %1042 = vector.broadcast %cst_252 : f32 to vector<4x32xf32>
      %1043 = arith.mulf %1042, %1041 : vector<4x32xf32>
      %cst_253 = arith.constant 0.707106769 : f32
      %1044 = vector.broadcast %cst_253 : f32 to vector<4x32xf32>
      %1045 = arith.mulf %1041, %1044 : vector<4x32xf32>
      %cst_254 = arith.constant 0.000000e+00 : f32
      %1046 = vector.broadcast %cst_254 : f32 to vector<4x32xf32>
      %1047 = arith.cmpf oge, %1045, %1046 : vector<4x32xf32>
      %cst_255 = arith.constant 1.000000e+00 : f32
      %cst_256 = arith.constant -1.000000e+00 : f32
      %1048 = vector.broadcast %cst_255 : f32 to vector<4x32xf32>
      %1049 = vector.broadcast %cst_256 : f32 to vector<4x32xf32>
      %1050 = arith.select %1047, %1048, %1049 : vector<4x32xi1>, vector<4x32xf32>
      %1051 = math.absf %1045 : vector<4x32xf32>
      %cst_257 = arith.constant 0.327591091 : f32
      %1052 = vector.broadcast %cst_257 : f32 to vector<4x32xf32>
      %1053 = arith.mulf %1052, %1051 : vector<4x32xf32>
      %cst_258 = arith.constant 1.000000e+00 : f32
      %1054 = vector.broadcast %cst_258 : f32 to vector<4x32xf32>
      %1055 = arith.addf %1054, %1053 : vector<4x32xf32>
      %cst_259 = arith.constant 1.000000e+00 : f32
      %1056 = vector.broadcast %cst_259 : f32 to vector<4x32xf32>
      %1057 = arith.divf %1056, %1055 : vector<4x32xf32>
      %cst_260 = arith.constant 1.06140542 : f32
      %1058 = vector.broadcast %cst_260 : f32 to vector<4x32xf32>
      %1059 = arith.mulf %1058, %1057 : vector<4x32xf32>
      %cst_261 = arith.constant -1.45315206 : f32
      %1060 = vector.broadcast %cst_261 : f32 to vector<4x32xf32>
      %1061 = arith.addf %1059, %1060 : vector<4x32xf32>
      %1062 = arith.mulf %1061, %1057 : vector<4x32xf32>
      %cst_262 = arith.constant 1.42141378 : f32
      %1063 = vector.broadcast %cst_262 : f32 to vector<4x32xf32>
      %1064 = arith.addf %1062, %1063 : vector<4x32xf32>
      %1065 = arith.mulf %1064, %1057 : vector<4x32xf32>
      %cst_263 = arith.constant -0.284496725 : f32
      %1066 = vector.broadcast %cst_263 : f32 to vector<4x32xf32>
      %1067 = arith.addf %1065, %1066 : vector<4x32xf32>
      %1068 = arith.mulf %1067, %1057 : vector<4x32xf32>
      %cst_264 = arith.constant 0.254829586 : f32
      %1069 = vector.broadcast %cst_264 : f32 to vector<4x32xf32>
      %1070 = arith.addf %1068, %1069 : vector<4x32xf32>
      %1071 = arith.mulf %1070, %1057 : vector<4x32xf32>
      %cst_265 = arith.constant 0.000000e+00 : f32
      %1072 = vector.broadcast %cst_265 : f32 to vector<4x32xf32>
      %1073 = arith.subf %1072, %1051 : vector<4x32xf32>
      %1074 = arith.mulf %1073, %1051 : vector<4x32xf32>
      %1075 = math.exp %1074 : vector<4x32xf32>
      %1076 = arith.mulf %1071, %1075 : vector<4x32xf32>
      %cst_266 = arith.constant 1.000000e+00 : f32
      %1077 = vector.broadcast %cst_266 : f32 to vector<4x32xf32>
      %1078 = arith.subf %1077, %1076 : vector<4x32xf32>
      %1079 = arith.mulf %1050, %1078 : vector<4x32xf32>
      %cst_267 = arith.constant 1.000000e+00 : f32
      %1080 = vector.broadcast %cst_267 : f32 to vector<4x32xf32>
      %1081 = arith.addf %1080, %1079 : vector<4x32xf32>
      %1082 = arith.mulf %1043, %1081 : vector<4x32xf32>
      %cst_268 = arith.constant dense<0.000000e+00> : vector<4x32xf32>
      %1083 = tpu.matmul %1082, %145, %cst_268 {dimension_numbers = #tpu.dot_dimension_numbers<[1], [0], [0], [1], [0, 0, 1, 1], [], []>} : vector<4x32xf32>, vector<32x32xf32>, vector<4x32xf32> -> vector<4x32xf32>
      %1084 = arith.addf %1021, %1083 : vector<4x32xf32>
      %1085 = arith.addf %1084, %138 : vector<4x32xf32>
      scf.yield %1085 : vector<4x32xf32>
    }
    %148 = vector.shape_cast %147 : vector<4x32xf32> to vector<1x4x32xf32>
    %c0_70 = arith.constant 0 : index
    %c0_71 = arith.constant 0 : index
    %c0_72 = arith.constant 0 : index
    %149 = vector.load %arg14[%c0_70, %c0_71, %c0_72] : memref<1x4x32xf32, #tpu.memory_space<vmem>>, vector<1x4x32xf32>
    tpu.vector_store %arg14[%c0_70, %c0_71, %c0_72], %148 {strides = array<i32>} : memref<1x4x32xf32, #tpu.memory_space<vmem>>, vector<1x4x32xf32>,
    return
  }
  func.func @transform_0(%arg0: i32) -> (i32, i32) {
    %c0_i32 = arith.constant 0 : i32
    %c0_i32_0 = arith.constant 0 : i32
    return %arg0, %c0_i32 : i32, i32
  }
  func.func @transform_1(%arg0: i32) -> (i32, i32, i32) {
    %c0_i32 = arith.constant 0 : i32
    %c0_i32_0 = arith.constant 0 : i32
    %c0_i32_1 = arith.constant 0 : i32
    return %arg0, %c0_i32, %c0_i32_0 : i32, i32, i32
  }
  func.func @transform_2(%arg0: i32) -> (i32, i32, i32) {
    %c0_i32 = arith.constant 0 : i32
    %c0_i32_0 = arith.constant 0 : i32
    %c0_i32_1 = arith.constant 0 : i32
    return %arg0, %c0_i32, %c0_i32_0 : i32, i32, i32
  }
  func.func @transform_3(%arg0: i32) -> (i32, i32) {
    %c0_i32 = arith.constant 0 : i32
    %c0_i32_0 = arith.constant 0 : i32
    %c0_i32_1 = arith.constant 0 : i32
    return %c0_i32, %c0_i32_0 : i32, i32
  }
  func.func @transform_4(%arg0: i32) -> (i32, i32) {
    %c0_i32 = arith.constant 0 : i32
    %c0_i32_0 = arith.constant 0 : i32
    %c0_i32_1 = arith.constant 0 : i32
    return %c0_i32, %c0_i32_0 : i32, i32
  }
  func.func @transform_5(%arg0: i32) -> (i32, i32) {
    %c0_i32 = arith.constant 0 : i32
    %c0_i32_0 = arith.constant 0 : i32
    %c0_i32_1 = arith.constant 0 : i32
    return %c0_i32, %c0_i32_0 : i32, i32
  }
  func.func @transform_6(%arg0: i32) -> (i32, i32) {
    %c0_i32 = arith.constant 0 : i32
    %c0_i32_0 = arith.constant 0 : i32
    %c0_i32_1 = arith.constant 0 : i32
    return %c0_i32, %c0_i32_0 : i32, i32
  }
  func.func @transform_7(%arg0: i32) -> (i32, i32) {
    %c0_i32 = arith.constant 0 : i32
    %c0_i32_0 = arith.constant 0 : i32
    %c0_i32_1 = arith.constant 0 : i32
    return %c0_i32, %c0_i32_0 : i32, i32
  }
  func.func @transform_8(%arg0: i32) -> (i32, i32) {
    %c0_i32 = arith.constant 0 : i32
    %c0_i32_0 = arith.constant 0 : i32
    %c0_i32_1 = arith.constant 0 : i32
    return %c0_i32, %c0_i32_0 : i32, i32
  }
  func.func @transform_9(%arg0: i32) -> (i32, i32) {
    %c0_i32 = arith.constant 0 : i32
    %c0_i32_0 = arith.constant 0 : i32
    %c0_i32_1 = arith.constant 0 : i32
    return %c0_i32, %c0_i32_0 : i32, i32
  }
  func.func @transform_10(%arg0: i32) -> (i32, i32) {
    %c0_i32 = arith.constant 0 : i32
    %c0_i32_0 = arith.constant 0 : i32
    %c0_i32_1 = arith.constant 0 : i32
    return %c0_i32, %c0_i32_0 : i32, i32
  }
  func.func @transform_11(%arg0: i32) -> (i32, i32) {
    %c0_i32 = arith.constant 0 : i32
    %c0_i32_0 = arith.constant 0 : i32
    %c0_i32_1 = arith.constant 0 : i32
    return %c0_i32, %c0_i32_0 : i32, i32
  }
  func.func @transform_12(%arg0: i32) -> (i32, i32) {
    %c0_i32 = arith.constant 0 : i32
    %c0_i32_0 = arith.constant 0 : i32
    %c0_i32_1 = arith.constant 0 : i32
    return %c0_i32, %c0_i32_0 : i32, i32
  }
  func.func @transform_13(%arg0: i32) -> (i32, i32, i32) {
    %c0_i32 = arith.constant 0 : i32
    %c0_i32_0 = arith.constant 0 : i32
    %c0_i32_1 = arith.constant 0 : i32
    return %arg0, %c0_i32, %c0_i32_0 : i32, i32, i32
  }
}

</mosaic_0001>

<llo_original>
// kernel: tpu_custom_call.1
$region0: #{tpu_custom_call.1}
  #allocation0 [shape = 'u32[]', space=smem, size = 0x4, offset = 0x4, fixed_abs, tag = 'smem constant byte address 0x4 - core index']
  #allocation1 [shape = 'u32[144,128]{1,0:T(1,128)}', space=vmem, size = 0x12000, scoped, tag = 'internal scratch']
  %s0 = inlined_call_operand.vmem [shape: f32[128,32], index: 0, kind: input, shape index: {}]
  %s1 = inlined_call_operand.hbm [shape: f32[2,4,32], index: 1, kind: input, shape index: {}]
  %s2 = inlined_call_operand.hbm [shape: f32[2,4,64], index: 2, kind: input, shape index: {}]
  %s3 = inlined_call_operand.hbm [shape: f32[16,128], index: 3, kind: input, shape index: {}]
  %s4 = inlined_call_operand.vmem [shape: f32[32,64], index: 4, kind: input, shape index: {}]
  %s5 = inlined_call_operand.vmem [shape: f32[32,32], index: 5, kind: input, shape index: {}]
  %s6 = inlined_call_operand.vmem [shape: f32[32,32], index: 6, kind: input, shape index: {}]
  %s7 = inlined_call_operand.vmem [shape: f32[32,1], index: 7, kind: input, shape index: {}]
  %s8 = inlined_call_operand.vmem [shape: f32[32,32], index: 8, kind: input, shape index: {}]
  %s9 = inlined_call_operand.vmem [shape: f32[32,96], index: 9, kind: input, shape index: {}]
  %s10 = inlined_call_operand.vmem [shape: f32[32,96], index: 10, kind: input, shape index: {}]
  %s11 = inlined_call_operand.vmem [shape: f32[32,32], index: 11, kind: input, shape index: {}]
  %s12 = inlined_call_operand.hbm [shape: f32[32,32], index: 12, kind: input, shape index: {}]
  %s13 = inlined_call_operand.hbm [shape: f32[2,4,32], index: 13, kind: output, shape index: {}]
  %s14 = sld [smem:[#allocation0]]
  $region108: #{tpu_custom_call.1} parent=0
    _
  %s16 = ssub.s32 1, %s14
  %s17 = scalar_select 0, %s16, %s14
  $region1: #{tpu_custom_call.1} parent=0
    #allocation2 [shape = 'u8[4096]{0}', space=vmem, size = 0x1000, scoped, tag = 'input window, operand 1']
    #allocation3 [shape = 's32[2]{0}', space=sflag, size = 0x8, scoped, tag = 'scoped memory for tpu_custom_call.1']
    #allocation4 [shape = 's32[2]{0}', space=sflag, size = 0x8, scoped, tag = 'scoped memory for tpu_custom_call.1']
    #allocation5 [shape = 'u8[4096]{0}', space=vmem, size = 0x1000, scoped, tag = 'input window, operand 2']
    #allocation6 [shape = 's32[2]{0}', space=sflag, size = 0x8, scoped, tag = 'scoped memory for tpu_custom_call.1']
    #allocation7 [shape = 'u8[8192]{0}', space=vmem, size = 0x2000, scoped, tag = 'input window, operand 3, single buffered']
    #allocation8 [shape = 'u8[16384]{0}', space=vmem, size = 0x4000, scoped, tag = 'input window, operand 12, single buffered']
    #allocation9 [shape = 's32[1]{0}', space=sflag, size = 0x4, scoped, tag = 'scoped memory for tpu_custom_call.1']
    #allocation10 [shape = 'u8[4096]{0}', space=vmem, size = 0x1000, scoped, tag = 'output window, operand 0']
    %18 = vsyncpa [#allocation3], 0
    %s19 = scalar_lea.sflag [#allocation3], 1
    %20 = vsyncpa %s19, 0
    %21 = vsyncpa [#allocation6], 0
    %s22 = scalar_lea.sflag [#allocation6], 1
    %23 = vsyncpa %s22, 0
    %24 = vsyncpa [#allocation9], 0
    %25 = vsyncpa [#allocation4], 0
    %s26 = scalar_lea.sflag [#allocation4], 1
    %27 = vsyncpa %s26, 0
    loop: start=0, step=1, limit=4
    $region2: #{tpu_custom_call.1} parent=1 // loop_pre_header
      _
    $region3: #{tpu_custom_call.1} parent=1 // loop_header
      %s29 = sphi 0, %s33
      %p30 = scmp.ge.s32.totalorder %s29, 4
      %s39 = sphi 0, %s41
      %s42 = sphi 0, %s39
      %s43 = sphi 0, %s42
      %s59 = sphi 0, %s43
      %s65 = sphi 0, %s67
      %s68 = sphi 0, %s65
      %s69 = sphi 0, %s68
      %s85 = sphi 0, %s69
      %s91 = sphi 0, %s93
      %s94 = sphi 0, %s91
      %s95 = sphi 0, %s94
      %s111 = sphi 0, %s95
      %s115 = sphi 0, %s115
      %s117 = sphi 0, %s115
      %s118 = sphi 0, %s117
      %s132 = sphi 0, %s118
      %s136 = sphi 0, %s136
      %s138 = sphi 0, %s136
      %s139 = sphi 0, %s138
      %s153 = sphi 0, %s139
      %s157 = sphi 0, %s157
      %s159 = sphi 0, %s157
      %s160 = sphi 0, %s159
      %s174 = sphi 0, %s160
      %s178 = sphi 0, %s178
      %s180 = sphi 0, %s178
      %s181 = sphi 0, %s180
      %s195 = sphi 0, %s181
      %s199 = sphi 0, %s199
      %s201 = sphi 0, %s199
      %s202 = sphi 0, %s201
      %s216 = sphi 0, %s202
      %s220 = sphi 0, %s220
      %s222 = sphi 0, %s220
      %s223 = sphi 0, %s222
      %s237 = sphi 0, %s223
      %s241 = sphi 0, %s241
      %s243 = sphi 0, %s241
      %s244 = sphi 0, %s243
      %s258 = sphi 0, %s244
      %s262 = sphi 0, %s262
      %s264 = sphi 0, %s262
      %s265 = sphi 0, %s264
      %s279 = sphi 0, %s265
      %s283 = sphi 0, %s283
      %s285 = sphi 0, %s283
      %s286 = sphi 0, %s285
      %s300 = sphi 0, %s286
      %s304 = sphi 0, %s304
      %s306 = sphi 0, %s304
      %s307 = sphi 0, %s306
      %s321 = sphi 0, %s307
      %s327 = sphi 0, %s329
      %s330 = sphi 0, %s327
      %s331 = sphi 0, %s330
      %s347 = sphi 0, %s331
    $region4: #{tpu_custom_call.1} parent=1 // loop_header_branch
      %32 = sbr.rel (%p30) target = $region8
    $region5: #{tpu_custom_call.1} parent=1 // loop_body
      %s34 = ssub.s32 %s29, 1
      %s35 = ssub.s32 %s29, 2
      %s36 = sadd.s32 %s29, 1
      %s37 = ssub.s32 %s29, %s36
      %p38 = scmp.eq.s32.totalorder %s37, 0
      %s40 = sadd.s32 %s39, 1
      %s41 = scalar_select %p38, %s39, %s40
      %p44 = pneg %p38
      %p45 = scmp.eq.s32.totalorder %s29, 1
      %p46 = por %p44, %p45
      %p47 = scmp.ne.s32.totalorder %s39, %s42
      %p48 = scmp.eq.s32.totalorder %s29, 0
      %p49 = por %p47, %p48
      %p50 = scmp.ne.s32.totalorder %s39, %s42
      %p51 = scmp.eq.s32.totalorder %s34, 1
      %p52 = por %p50, %p51
      %p53 = scmp.ne.s32.totalorder %s42, %s43
      %p54 = scmp.eq.s32.totalorder %s34, 0
      %p55 = por %p53, %p54
      %p56 = scmp.ne.s32.totalorder %s42, %s43
      %p57 = scmp.eq.s32.totalorder %s35, 1
      %p58 = por %p56, %p57
      %p60 = scmp.ne.s32.totalorder %s43, %s59
      %p61 = scmp.eq.s32.totalorder %s35, 0
      %p62 = por %p60, %p61
      %s63 = ssub.s32 %s29, %s36
      %p64 = scmp.eq.s32.totalorder %s63, 0
      %s66 = sadd.s32 %s65, 1
      %s67 = scalar_select %p64, %s65, %s66
      %p70 = pneg %p64
      %p71 = scmp.eq.s32.totalorder %s29, 1
      %p72 = por %p70, %p71
      %p73 = scmp.ne.s32.totalorder %s65, %s68
      %p74 = scmp.eq.s32.totalorder %s29, 0
      %p75 = por %p73, %p74
      %p76 = scmp.ne.s32.totalorder %s65, %s68
      %p77 = scmp.eq.s32.totalorder %s34, 1
      %p78 = por %p76, %p77
      %p79 = scmp.ne.s32.totalorder %s68, %s69
      %p80 = scmp.eq.s32.totalorder %s34, 0
      %p81 = por %p79, %p80
      %p82 = scmp.ne.s32.totalorder %s68, %s69
      %p83 = scmp.eq.s32.totalorder %s35, 1
      %p84 = por %p82, %p83
      %p86 = scmp.ne.s32.totalorder %s69, %s85
      %p87 = scmp.eq.s32.totalorder %s35, 0
      %p88 = por %p86, %p87
      %s89 = ssub.s32 %s29, %s36
      %p90 = scmp.eq.s32.totalorder %s89, 0
      %s92 = sadd.s32 %s91, 1
      %s93 = scalar_select %p90, %s91, %s92
      %p96 = pneg %p90
      %p97 = scmp.eq.s32.totalorder %s29, 1
      %p98 = por %p96, %p97
      %p99 = scmp.ne.s32.totalorder %s91, %s94
      %p100 = scmp.eq.s32.totalorder %s29, 0
      %p101 = por %p99, %p100
      %p102 = scmp.ne.s32.totalorder %s91, %s94
      %p103 = scmp.eq.s32.totalorder %s34, 1
      %p104 = por %p102, %p103
      %p105 = scmp.ne.s32.totalorder %s94, %s95
      %p106 = scmp.eq.s32.totalorder %s34, 0
      %p107 = por %p105, %p106
      %p108 = scmp.ne.s32.totalorder %s94, %s95
      %p109 = scmp.eq.s32.totalorder %s35, 1
      %p110 = por %p108, %p109
      %p112 = scmp.ne.s32.totalorder %s95, %s111
      %p113 = scmp.eq.s32.totalorder %s35, 0
      %p114 = por %p112, %p113
      %s116 = sadd.s32 %s115, 1
      %p119 = scmp.eq.s32.totalorder %s29, 1
      %p120 = scmp.ne.s32.totalorder %s115, %s117
      %p121 = scmp.eq.s32.totalorder %s29, 0
      %p122 = por %p120, %p121
      %p123 = scmp.ne.s32.totalorder %s115, %s117
      %p124 = scmp.eq.s32.totalorder %s34, 1
      %p125 = por %p123, %p124
      %p126 = scmp.ne.s32.totalorder %s117, %s118
      %p127 = scmp.eq.s32.totalorder %s34, 0
      %p128 = por %p126, %p127
      %p129 = scmp.ne.s32.totalorder %s117, %s118
      %p130 = scmp.eq.s32.totalorder %s35, 1
      %p131 = por %p129, %p130
      %p133 = scmp.ne.s32.totalorder %s118, %s132
      %p134 = scmp.eq.s32.totalorder %s35, 0
      %p135 = por %p133, %p134
      %s137 = sadd.s32 %s136, 1
      %p140 = scmp.eq.s32.totalorder %s29, 1
      %p141 = scmp.ne.s32.totalorder %s136, %s138
      %p142 = scmp.eq.s32.totalorder %s29, 0
      %p143 = por %p141, %p142
      %p144 = scmp.ne.s32.totalorder %s136, %s138
      %p145 = scmp.eq.s32.totalorder %s34, 1
      %p146 = por %p144, %p145
      %p147 = scmp.ne.s32.totalorder %s138, %s139
      %p148 = scmp.eq.s32.totalorder %s34, 0
      %p149 = por %p147, %p148
      %p150 = scmp.ne.s32.totalorder %s138, %s139
      %p151 = scmp.eq.s32.totalorder %s35, 1
      %p152 = por %p150, %p151
      %p154 = scmp.ne.s32.totalorder %s139, %s153
      %p155 = scmp.eq.s32.totalorder %s35, 0
      %p156 = por %p154, %p155
      %s158 = sadd.s32 %s157, 1
      %p161 = scmp.eq.s32.totalorder %s29, 1
      %p162 = scmp.ne.s32.totalorder %s157, %s159
      %p163 = scmp.eq.s32.totalorder %s29, 0
      %p164 = por %p162, %p163
      %p165 = scmp.ne.s32.totalorder %s157, %s159
      %p166 = scmp.eq.s32.totalorder %s34, 1
      %p167 = por %p165, %p166
      %p168 = scmp.ne.s32.totalorder %s159, %s160
      %p169 = scmp.eq.s32.totalorder %s34, 0
      %p170 = por %p168, %p169
      %p171 = scmp.ne.s32.totalorder %s159, %s160
      %p172 = scmp.eq.s32.totalorder %s35, 1
      %p173 = por %p171, %p172
      %p175 = scmp.ne.s32.totalorder %s160, %s174
      %p176 = scmp.eq.s32.totalorder %s35, 0
      %p177 = por %p175, %p176
      %s179 = sadd.s32 %s178, 1
      %p182 = scmp.eq.s32.totalorder %s29, 1
      %p183 = scmp.ne.s32.totalorder %s178, %s180
      %p184 = scmp.eq.s32.totalorder %s29, 0
      %p185 = por %p183, %p184
      %p186 = scmp.ne.s32.totalorder %s178, %s180
      %p187 = scmp.eq.s32.totalorder %s34, 1
      %p188 = por %p186, %p187
      %p189 = scmp.ne.s32.totalorder %s180, %s181
      %p190 = scmp.eq.s32.totalorder %s34, 0
      %p191 = por %p189, %p190
      %p192 = scmp.ne.s32.totalorder %s180, %s181
      %p193 = scmp.eq.s32.totalorder %s35, 1
      %p194 = por %p192, %p193
      %p196 = scmp.ne.s32.totalorder %s181, %s195
      %p197 = scmp.eq.s32.totalorder %s35, 0
      %p198 = por %p196, %p197
      %s200 = sadd.s32 %s199, 1
      %p203 = scmp.eq.s32.totalorder %s29, 1
      %p204 = scmp.ne.s32.totalorder %s199, %s201
      %p205 = scmp.eq.s32.totalorder %s29, 0
      %p206 = por %p204, %p205
      %p207 = scmp.ne.s32.totalorder %s199, %s201
      %p208 = scmp.eq.s32.totalorder %s34, 1
      %p209 = por %p207, %p208
      %p210 = scmp.ne.s32.totalorder %s201, %s202
      %p211 = scmp.eq.s32.totalorder %s34, 0
      %p212 = por %p210, %p211
      %p213 = scmp.ne.s32.totalorder %s201, %s202
      %p214 = scmp.eq.s32.totalorder %s35, 1
      %p215 = por %p213, %p214
      %p217 = scmp.ne.s32.totalorder %s202, %s216
      %p218 = scmp.eq.s32.totalorder %s35, 0
      %p219 = por %p217, %p218
      %s221 = sadd.s32 %s220, 1
      %p224 = scmp.eq.s32.totalorder %s29, 1
      %p225 = scmp.ne.s32.totalorder %s220, %s222
      %p226 = scmp.eq.s32.totalorder %s29, 0
      %p227 = por %p225, %p226
      %p228 = scmp.ne.s32.totalorder %s220, %s222
      %p229 = scmp.eq.s32.totalorder %s34, 1
      %p230 = por %p228, %p229
      %p231 = scmp.ne.s32.totalorder %s222, %s223
      %p232 = scmp.eq.s32.totalorder %s34, 0
      %p233 = por %p231, %p232
      %p234 = scmp.ne.s32.totalorder %s222, %s223
      %p235 = scmp.eq.s32.totalorder %s35, 1
      %p236 = por %p234, %p235
      %p238 = scmp.ne.s32.totalorder %s223, %s237
      %p239 = scmp.eq.s32.totalorder %s35, 0
      %p240 = por %p238, %p239
      %s242 = sadd.s32 %s241, 1
      %p245 = scmp.eq.s32.totalorder %s29, 1
      %p246 = scmp.ne.s32.totalorder %s241, %s243
      %p247 = scmp.eq.s32.totalorder %s29, 0
      %p248 = por %p246, %p247
      %p249 = scmp.ne.s32.totalorder %s241, %s243
      %p250 = scmp.eq.s32.totalorder %s34, 1
      %p251 = por %p249, %p250
      %p252 = scmp.ne.s32.totalorder %s243, %s244
      %p253 = scmp.eq.s32.totalorder %s34, 0
      %p254 = por %p252, %p253
      %p255 = scmp.ne.s32.totalorder %s243, %s244
      %p256 = scmp.eq.s32.totalorder %s35, 1
      %p257 = por %p255, %p256
      %p259 = scmp.ne.s32.totalorder %s244, %s258
      %p260 = scmp.eq.s32.totalorder %s35, 0
      %p261 = por %p259, %p260
      %s263 = sadd.s32 %s262, 1
      %p266 = scmp.eq.s32.totalorder %s29, 1
      %p267 = scmp.ne.s32.totalorder %s262, %s264
      %p268 = scmp.eq.s32.totalorder %s29, 0
      %p269 = por %p267, %p268
      %p270 = scmp.ne.s32.totalorder %s262, %s264
      %p271 = scmp.eq.s32.totalorder %s34, 1
      %p272 = por %p270, %p271
      %p273 = scmp.ne.s32.totalorder %s264, %s265
      %p274 = scmp.eq.s32.totalorder %s34, 0
      %p275 = por %p273, %p274
      %p276 = scmp.ne.s32.totalorder %s264, %s265
      %p277 = scmp.eq.s32.totalorder %s35, 1
      %p278 = por %p276, %p277
      %p280 = scmp.ne.s32.totalorder %s265, %s279
      %p281 = scmp.eq.s32.totalorder %s35, 0
      %p282 = por %p280, %p281
      %s284 = sadd.s32 %s283, 1
      %p287 = scmp.eq.s32.totalorder %s29, 1
      %p288 = scmp.ne.s32.totalorder %s283, %s285
      %p289 = scmp.eq.s32.totalorder %s29, 0
      %p290 = por %p288, %p289
      %p291 = scmp.ne.s32.totalorder %s283, %s285
      %p292 = scmp.eq.s32.totalorder %s34, 1
      %p293 = por %p291, %p292
      %p294 = scmp.ne.s32.totalorder %s285, %s286
      %p295 = scmp.eq.s32.totalorder %s34, 0
      %p296 = por %p294, %p295
      %p297 = scmp.ne.s32.totalorder %s285, %s286
      %p298 = scmp.eq.s32.totalorder %s35, 1
      %p299 = por %p297, %p298
      %p301 = scmp.ne.s32.totalorder %s286, %s300
      %p302 = scmp.eq.s32.totalorder %s35, 0
      %p303 = por %p301, %p302
      %s305 = sadd.s32 %s304, 1
      %p308 = scmp.eq.s32.totalorder %s29, 1
      %p309 = scmp.ne.s32.totalorder %s304, %s306
      %p310 = scmp.eq.s32.totalorder %s29, 0
      %p311 = por %p309, %p310
      %p312 = scmp.ne.s32.totalorder %s304, %s306
      %p313 = scmp.eq.s32.totalorder %s34, 1
      %p314 = por %p312, %p313
      %p315 = scmp.ne.s32.totalorder %s306, %s307
      %p316 = scmp.eq.s32.totalorder %s34, 0
      %p317 = por %p315, %p316
      %p318 = scmp.ne.s32.totalorder %s306, %s307
      %p319 = scmp.eq.s32.totalorder %s35, 1
      %p320 = por %p318, %p319
      %p322 = scmp.ne.s32.totalorder %s307, %s321
      %p323 = scmp.eq.s32.totalorder %s35, 0
      %p324 = por %p322, %p323
      %s325 = ssub.s32 %s29, %s36
      %p326 = scmp.eq.s32.totalorder %s325, 0
      %s328 = sadd.s32 %s327, 1
      %s329 = scalar_select %p326, %s327, %s328
      %p332 = pneg %p326
      %p333 = scmp.eq.s32.totalorder %s29, 1
      %p334 = por %p332, %p333
      %p335 = scmp.ne.s32.totalorder %s327, %s330
      %p336 = scmp.eq.s32.totalorder %s29, 0
      %p337 = por %p335, %p336
      %p338 = scmp.ne.s32.totalorder %s327, %s330
      %p339 = scmp.eq.s32.totalorder %s34, 1
      %p340 = por %p338, %p339
      %p341 = scmp.ne.s32.totalorder %s330, %s331
      %p342 = scmp.eq.s32.totalorder %s34, 0
      %p343 = por %p341, %p342
      %p344 = scmp.ne.s32.totalorder %s330, %s331
      %p345 = scmp.eq.s32.totalorder %s35, 1
      %p346 = por %p344, %p345
      %p348 = scmp.ne.s32.totalorder %s331, %s347
      %p349 = scmp.eq.s32.totalorder %s35, 0
      %p350 = por %p348, %p349
      %p351 = scmp.le.s32.totalorder 1, %s29
      %p352 = scmp.lt.s32.totalorder %s29, 3
      %p353 = pnand %p351, %p352
      %p354 = pneg %p353
      // Predicated region
      $region9: #{tpu_custom_call.1} parent=5 // pred_check
        _
      $region10: #{tpu_custom_call.1} parent=5 // pred_check_branch
        %356 = sbr.rel (%p353) target = $region12
      $region11: #{tpu_custom_call.1} parent=5 // pred_region
        %s357 = ssub.s32 %s29, 1
        // Predicated region
        $region13: #{tpu_custom_call.1} parent=11 // pred_check
          %p358 = pneg %p128
        $region14: #{tpu_custom_call.1} parent=11 // pred_check_branch
          %360 = sbr.rel (%p358) target = $region16
        $region15: #{tpu_custom_call.1} parent=11 // pred_region
          %s362 = ssub.s32 256, 256
          %363 = vsyncadd [#allocation6], %s362
          %s364 = sshll.u32 [#allocation7], 4
          %s365 = int_to_ptr.vmem [resolvable:$true] %s364
          %370 = dma.hbm_to_vmem [thread:$0]  %s3, 256, %s365, [#allocation6], 128, 128, 8
        $region16: #{tpu_custom_call.1} parent=11 // pred_fallthru
          _
        // Predicated region
        $region17: #{tpu_custom_call.1} parent=11 // pred_check
          %p371 = pneg %p149
        $region18: #{tpu_custom_call.1} parent=11 // pred_check_branch
          %373 = sbr.rel (%p371) target = $region20
        $region19: #{tpu_custom_call.1} parent=11 // pred_region
          _
        $region20: #{tpu_custom_call.1} parent=11 // pred_fallthru
          _
        // Predicated region
        $region21: #{tpu_custom_call.1} parent=11 // pred_check
          %p374 = pneg %p170
        $region22: #{tpu_custom_call.1} parent=11 // pred_check_branch
          %376 = sbr.rel (%p374) target = $region24
        $region23: #{tpu_custom_call.1} parent=11 // pred_region
          _
        $region24: #{tpu_custom_call.1} parent=11 // pred_fallthru
          _
        // Predicated region
        $region25: #{tpu_custom_call.1} parent=11 // pred_check
          %p377 = pneg %p191
        $region26: #{tpu_custom_call.1} parent=11 // pred_check_branch
          %379 = sbr.rel (%p377) target = $region28
        $region27: #{tpu_custom_call.1} parent=11 // pred_region
          _
        $region28: #{tpu_custom_call.1} parent=11 // pred_fallthru
          _
        // Predicated region
        $region29: #{tpu_custom_call.1} parent=11 // pred_check
          %p380 = pneg %p212
        $region30: #{tpu_custom_call.1} parent=11 // pred_check_branch
          %382 = sbr.rel (%p380) target = $region32
        $region31: #{tpu_custom_call.1} parent=11 // pred_region
          _
        $region32: #{tpu_custom_call.1} parent=11 // pred_fallthru
          _
        // Predicated region
        $region33: #{tpu_custom_call.1} parent=11 // pred_check
          %p383 = pneg %p233
        $region34: #{tpu_custom_call.1} parent=11 // pred_check_branch
          %385 = sbr.rel (%p383) target = $region36
        $region35: #{tpu_custom_call.1} parent=11 // pred_region
          _
        $region36: #{tpu_custom_call.1} parent=11 // pred_fallthru
          _
        // Predicated region
        $region37: #{tpu_custom_call.1} parent=11 // pred_check
          %p386 = pneg %p254
        $region38: #{tpu_custom_call.1} parent=11 // pred_check_branch
          %388 = sbr.rel (%p386) target = $region40
        $region39: #{tpu_custom_call.1} parent=11 // pred_region
          _
        $region40: #{tpu_custom_call.1} parent=11 // pred_fallthru
          _
        // Predicated region
        $region41: #{tpu_custom_call.1} parent=11 // pred_check
          %p389 = pneg %p275
        $region42: #{tpu_custom_call.1} parent=11 // pred_check_branch
          %391 = sbr.rel (%p389) target = $region44
        $region43: #{tpu_custom_call.1} parent=11 // pred_region
          _
        $region44: #{tpu_custom_call.1} parent=11 // pred_fallthru
          _
        // Predicated region
        $region45: #{tpu_custom_call.1} parent=11 // pred_check
          %p392 = pneg %p296
        $region46: #{tpu_custom_call.1} parent=11 // pred_check_branch
          %394 = sbr.rel (%p392) target = $region48
        $region47: #{tpu_custom_call.1} parent=11 // pred_region
          _
        $region48: #{tpu_custom_call.1} parent=11 // pred_fallthru
          _
        // Predicated region
        $region49: #{tpu_custom_call.1} parent=11 // pred_check
          %p395 = pneg %p317
        $region50: #{tpu_custom_call.1} parent=11 // pred_check_branch
          %397 = sbr.rel (%p395) target = $region52
        $region51: #{tpu_custom_call.1} parent=11 // pred_region
          %s399 = ssub.s32 512, 512
          %400 = vsyncadd [#allocation9], %s399
          %s401 = sshll.u32 [#allocation8], 4
          %s402 = int_to_ptr.vmem [resolvable:$true] %s401
          %407 = dma.hbm_to_vmem [thread:$0]  %s12, 512, %s402, [#allocation9], 128, 128, 8
        $region52: #{tpu_custom_call.1} parent=11 // pred_fallthru
          _
      $region12: #{tpu_custom_call.1} parent=5 // pred_fallthru
        _
      %p408 = scmp.lt.s32.totalorder %s29, 2
      // Predicated region
      $region53: #{tpu_custom_call.1} parent=5 // pred_check
        %p409 = pneg %p408
      $region54: #{tpu_custom_call.1} parent=5 // pred_check_branch
        %411 = sbr.rel (%p409) target = $region56
      $region55: #{tpu_custom_call.1} parent=5 // pred_region
        // Predicated region
        $region57: #{tpu_custom_call.1} parent=55 // pred_check
          %p412 = pneg %p49
        $region58: #{tpu_custom_call.1} parent=55 // pred_check_branch
          %414 = sbr.rel (%p412) target = $region60
        $region59: #{tpu_custom_call.1} parent=55 // pred_region
          %s415 = smul.u32 8, %s29
          %p416 = scmp.lt.s32.totalorder %s415, 15
          %s417 = scalar_select %p416, %s415, 15
          %s418 = smul.addr %s417, 8
          %s419 = scalar_lea.vmem %s0, %s418
          %s420 = smul.u32 8, %s29
        $region60: #{tpu_custom_call.1} parent=55 // pred_fallthru
          _
        // Predicated region
        $region61: #{tpu_custom_call.1} parent=55 // pred_check
          %p421 = pneg %p75
        $region62: #{tpu_custom_call.1} parent=55 // pred_check_branch
          %423 = sbr.rel (%p421) target = $region64
        $region63: #{tpu_custom_call.1} parent=55 // pred_region
          %s424 = sand.u32 %s65, 1
          %s425 = scalar_lea.sflag [#allocation3], %s424
          %s426 = sand.u32 %s65, 1
          %s427 = smul.addr %s426, 4
          %s428 = scalar_lea.vmem [#allocation2], %s427
          %s430 = ssub.s32 64, 64
          %431 = vsyncadd %s425, %s430
          %s432 = smul.addr %s29, 64
          %s433 = scalar_lea.hbm %s1, %s432
          %s435 = sshll.u32 %s428, 4
          %s436 = int_to_ptr.vmem [resolvable:$true] %s435
          %438 = dma.hbm_to_vmem [thread:$0]  %s433, 64, %s436, %s425
        $region64: #{tpu_custom_call.1} parent=55 // pred_fallthru
          _
        // Predicated region
        $region65: #{tpu_custom_call.1} parent=55 // pred_check
          %p439 = pneg %p101
        $region66: #{tpu_custom_call.1} parent=55 // pred_check_branch
          %441 = sbr.rel (%p439) target = $region68
        $region67: #{tpu_custom_call.1} parent=55 // pred_region
          %s442 = sand.u32 %s29, 1
          %s443 = scalar_lea.sflag [#allocation6], %s442
          %s444 = sand.u32 %s91, 1
          %s445 = smul.addr %s444, 4
          %s446 = scalar_lea.vmem [#allocation5], %s445
          %s448 = ssub.s32 64, 64
          %449 = vsyncadd %s443, %s448
          %s450 = smul.addr %s29, 64
          %s451 = scalar_lea.hbm %s2, %s450
          %s453 = sshll.u32 %s446, 4
          %s454 = int_to_ptr.vmem [resolvable:$true] %s453
          %456 = dma.hbm_to_vmem [thread:$0]  %s451, 64, %s454, %s443
        $region68: #{tpu_custom_call.1} parent=55 // pred_fallthru
          _
      $region56: #{tpu_custom_call.1} parent=5 // pred_fallthru
        _
      %p457 = scmp.le.s32.totalorder 1, %s29
      %p458 = scmp.lt.s32.totalorder %s29, 3
      %p459 = pnand %p457, %p458
      %p460 = pneg %p459
      // Predicated region
      $region69: #{tpu_custom_call.1} parent=5 // pred_check
        _
      $region70: #{tpu_custom_call.1} parent=5 // pred_check_branch
        %462 = sbr.rel (%p459) target = $region72
      $region71: #{tpu_custom_call.1} parent=5 // pred_region
        %s463 = ssub.s32 %s29, 1
        %s464 = sand.u32 %s68, 1
        %s465 = scalar_lea.sflag [#allocation3], %s464
        %s466 = sand.u32 %s68, 1
        %s467 = smul.addr %s466, 4
        %s468 = scalar_lea.vmem [#allocation2], %s467
        // Predicated region
        $region73: #{tpu_custom_call.1} parent=71 // pred_check
          %p469 = pneg %p81
        $region74: #{tpu_custom_call.1} parent=71 // pred_check_branch
          %471 = sbr.rel (%p469) target = $region76
        $region75: #{tpu_custom_call.1} parent=71 // pred_region
          %472 = dma.done %s465, 64
        $region76: #{tpu_custom_call.1} parent=71 // pred_fallthru
          _
        %s473 = sand.u32 %s34, 1
        %s474 = scalar_lea.sflag [#allocation6], %s473
        %s475 = sand.u32 %s94, 1
        %s476 = smul.addr %s475, 4
        %s477 = scalar_lea.vmem [#allocation5], %s476
        // Predicated region
        $region77: #{tpu_custom_call.1} parent=71 // pred_check
          %p478 = pneg %p107
        $region78: #{tpu_custom_call.1} parent=71 // pred_check_branch
          %480 = sbr.rel (%p478) target = $region80
        $region79: #{tpu_custom_call.1} parent=71 // pred_region
          %481 = dma.done %s474, 64
        $region80: #{tpu_custom_call.1} parent=71 // pred_fallthru
          _
        // Predicated region
        $region81: #{tpu_custom_call.1} parent=71 // pred_check
          %p482 = pneg %p128
        $region82: #{tpu_custom_call.1} parent=71 // pred_check_branch
          %484 = sbr.rel (%p482) target = $region84
        $region83: #{tpu_custom_call.1} parent=71 // pred_region
          %485 = dma.done [#allocation6], 256
        $region84: #{tpu_custom_call.1} parent=71 // pred_fallthru
          _
        // Predicated region
        $region85: #{tpu_custom_call.1} parent=71 // pred_check
          %p486 = pneg %p317
        $region86: #{tpu_custom_call.1} parent=71 // pred_check_branch
          %488 = sbr.rel (%p486) target = $region88
        $region87: #{tpu_custom_call.1} parent=71 // pred_region
          %489 = dma.done [#allocation9], 512
        $region88: #{tpu_custom_call.1} parent=71 // pred_fallthru
          _
        %s490 = smul.u32 8, %s34
        %p491 = scmp.lt.s32.totalorder %s490, 15
        %s492 = scalar_select %p491, %s490, 15
        %s493 = smul.addr %s492, 8
        %s494 = scalar_lea.vmem %s0, %s493
        %p495 = pneg %p55
        %p496 = pneg %p52
        %s497 = sand.u32 %s68, 1
        %s498 = scalar_lea.sflag [#allocation3], %s497
        %s499 = sand.u32 %s68, 1
        %s500 = smul.addr %s499, 4
        %s501 = scalar_lea.vmem [#allocation2], %s500
        %p502 = pneg %p81
        %p503 = pneg %p78
        %s504 = sand.u32 %s34, 1
        %s505 = scalar_lea.sflag [#allocation6], %s504
        %s506 = sand.u32 %s94, 1
        %s507 = smul.addr %s506, 4
        %s508 = scalar_lea.vmem [#allocation5], %s507
        %p509 = pneg %p107
        %p510 = pneg %p104
        %p511 = pneg %p128
        %p512 = pneg %p125
        %p513 = pneg %p149
        %p514 = pneg %p146
        %p515 = pneg %p170
        %p516 = pneg %p167
        %p517 = pneg %p191
        %p518 = pneg %p188
        %p519 = pneg %p212
        %p520 = pneg %p209
        %p521 = pneg %p233
        %p522 = pneg %p230
        %p523 = pneg %p254
        %p524 = pneg %p251
        %p525 = pneg %p275
        %p526 = pneg %p272
        %p527 = pneg %p296
        %p528 = pneg %p293
        %p529 = pneg %p317
        %p530 = pneg %p314
        %p531 = pneg %p343
        %p532 = pneg %p340
        %s533 = sand.u32 %s330, 1
        %s534 = scalar_lea.sflag [#allocation4], %s533
        %s535 = sand.u32 %s330, 1
        %s536 = smul.addr %s535, 4
        %s537 = scalar_lea.vmem [#allocation10], %s536
        %s538 = smul.u32 8, %s34
        %p539 = scmp.lt.s32.totalorder %s538, 15
        %s540 = scalar_select %p539, %s538, 15
        %s541 = smul.addr %s540, 8
        %s542 = scalar_lea.vmem %s0, %s541
        %s543 = smul.u32 8, %s34
        %v544 = vld [vmem:[#allocation7] sm:$0x1]
        %v545 = vld [vmem:[#allocation7 + $0x1] sm:$0x1]
        %v546 = vld [vmem:[#allocation7 + $0x2] sm:$0x1]
        %v547 = vld [vmem:[#allocation7 + $0x3] sm:$0x1]
        %v548 = vld [vmem:[#allocation7 + $0x4] sm:$0x1]
        %v549 = vld [vmem:[#allocation7 + $0x5] sm:$0x1]
        %v550 = vld [vmem:[#allocation7 + $0x6] sm:$0x1]
        %v551 = vld [vmem:[#allocation7 + $0x7] sm:$0x1]
        %v552 = vld [vmem:[#allocation7 + $0x8] sm:$0x1]
        %v553 = vld [vmem:[#allocation7 + $0x9] sm:$0x1]
        %v554 = vld [vmem:[#allocation7 + $0xa] sm:$0x1]
        %v555 = vld [vmem:[#allocation7 + $0xb] sm:$0x1]
        %v556 = vld [vmem:[#allocation7 + $0xc] sm:$0x1]
        %v557 = vld [vmem:[#allocation7 + $0xd] sm:$0x1]
        %v558 = vld [vmem:[#allocation7 + $0xe] sm:$0x1]
        %v559 = vld [vmem:[%s542] sm:$0xff]
        %v560 = vld [vmem:[%s542 + $0x8] sm:$0xff]
        %v561 = vld [vmem:[%s542 + $0x10] sm:$0xff]
        %v562 = vld [vmem:[%s542 + $0x18] sm:$0xff]
        %v563 = vld [vmem:[%s542 + $0x20] sm:$0xff]
        %v564 = vld [vmem:[%s542 + $0x28] sm:$0xff]
        %v565 = vld [vmem:[%s542 + $0x30] sm:$0xff]
        %v566 = vld [vmem:[%s542 + $0x38] sm:$0xff]
        %vm567 = vcmask 261120
        %v568 = vsel %vm567, %v559, 0.0
        %569 = vadd.xlane.f32.xlu0 %v568
        %v570 = vpop.xlane.xlu0 %569
        %v571 = vsel %vm567, %v560, 0.0
        %572 = vadd.xlane.f32.xlu0 %v571
        %v573 = vpop.xlane.xlu0 %572
        %v574 = vsel %vm567, %v561, 0.0
        %575 = vadd.xlane.f32.xlu0 %v574
        %v576 = vpop.xlane.xlu0 %575
        %v577 = vsel %vm567, %v562, 0.0
        %578 = vadd.xlane.f32.xlu0 %v577
        %v579 = vpop.xlane.xlu0 %578
        %v580 = vsel %vm567, %v563, 0.0
        %581 = vadd.xlane.f32.xlu0 %v580
        %v582 = vpop.xlane.xlu0 %581
        %v583 = vsel %vm567, %v564, 0.0
        %584 = vadd.xlane.f32.xlu0 %v583
        %v585 = vpop.xlane.xlu0 %584
        %v586 = vsel %vm567, %v565, 0.0
        %587 = vadd.xlane.f32.xlu0 %v586
        %v588 = vpop.xlane.xlu0 %587
        %v589 = vsel %vm567, %v566, 0.0
        %590 = vadd.xlane.f32.xlu0 %v589
        %v591 = vpop.xlane.xlu0 %590
        %v592 = vrcp.pop 32.0
        %v593 = vmul.f32 %v570, %v592
        %v594 = vmul.f32 %v573, %v592
        %v595 = vmul.f32 %v576, %v592
        %v596 = vmul.f32 %v579, %v592
        %v597 = vmul.f32 %v582, %v592
        %v598 = vmul.f32 %v585, %v592
        %v599 = vmul.f32 %v588, %v592
        %v600 = vmul.f32 %v591, %v592
        %v601 = vsub.f32 %v559, %v593
        %v602 = vsub.f32 %v560, %v594
        %v603 = vsub.f32 %v561, %v595
        %v604 = vsub.f32 %v562, %v596
        %v605 = vsub.f32 %v563, %v597
        %v606 = vsub.f32 %v564, %v598
        %v607 = vsub.f32 %v565, %v599
        %v608 = vsub.f32 %v566, %v600
        %v609 = vmul.f32 %v601, %v601
        %v610 = vmul.f32 %v602, %v602
        %v611 = vmul.f32 %v603, %v603
        %v612 = vmul.f32 %v604, %v604
        %v613 = vmul.f32 %v605, %v605
        %v614 = vmul.f32 %v606, %v606
        %v615 = vmul.f32 %v607, %v607
        %v616 = vmul.f32 %v608, %v608
        %v617 = vsel %vm567, %v609, 0.0
        %618 = vadd.xlane.f32.xlu0 %v617
        %v619 = vpop.xlane.xlu0 %618
        %v620 = vsel %vm567, %v610, 0.0
        %621 = vadd.xlane.f32.xlu0 %v620
        %v622 = vpop.xlane.xlu0 %621
        %v623 = vsel %vm567, %v611, 0.0
        %624 = vadd.xlane.f32.xlu0 %v623
        %v625 = vpop.xlane.xlu0 %624
        %v626 = vsel %vm567, %v612, 0.0
        %627 = vadd.xlane.f32.xlu0 %v626
        %v628 = vpop.xlane.xlu0 %627
        %v629 = vsel %vm567, %v613, 0.0
        %630 = vadd.xlane.f32.xlu0 %v629
        %v631 = vpop.xlane.xlu0 %630
        %v632 = vsel %vm567, %v614, 0.0
        %633 = vadd.xlane.f32.xlu0 %v632
        %v634 = vpop.xlane.xlu0 %633
        %v635 = vsel %vm567, %v615, 0.0
        %636 = vadd.xlane.f32.xlu0 %v635
        %v637 = vpop.xlane.xlu0 %636
        %v638 = vsel %vm567, %v616, 0.0
        %639 = vadd.xlane.f32.xlu0 %v638
        %v640 = vpop.xlane.xlu0 %639
        %v641 = vmul.f32 %v619, %v592
        %v642 = vmul.f32 %v622, %v592
        %v643 = vmul.f32 %v625, %v592
        %v644 = vmul.f32 %v628, %v592
        %v645 = vmul.f32 %v631, %v592
        %v646 = vmul.f32 %v634, %v592
        %v647 = vmul.f32 %v637, %v592
        %v648 = vmul.f32 %v640, %v592
        %v649 = vadd.f32 %v641, 1e-05
        %v650 = vadd.f32 %v642, 1e-05
        %v651 = vadd.f32 %v643, 1e-05
        %v652 = vadd.f32 %v644, 1e-05
        %v653 = vadd.f32 %v645, 1e-05
        %v654 = vadd.f32 %v646, 1e-05
        %v655 = vadd.f32 %v647, 1e-05
        %v656 = vadd.f32 %v648, 1e-05
        %v657 = vrsqrt.pop %v649
        %v658 = vrsqrt.pop %v650
        %v659 = vrsqrt.pop %v651
        %v660 = vrsqrt.pop %v652
        %v661 = vrsqrt.pop %v653
        %v662 = vrsqrt.pop %v654
        %v663 = vrsqrt.pop %v655
        %v664 = vrsqrt.pop %v656
        %v665 = vmul.f32 %v601, %v657
        %v666 = vmul.f32 %v602, %v658
        %v667 = vmul.f32 %v603, %v659
        %v668 = vmul.f32 %v604, %v660
        %v669 = vmul.f32 %v605, %v661
        %v670 = vmul.f32 %v606, %v662
        %v671 = vmul.f32 %v607, %v663
        %v672 = vmul.f32 %v608, %v664
        %v673 = vlaneseq
        %v674 = vshrl.u32 %v673, 7
        %v675 = vsub.s32 0, %v674
        %v676 = vrot.slane %v544, %v675
        %v677 = vmul.f32 %v665, %v676
        %v678 = vmul.f32 %v666, %v676
        %v679 = vmul.f32 %v667, %v676
        %v680 = vmul.f32 %v668, %v676
        %v681 = vmul.f32 %v669, %v676
        %v682 = vmul.f32 %v670, %v676
        %v683 = vmul.f32 %v671, %v676
        %v684 = vmul.f32 %v672, %v676
        %v685 = vlaneseq
        %v686 = vshrl.u32 %v685, 7
        %v687 = vsub.s32 0, %v686
        %v688 = vrot.slane %v545, %v687
        %v689 = vadd.f32 %v677, %v688
        %v690 = vadd.f32 %v678, %v688
        %v691 = vadd.f32 %v679, %v688
        %v692 = vadd.f32 %v680, %v688
        %v693 = vadd.f32 %v681, %v688
        %v694 = vadd.f32 %v682, %v688
        %v695 = vadd.f32 %v683, %v688
        %v696 = vadd.f32 %v684, %v688
        %v697 = vld [vmem:[%s4] sm:$0xff]
        %v698 = vld [vmem:[%s4 + $0x8] sm:$0xff]
        %v699 = vld [vmem:[%s4 + $0x10] sm:$0xff]
        %v700 = vld [vmem:[%s4 + $0x18] sm:$0xff]
        %v702 = vsel %vm567, %v689, 0
        %v705 = vsel %vm567, %v690, 0
        %v708 = vsel %vm567, %v691, 0
        %v711 = vsel %vm567, %v692, 0
        %v714 = vsel %vm567, %v693, 0
        %v717 = vsel %vm567, %v694, 0
        %v720 = vsel %vm567, %v695, 0
        %v723 = vsel %vm567, %v696, 0
        %725 = vmatprep.subr.mxu0 0.0
        %726 = vmatpush1.msra.mxu0 %v697
        %727 = vmatprep.subr.mxu0 0.0
        %728 = vmatpush1.msra.mxu0 %v698
        %729 = vmatprep.subr.mxu0 0.0
        %730 = vmatpush1.msra.mxu0 %v699
        %731 = vmatprep.subr.mxu0 0.0
        %732 = vmatpush1.msra.mxu0 %v700
        %733 = vmatprep.subr.mxu0 0.0
        %734 = vmatpush1.msra.mxu0 0.0
        %735 = vmatprep.subr.mxu0 0.0
        %736 = vmatpush1.msra.mxu0 0.0
        %737 = vmatprep.subr.mxu0 0.0
        %738 = vmatpush1.msra.mxu0 0.0
        %739 = vmatprep.subr.mxu0 0.0
        %740 = vmatpush1.msra.mxu0 0.0
        %741 = vmatprep.subr.mxu0 0.0
        %742 = vmatpush1.msra.mxu0 0.0
        %743 = vmatprep.subr.mxu0 0.0
        %744 = vmatpush1.msra.mxu0 0.0
        %745 = vmatprep.subr.mxu0 0.0
        %746 = vmatpush1.msra.mxu0 0.0
        %747 = vmatprep.subr.mxu0 0.0
        %748 = vmatpush1.msra.mxu0 0.0
        %749 = vmatprep.subr.mxu0 0.0
        %750 = vmatpush1.msra.mxu0 0.0
        %751 = vmatprep.subr.mxu0 0.0
        %752 = vmatpush1.msra.mxu0 0.0
        %753 = vmatprep.subr.mxu0 0.0
        %754 = vmatpush1.msra.mxu0 0.0
        %755 = vmatprep.subr.mxu0 0.0
        %756 = vmatpush1.msra.mxu0 0.0
        %757 = vmatprep.subr.mxu0 0.0
        %758 = vmatpush1.msra.mxu0 0.0
        %759 = vmatprep.subr.mxu0 0.0
        %760 = vmatpush1.msra.mxu0 0.0
        %761 = vmatprep.subr.mxu0 0.0
        %762 = vmatpush1.msra.mxu0 0.0
        %763 = vmatprep.subr.mxu0 0.0
        %764 = vmatpush1.msra.mxu0 0.0
        %765 = vmatprep.subr.mxu0 0.0
        %766 = vmatpush1.msra.mxu0 0.0
        %767 = vmatprep.subr.mxu0 0.0
        %768 = vmatpush1.msra.mxu0 0.0
        %769 = vmatprep.subr.mxu0 0.0
        %770 = vmatpush1.msra.mxu0 0.0
        %771 = vmatprep.subr.mxu0 0.0
        %772 = vmatpush1.msra.mxu0 0.0
        %773 = vmatprep.subr.mxu0 0.0
        %774 = vmatpush1.msra.mxu0 0.0
        %775 = vmatprep.subr.mxu0 0.0
        %776 = vmatpush1.msra.mxu0 0.0
        %777 = vmatprep.subr.mxu0 0.0
        %778 = vmatpush1.msra.mxu0 0.0
        %779 = vmatprep.subr.mxu0 0.0
        %780 = vmatpush1.msra.mxu0 0.0
        %781 = vmatprep.subr.mxu0 0.0
        %782 = vmatpush1.msra.mxu0 0.0
        %783 = vmatprep.subr.mxu0 0.0
        %784 = vmatpush1.msra.mxu0 0.0
        %785 = vmatprep.subr.mxu0 0.0
        %786 = vmatpush1.msra.mxu0 0.0
        %787 = vmatprep.subr.mxu0 0.0
        %788 = vmatpush1.msra.mxu0 0.0
        %789 = vmatprep.mubr.f32.mxu0 0.0
        %790 = vmatmul.mubr.f32.gmra.mrb[0].mxu0 %v702
        %v791 = vpop.f32.mrb[0].mxu0
        %v792 = vadd.f32 0.0, %v791
        %v793 = vpop.f32.mrb[0].mxu0
        %794 = vmatprep.mubr.f32.mxu0 0.0
        %795 = vmatmul.mubr.f32.gmra.mrb[0].mxu0 %v705
        %v796 = vpop.f32.mrb[0].mxu0
        %v797 = vadd.f32 0.0, %v796
        %v798 = vpop.f32.mrb[0].mxu0
        %799 = vmatprep.mubr.f32.mxu0 0.0
        %800 = vmatmul.mubr.f32.gmra.mrb[0].mxu0 %v708
        %v801 = vpop.f32.mrb[0].mxu0
        %v802 = vadd.f32 0.0, %v801
        %v803 = vpop.f32.mrb[0].mxu0
        %804 = vmatprep.mubr.f32.mxu0 0.0
        %805 = vmatmul.mubr.f32.gmra.mrb[0].mxu0 %v711
        %v806 = vpop.f32.mrb[0].mxu0
        %v807 = vadd.f32 0.0, %v806
        %v808 = vpop.f32.mrb[0].mxu0
        %809 = vmatprep.mubr.f32.mxu0 0.0
        %810 = vmatmul.mubr.f32.gmra.mrb[0].mxu0 %v714
        %v811 = vpop.f32.mrb[0].mxu0
        %v812 = vadd.f32 0.0, %v811
        %v813 = vpop.f32.mrb[0].mxu0
        %814 = vmatprep.mubr.f32.mxu0 0.0
        %815 = vmatmul.mubr.f32.gmra.mrb[0].mxu0 %v717
        %v816 = vpop.f32.mrb[0].mxu0
        %v817 = vadd.f32 0.0, %v816
        %v818 = vpop.f32.mrb[0].mxu0
        %819 = vmatprep.mubr.f32.mxu0 0.0
        %820 = vmatmul.mubr.f32.gmra.mrb[0].mxu0 %v720
        %v821 = vpop.f32.mrb[0].mxu0
        %v822 = vadd.f32 0.0, %v821
        %v823 = vpop.f32.mrb[0].mxu0
        %824 = vmatprep.mubr.f32.mxu0 0.0
        %825 = vmatmul.mubr.f32.gmra.mrb[0].mxu0 %v723
        %v826 = vpop.f32.mrb[0].mxu0
        %v827 = vadd.f32 0.0, %v826
        %v828 = vpop.f32.mrb[0].mxu0
        %829 = vdwg.mxu0
        %v830 = vmul.f32 %v792, %v792
        %v831 = vmul.f32 %v797, %v797
        %v832 = vmul.f32 %v802, %v802
        %v833 = vmul.f32 %v807, %v807
        %v834 = vmul.f32 %v812, %v812
        %v835 = vmul.f32 %v817, %v817
        %v836 = vmul.f32 %v822, %v822
        %v837 = vmul.f32 %v827, %v827
        %v838 = vsel %vm567, %v830, 0.0
        %839 = vadd.xlane.f32.xlu0 %v838
        %v840 = vpop.xlane.xlu0 %839
        %v841 = vsel %vm567, %v831, 0.0
        %842 = vadd.xlane.f32.xlu0 %v841
        %v843 = vpop.xlane.xlu0 %842
        %v844 = vsel %vm567, %v832, 0.0
        %845 = vadd.xlane.f32.xlu0 %v844
        %v846 = vpop.xlane.xlu0 %845
        %v847 = vsel %vm567, %v833, 0.0
        %848 = vadd.xlane.f32.xlu0 %v847
        %v849 = vpop.xlane.xlu0 %848
        %v850 = vsel %vm567, %v834, 0.0
        %851 = vadd.xlane.f32.xlu0 %v850
        %v852 = vpop.xlane.xlu0 %851
        %v853 = vsel %vm567, %v835, 0.0
        %854 = vadd.xlane.f32.xlu0 %v853
        %v855 = vpop.xlane.xlu0 %854
        %v856 = vsel %vm567, %v836, 0.0
        %857 = vadd.xlane.f32.xlu0 %v856
        %v858 = vpop.xlane.xlu0 %857
        %v859 = vsel %vm567, %v837, 0.0
        %860 = vadd.xlane.f32.xlu0 %v859
        %v861 = vpop.xlane.xlu0 %860
        %v862 = vadd.f32 %v840, 1e-12
        %v863 = vadd.f32 %v843, 1e-12
        %v864 = vadd.f32 %v846, 1e-12
        %v865 = vadd.f32 %v849, 1e-12
        %v866 = vadd.f32 %v852, 1e-12
        %v867 = vadd.f32 %v855, 1e-12
        %v868 = vadd.f32 %v858, 1e-12
        %v869 = vadd.f32 %v861, 1e-12
        %v870 = vrsqrt.pop %v862
        %v871 = vrsqrt.pop %v863
        %v872 = vrsqrt.pop %v864
        %v873 = vrsqrt.pop %v865
        %v874 = vrsqrt.pop %v866
        %v875 = vrsqrt.pop %v867
        %v876 = vrsqrt.pop %v868
        %v877 = vrsqrt.pop %v869
        %v878 = vmul.f32 %v792, %v870
        %v879 = vmul.f32 %v797, %v871
        %v880 = vmul.f32 %v802, %v872
        %v881 = vmul.f32 %v807, %v873
        %v882 = vmul.f32 %v812, %v874
        %v883 = vmul.f32 %v817, %v875
        %v884 = vmul.f32 %v822, %v876
        %v885 = vmul.f32 %v827, %v877
        %v886 = vld [vmem:[%s5] sm:$0xff]
        %v887 = vld [vmem:[%s5 + $0x8] sm:$0xff]
        %v888 = vld [vmem:[%s5 + $0x10] sm:$0xff]
        %v889 = vld [vmem:[%s5 + $0x18] sm:$0xff]
        %v890 = vlaneseq
        %v891 = vshrl.u32 %v890, 7
        %v892 = vsub.s32 0, %v891
        %v893 = vrot.slane %v546, %v892
        %894 = vmatprep.subr.mxu0 0.0
        %895 = vmatpush1.msra.mxu0 %v886
        %896 = vmatprep.subr.mxu0 0.0
        %897 = vmatpush1.msra.mxu0 %v887
        %898 = vmatprep.subr.mxu0 0.0
        %899 = vmatpush1.msra.mxu0 %v888
        %900 = vmatprep.subr.mxu0 0.0
        %901 = vmatpush1.msra.mxu0 %v889
        %902 = vmatprep.subr.mxu0 0.0
        %903 = vmatpush1.msra.mxu0 0.0
        %904 = vmatprep.subr.mxu0 0.0
        %905 = vmatpush1.msra.mxu0 0.0
        %906 = vmatprep.subr.mxu0 0.0
        %907 = vmatpush1.msra.mxu0 0.0
        %908 = vmatprep.subr.mxu0 0.0
        %909 = vmatpush1.msra.mxu0 0.0
        %910 = vmatprep.subr.mxu0 0.0
        %911 = vmatpush1.msra.mxu0 0.0
        %912 = vmatprep.subr.mxu0 0.0
        %913 = vmatpush1.msra.mxu0 0.0
        %914 = vmatprep.subr.mxu0 0.0
        %915 = vmatpush1.msra.mxu0 0.0
        %916 = vmatprep.subr.mxu0 0.0
        %917 = vmatpush1.msra.mxu0 0.0
        %918 = vmatprep.subr.mxu0 0.0
        %919 = vmatpush1.msra.mxu0 0.0
        %920 = vmatprep.subr.mxu0 0.0
        %921 = vmatpush1.msra.mxu0 0.0
        %922 = vmatprep.subr.mxu0 0.0
        %923 = vmatpush1.msra.mxu0 0.0
        %924 = vmatprep.subr.mxu0 0.0
        %925 = vmatpush1.msra.mxu0 0.0
        %926 = vmatprep.subr.mxu0 0.0
        %927 = vmatpush1.msra.mxu0 0.0
        %928 = vmatprep.subr.mxu0 0.0
        %929 = vmatpush1.msra.mxu0 0.0
        %930 = vmatprep.subr.mxu0 0.0
        %931 = vmatpush1.msra.mxu0 0.0
        %932 = vmatprep.subr.mxu0 0.0
        %933 = vmatpush1.msra.mxu0 0.0
        %934 = vmatprep.subr.mxu0 0.0
        %935 = vmatpush1.msra.mxu0 0.0
        %936 = vmatprep.subr.mxu0 0.0
        %937 = vmatpush1.msra.mxu0 0.0
        %938 = vmatprep.subr.mxu0 0.0
        %939 = vmatpush1.msra.mxu0 0.0
        %940 = vmatprep.subr.mxu0 0.0
        %941 = vmatpush1.msra.mxu0 0.0
        %942 = vmatprep.subr.mxu0 0.0
        %943 = vmatpush1.msra.mxu0 0.0
        %944 = vmatprep.subr.mxu0 0.0
        %945 = vmatpush1.msra.mxu0 0.0
        %946 = vmatprep.subr.mxu0 0.0
        %947 = vmatpush1.msra.mxu0 0.0
        %948 = vmatprep.subr.mxu0 0.0
        %949 = vmatpush1.msra.mxu0 0.0
        %950 = vmatprep.subr.mxu0 0.0
        %951 = vmatpush1.msra.mxu0 0.0
        %952 = vmatprep.subr.mxu0 0.0
        %953 = vmatpush1.msra.mxu0 0.0
        %954 = vmatprep.subr.mxu0 0.0
        %955 = vmatpush1.msra.mxu0 0.0
        %956 = vmatprep.subr.mxu0 0.0
        %957 = vmatpush1.msra.mxu0 0.0
        %958 = vmatprep.mubr.f32.mxu0 0.0
        %959 = vmatmul.mubr.f32.gmra.mrb[0].mxu0 %v702
        %v960 = vpop.f32.mrb[0].mxu0
        %v961 = vadd.f32 %v893, %v960
        %v962 = vpop.f32.mrb[0].mxu0
        %963 = vmatprep.mubr.f32.mxu0 0.0
        %964 = vmatmul.mubr.f32.gmra.mrb[0].mxu0 %v705
        %v965 = vpop.f32.mrb[0].mxu0
        %v966 = vadd.f32 %v893, %v965
        %v967 = vpop.f32.mrb[0].mxu0
        %968 = vmatprep.mubr.f32.mxu0 0.0
        %969 = vmatmul.mubr.f32.gmra.mrb[0].mxu0 %v708
        %v970 = vpop.f32.mrb[0].mxu0
        %v971 = vadd.f32 %v893, %v970
        %v972 = vpop.f32.mrb[0].mxu0
        %973 = vmatprep.mubr.f32.mxu0 0.0
        %974 = vmatmul.mubr.f32.gmra.mrb[0].mxu0 %v711
        %v975 = vpop.f32.mrb[0].mxu0
        %v976 = vadd.f32 %v893, %v975
        %v977 = vpop.f32.mrb[0].mxu0
        %978 = vmatprep.mubr.f32.mxu0 0.0
        %979 = vmatmul.mubr.f32.gmra.mrb[0].mxu0 %v714
        %v980 = vpop.f32.mrb[0].mxu0
        %v981 = vadd.f32 %v893, %v980
        %v982 = vpop.f32.mrb[0].mxu0
        %983 = vmatprep.mubr.f32.mxu0 0.0
        %984 = vmatmul.mubr.f32.gmra.mrb[0].mxu0 %v717
        %v985 = vpop.f32.mrb[0].mxu0
        %v986 = vadd.f32 %v893, %v985
        %v987 = vpop.f32.mrb[0].mxu0
        %988 = vmatprep.mubr.f32.mxu0 0.0
        %989 = vmatmul.mubr.f32.gmra.mrb[0].mxu0 %v720
        %v990 = vpop.f32.mrb[0].mxu0
        %v991 = vadd.f32 %v893, %v990
        %v992 = vpop.f32.mrb[0].mxu0
        %993 = vmatprep.mubr.f32.mxu0 0.0
        %994 = vmatmul.mubr.f32.gmra.mrb[0].mxu0 %v723
        %v995 = vpop.f32.mrb[0].mxu0
        %v996 = vadd.f32 %v893, %v995
        %v997 = vpop.f32.mrb[0].mxu0
        %998 = vdwg.mxu0
        %v999 = vmul.f32 %v961, 0.5
        %v1000 = vmul.f32 %v966, 0.5
        %v1001 = vmul.f32 %v971, 0.5
        %v1002 = vmul.f32 %v976, 0.5
        %v1003 = vmul.f32 %v981, 0.5
        %v1004 = vmul.f32 %v986, 0.5
        %v1005 = vmul.f32 %v991, 0.5
        %v1006 = vmul.f32 %v996, 0.5
        %v1007 = vmul.f32 %v961, 0.70710677
        %v1008 = vmul.f32 %v966, 0.70710677
        %v1009 = vmul.f32 %v971, 0.70710677
        %v1010 = vmul.f32 %v976, 0.70710677
        %v1011 = vmul.f32 %v981, 0.70710677
        %v1012 = vmul.f32 %v986, 0.70710677
        %v1013 = vmul.f32 %v991, 0.70710677
        %v1014 = vmul.f32 %v996, 0.70710677
        %vm1015 = vcmp.ge.f32.partialorder %v1007, 0.0
        %vm1016 = vcmp.ge.f32.partialorder %v1008, 0.0
        %vm1017 = vcmp.ge.f32.partialorder %v1009, 0.0
        %vm1018 = vcmp.ge.f32.partialorder %v1010, 0.0
        %vm1019 = vcmp.ge.f32.partialorder %v1011, 0.0
        %vm1020 = vcmp.ge.f32.partialorder %v1012, 0.0
        %vm1021 = vcmp.ge.f32.partialorder %v1013, 0.0
        %vm1022 = vcmp.ge.f32.partialorder %v1014, 0.0
        %v1023 = vsel %vm1015, 1.0, -1.0
        %v1024 = vsel %vm1016, 1.0, -1.0
        %v1025 = vsel %vm1017, 1.0, -1.0
        %v1026 = vsel %vm1018, 1.0, -1.0
        %v1027 = vsel %vm1019, 1.0, -1.0
        %v1028 = vsel %vm1020, 1.0, -1.0
        %v1029 = vsel %vm1021, 1.0, -1.0
        %v1030 = vsel %vm1022, 1.0, -1.0
        %v1031 = vand.u32 2147483647, %v1007
        %v1032 = vand.u32 2147483647, %v1008
        %v1033 = vand.u32 2147483647, %v1009
        %v1034 = vand.u32 2147483647, %v1010
        %v1035 = vand.u32 2147483647, %v1011
        %v1036 = vand.u32 2147483647, %v1012
        %v1037 = vand.u32 2147483647, %v1013
        %v1038 = vand.u32 2147483647, %v1014
        %v1039 = vmul.f32 %v1031, 0.3275911
        %v1040 = vmul.f32 %v1032, 0.3275911
        %v1041 = vmul.f32 %v1033, 0.3275911
        %v1042 = vmul.f32 %v1034, 0.3275911
        %v1043 = vmul.f32 %v1035, 0.3275911
        %v1044 = vmul.f32 %v1036, 0.3275911
        %v1045 = vmul.f32 %v1037, 0.3275911
        %v1046 = vmul.f32 %v1038, 0.3275911
        %v1047 = vadd.f32 %v1039, 1.0
        %v1048 = vadd.f32 %v1040, 1.0
        %v1049 = vadd.f32 %v1041, 1.0
        %v1050 = vadd.f32 %v1042, 1.0
        %v1051 = vadd.f32 %v1043, 1.0
        %v1052 = vadd.f32 %v1044, 1.0
        %v1053 = vadd.f32 %v1045, 1.0
        %v1054 = vadd.f32 %v1046, 1.0
        %v1055 = vrcp.pop %v1047
        %v1056 = vmul.f32 1.0, %v1055
        %v1057 = vrcp.pop %v1048
        %v1058 = vmul.f32 1.0, %v1057
        %v1059 = vrcp.pop %v1049
        %v1060 = vmul.f32 1.0, %v1059
        %v1061 = vrcp.pop %v1050
        %v1062 = vmul.f32 1.0, %v1061
        %v1063 = vrcp.pop %v1051
        %v1064 = vmul.f32 1.0, %v1063
        %v1065 = vrcp.pop %v1052
        %v1066 = vmul.f32 1.0, %v1065
        %v1067 = vrcp.pop %v1053
        %v1068 = vmul.f32 1.0, %v1067
        %v1069 = vrcp.pop %v1054
        %v1070 = vmul.f32 1.0, %v1069
        %v1071 = vmul.f32 %v1056, 1.0614054
        %v1072 = vmul.f32 %v1058, 1.0614054
        %v1073 = vmul.f32 %v1060, 1.0614054
        %v1074 = vmul.f32 %v1062, 1.0614054
        %v1075 = vmul.f32 %v1064, 1.0614054
        %v1076 = vmul.f32 %v1066, 1.0614054
        %v1077 = vmul.f32 %v1068, 1.0614054
        %v1078 = vmul.f32 %v1070, 1.0614054
        %v1079 = vadd.f32 %v1071, -1.4531521
        %v1080 = vadd.f32 %v1072, -1.4531521
        %v1081 = vadd.f32 %v1073, -1.4531521
        %v1082 = vadd.f32 %v1074, -1.4531521
        %v1083 = vadd.f32 %v1075, -1.4531521
        %v1084 = vadd.f32 %v1076, -1.4531521
        %v1085 = vadd.f32 %v1077, -1.4531521
        %v1086 = vadd.f32 %v1078, -1.4531521
        %v1087 = vmul.f32 %v1079, %v1056
        %v1088 = vmul.f32 %v1080, %v1058
        %v1089 = vmul.f32 %v1081, %v1060
        %v1090 = vmul.f32 %v1082, %v1062
        %v1091 = vmul.f32 %v1083, %v1064
        %v1092 = vmul.f32 %v1084, %v1066
        %v1093 = vmul.f32 %v1085, %v1068
        %v1094 = vmul.f32 %v1086, %v1070
        %v1095 = vadd.f32 %v1087, 1.4214138
        %v1096 = vadd.f32 %v1088, 1.4214138
        %v1097 = vadd.f32 %v1089, 1.4214138
        %v1098 = vadd.f32 %v1090, 1.4214138
        %v1099 = vadd.f32 %v1091, 1.4214138
        %v1100 = vadd.f32 %v1092, 1.4214138
        %v1101 = vadd.f32 %v1093, 1.4214138
        %v1102 = vadd.f32 %v1094, 1.4214138
        %v1103 = vmul.f32 %v1095, %v1056
        %v1104 = vmul.f32 %v1096, %v1058
        %v1105 = vmul.f32 %v1097, %v1060
        %v1106 = vmul.f32 %v1098, %v1062
        %v1107 = vmul.f32 %v1099, %v1064
        %v1108 = vmul.f32 %v1100, %v1066
        %v1109 = vmul.f32 %v1101, %v1068
        %v1110 = vmul.f32 %v1102, %v1070
        %v1111 = vadd.f32 %v1103, -0.28449672
        %v1112 = vadd.f32 %v1104, -0.28449672
        %v1113 = vadd.f32 %v1105, -0.28449672
        %v1114 = vadd.f32 %v1106, -0.28449672
        %v1115 = vadd.f32 %v1107, -0.28449672
        %v1116 = vadd.f32 %v1108, -0.28449672
        %v1117 = vadd.f32 %v1109, -0.28449672
        %v1118 = vadd.f32 %v1110, -0.28449672
        %v1119 = vmul.f32 %v1111, %v1056
        %v1120 = vmul.f32 %v1112, %v1058
        %v1121 = vmul.f32 %v1113, %v1060
        %v1122 = vmul.f32 %v1114, %v1062
        %v1123 = vmul.f32 %v1115, %v1064
        %v1124 = vmul.f32 %v1116, %v1066
        %v1125 = vmul.f32 %v1117, %v1068
        %v1126 = vmul.f32 %v1118, %v1070
        %v1127 = vadd.f32 %v1119, 0.2548296
        %v1128 = vadd.f32 %v1120, 0.2548296
        %v1129 = vadd.f32 %v1121, 0.2548296
        %v1130 = vadd.f32 %v1122, 0.2548296
        %v1131 = vadd.f32 %v1123, 0.2548296
        %v1132 = vadd.f32 %v1124, 0.2548296
        %v1133 = vadd.f32 %v1125, 0.2548296
        %v1134 = vadd.f32 %v1126, 0.2548296
        %v1135 = vmul.f32 %v1127, %v1056
        %v1136 = vmul.f32 %v1128, %v1058
        %v1137 = vmul.f32 %v1129, %v1060
        %v1138 = vmul.f32 %v1130, %v1062
        %v1139 = vmul.f32 %v1131, %v1064
        %v1140 = vmul.f32 %v1132, %v1066
        %v1141 = vmul.f32 %v1133, %v1068
        %v1142 = vmul.f32 %v1134, %v1070
        %v1143 = vsub.f32 0.0, %v1031
        %v1144 = vsub.f32 0.0, %v1032
        %v1145 = vsub.f32 0.0, %v1033
        %v1146 = vsub.f32 0.0, %v1034
        %v1147 = vsub.f32 0.0, %v1035
        %v1148 = vsub.f32 0.0, %v1036
        %v1149 = vsub.f32 0.0, %v1037
        %v1150 = vsub.f32 0.0, %v1038
        %v1151 = vmul.f32 %v1143, %v1031
        %v1152 = vmul.f32 %v1144, %v1032
        %v1153 = vmul.f32 %v1145, %v1033
        %v1154 = vmul.f32 %v1146, %v1034
        %v1155 = vmul.f32 %v1147, %v1035
        %v1156 = vmul.f32 %v1148, %v1036
        %v1157 = vmul.f32 %v1149, %v1037
        %v1158 = vmul.f32 %v1150, %v1038
        %v1159 = vmul.f32 %v1151, 1.442695
        %v1160 = vpow.pop %v1159
        %v1161 = vmul.f32 %v1152, 1.442695
        %v1162 = vpow.pop %v1161
        %v1163 = vmul.f32 %v1153, 1.442695
        %v1164 = vpow.pop %v1163
        %v1165 = vmul.f32 %v1154, 1.442695
        %v1166 = vpow.pop %v1165
        %v1167 = vmul.f32 %v1155, 1.442695
        %v1168 = vpow.pop %v1167
        %v1169 = vmul.f32 %v1156, 1.442695
        %v1170 = vpow.pop %v1169
        %v1171 = vmul.f32 %v1157, 1.442695
        %v1172 = vpow.pop %v1171
        %v1173 = vmul.f32 %v1158, 1.442695
        %v1174 = vpow.pop %v1173
        %v1175 = vmul.f32 %v1135, %v1160
        %v1176 = vmul.f32 %v1136, %v1162
        %v1177 = vmul.f32 %v1137, %v1164
        %v1178 = vmul.f32 %v1138, %v1166
        %v1179 = vmul.f32 %v1139, %v1168
        %v1180 = vmul.f32 %v1140, %v1170
        %v1181 = vmul.f32 %v1141, %v1172
        %v1182 = vmul.f32 %v1142, %v1174
        %v1183 = vsub.f32 1.0, %v1175
        %v1184 = vsub.f32 1.0, %v1176
        %v1185 = vsub.f32 1.0, %v1177
        %v1186 = vsub.f32 1.0, %v1178
        %v1187 = vsub.f32 1.0, %v1179
        %v1188 = vsub.f32 1.0, %v1180
        %v1189 = vsub.f32 1.0, %v1181
        %v1190 = vsub.f32 1.0, %v1182
        %v1191 = vmul.f32 %v1023, %v1183
        %v1192 = vmul.f32 %v1024, %v1184
        %v1193 = vmul.f32 %v1025, %v1185
        %v1194 = vmul.f32 %v1026, %v1186
        %v1195 = vmul.f32 %v1027, %v1187
        %v1196 = vmul.f32 %v1028, %v1188
        %v1197 = vmul.f32 %v1029, %v1189
        %v1198 = vmul.f32 %v1030, %v1190
        %v1199 = vadd.f32 %v1191, 1.0
        %v1200 = vadd.f32 %v1192, 1.0
        %v1201 = vadd.f32 %v1193, 1.0
        %v1202 = vadd.f32 %v1194, 1.0
        %v1203 = vadd.f32 %v1195, 1.0
        %v1204 = vadd.f32 %v1196, 1.0
        %v1205 = vadd.f32 %v1197, 1.0
        %v1206 = vadd.f32 %v1198, 1.0
        %v1207 = vmul.f32 %v999, %v1199
        %v1208 = vmul.f32 %v1000, %v1200
        %v1209 = vmul.f32 %v1001, %v1201
        %v1210 = vmul.f32 %v1002, %v1202
        %v1211 = vmul.f32 %v1003, %v1203
        %v1212 = vmul.f32 %v1004, %v1204
        %v1213 = vmul.f32 %v1005, %v1205
        %v1214 = vmul.f32 %v1006, %v1206
        %v1216 = vsel %vm567, %v547, 0
        %v1219 = vsel %vm567, %v1207, 0
        %v1222 = vsel %vm567, %v1208, 0
        %v1225 = vsel %vm567, %v1209, 0
        %v1228 = vsel %vm567, %v1210, 0
        %v1231 = vsel %vm567, %v1211, 0
        %v1234 = vsel %vm567, %v1212, 0
        %v1237 = vsel %vm567, %v1213, 0
        %v1240 = vsel %vm567, %v1214, 0
        %1242 = vmatprep.subr.mxu0 0.0
        %1243 = vmatpush1.xpose.msra.mxu0 %v1219
        %1244 = vmatprep.subr.mxu0 0.0
        %1245 = vmatpush1.xpose.msra.mxu0 %v1222
        %1246 = vmatprep.subr.mxu0 0.0
        %1247 = vmatpush1.xpose.msra.mxu0 %v1225
        %1248 = vmatprep.subr.mxu0 0.0
        %1249 = vmatpush1.xpose.msra.mxu0 %v1228
        %1250 = vmatprep.subr.mxu0 0.0
        %1251 = vmatpush1.xpose.msra.mxu0 %v1231
        %1252 = vmatprep.subr.mxu0 0.0
        %1253 = vmatpush1.xpose.msra.mxu0 %v1234
        %1254 = vmatprep.subr.mxu0 0.0
        %1255 = vmatpush1.xpose.msra.mxu0 %v1237
        %1256 = vmatprep.subr.mxu0 0.0
        %1257 = vmatpush1.xpose.msra.mxu0 %v1240
        %1258 = vmatprep.subr.mxu0 0.0
        %1259 = vmatpush1.xpose.msra.mxu0 0.0
        %1260 = vmatprep.subr.mxu0 0.0
        %1261 = vmatpush1.xpose.msra.mxu0 0.0
        %1262 = vmatprep.subr.mxu0 0.0
        %1263 = vmatpush1.xpose.msra.mxu0 0.0
        %1264 = vmatprep.subr.mxu0 0.0
        %1265 = vmatpush1.xpose.msra.mxu0 0.0
        %1266 = vmatprep.subr.mxu0 0.0
        %1267 = vmatpush1.xpose.msra.mxu0 0.0
        %1268 = vmatprep.subr.mxu0 0.0
        %1269 = vmatpush1.xpose.msra.mxu0 0.0
        %1270 = vmatprep.subr.mxu0 0.0
        %1271 = vmatpush1.xpose.msra.mxu0 0.0
        %1272 = vmatprep.subr.mxu0 0.0
        %1273 = vmatpush1.xpose.msra.mxu0 0.0
        %1274 = vmatprep.subr.mxu0 0.0
        %1275 = vmatpush1.xpose.msra.mxu0 0.0
        %1276 = vmatprep.subr.mxu0 0.0
        %1277 = vmatpush1.xpose.msra.mxu0 0.0
        %1278 = vmatprep.subr.mxu0 0.0
        %1279 = vmatpush1.xpose.msra.mxu0 0.0
        %1280 = vmatprep.subr.mxu0 0.0
        %1281 = vmatpush1.xpose.msra.mxu0 0.0
        %1282 = vmatprep.subr.mxu0 0.0
        %1283 = vmatpush1.xpose.msra.mxu0 0.0
        %1284 = vmatprep.subr.mxu0 0.0
        %1285 = vmatpush1.xpose.msra.mxu0 0.0
        %1286 = vmatprep.subr.mxu0 0.0
        %1287 = vmatpush1.xpose.msra.mxu0 0.0
        %1288 = vmatprep.subr.mxu0 0.0
        %1289 = vmatpush1.xpose.msra.mxu0 0.0
        %1290 = vmatprep.subr.mxu0 0.0
        %1291 = vmatpush1.xpose.msra.mxu0 0.0
        %1292 = vmatprep.subr.mxu0 0.0
        %1293 = vmatpush1.xpose.msra.mxu0 0.0
        %1294 = vmatprep.subr.mxu0 0.0
        %1295 = vmatpush1.xpose.msra.mxu0 0.0
        %1296 = vmatprep.subr.mxu0 0.0
        %1297 = vmatpush1.xpose.msra.mxu0 0.0
        %1298 = vmatprep.subr.mxu0 0.0
        %1299 = vmatpush1.xpose.msra.mxu0 0.0
        %1300 = vmatprep.subr.mxu0 0.0
        %1301 = vmatpush1.xpose.msra.mxu0 0.0
        %1302 = vmatprep.subr.mxu0 0.0
        %1303 = vmatpush1.xpose.msra.mxu0 0.0
        %1304 = vmatprep.subr.mxu0 0.0
        %1305 = vmatpush1.xpose.msra.mxu0 0.0
        %1306 = vmatprep.mubr.f32.mxu0 0.0
        %1307 = vmatmul.mubr.f32.gmra.mrb[0].mxu0 %v1216
        %v1308 = vpop.f32.mrb[0].mxu0
        %v1309 = vadd.f32 0.0, %v1308
        %v1310 = vpop.f32.mrb[0].mxu0
        %1311 = vdwg.mxu0
        %vm1312 = vcmask 516096
        %v1313 = vsel %vm1312, %v1309, -inf
        %1314 = vmax.xlane.f32.xlu0 %v1313
        %v1315 = vpop.xlane.xlu0 %1314
        %v1316 = vsub.f32 %v1309, %v1315
        %v1317 = vmul.f32 %v1316, 1.442695
        %v1318 = vpow.pop %v1317
        %v1319 = vsel %vm1312, %v1318, 0.0
        %1320 = vadd.xlane.f32.xlu0 %v1319
        %v1321 = vpop.xlane.xlu0 %1320
        %v1322 = vrcp.pop %v1321
        %v1323 = vmul.f32 %v1318, %v1322
        %v1324 = vmul.f32 %v1323, 4.0
        %v1325 = vmax.f32 %v1324, 1e-30
        %v1326 = vlog2.pop %v1325
        %v1327 = vmul.f32 %v1326, 0.6931472
        %v1328 = vld [vmem:[%s477] sm:$0xf]
        %v1329 = vmul.f32 %v549, 1.442695
        %v1330 = vpow.pop %v1329
        %v1331 = vld [vmem:[%s468] sm:$0xf]
        %v1332 = vlaneseq
        %v1333 = vshrl.u32 %v1332, 7
        %v1334 = vsub.s32 0, %v1333
        %v1335 = vrot.slane %v1330, %v1334
        %v1336 = vmul.f32 %v1335, %v1331
        %v1337 = vlaneseq
        %v1338 = vshrl.u32 %v1337, 7
        %v1339 = vsub.s32 0, %v1338
        %v1340 = vrot.slane %v548, %v1339
        %v1341 = vadd.f32 %v1340, %v1336
        %v1342 = vlaneseq
        %v1343 = vshrl.u32 %v1342, 7
        %v1344 = vsub.s32 0, %v1343
        %v1345 = vrot.slane %v550, %v1344
        %v1346 = vlaneseq
        %v1347 = vshrl.u32 %v1346, 7
        %v1348 = vsub.s32 0, %v1347
        %v1349 = vrot.slane %v551, %v1348
        %v1350 = vlaneseq
        %v1351 = vshrl.u32 %v1350, 7
        %v1352 = vsub.s32 0, %v1351
        %v1353 = vrot.slane %v552, %v1352
        %v1354 = vlaneseq
        %v1355 = vshrl.u32 %v1354, 7
        %v1356 = vsub.s32 0, %v1355
        %v1357 = vrot.slane %v553, %v1356
        %v1358 = vlaneseq
        %v1359 = vshrl.u32 %v1358, 7
        %v1360 = vsub.s32 0, %v1359
        %v1361 = vrot.slane %v554, %v1360
        %v1362 = vlaneseq
        %v1363 = vshrl.u32 %v1362, 7
        %v1364 = vsub.s32 0, %v1363
        %v1365 = vrot.slane %v555, %v1364
        %v1366 = vlaneseq
        %v1367 = vshrl.u32 %v1366, 7
        %v1368 = vsub.s32 0, %v1367
        %v1369 = vrot.slane %v556, %v1368
        %v1370 = vlaneseq
        %v1371 = vshrl.u32 %v1370, 7
        %v1372 = vsub.s32 0, %v1371
        %v1373 = vrot.slane %v557, %v1372
        %v1374 = vlaneseq
        %v1375 = vshrl.u32 %v1374, 7
        %v1376 = vsub.s32 0, %v1375
        %v1377 = vrot.slane %v558, %v1376
        %v1378 = vld [vmem:[%s6] sm:$0xff]
        %v1379 = vld [vmem:[%s6 + $0x8] sm:$0xff]
        %v1380 = vld [vmem:[%s6 + $0x10] sm:$0xff]
        %v1381 = vld [vmem:[%s6 + $0x18] sm:$0xff]
        %v1382 = vld [vmem:[%s7] sm:$0xff]
        %v1383 = vld [vmem:[%s7 + $0x8] sm:$0xff]
        %v1384 = vld [vmem:[%s7 + $0x10] sm:$0xff]
        %v1385 = vld [vmem:[%s7 + $0x18] sm:$0xff]
        %v1386 = vld [vmem:[%s8] sm:$0xff]
        %v1387 = vld [vmem:[%s8 + $0x8] sm:$0xff]
        %v1388 = vld [vmem:[%s8 + $0x10] sm:$0xff]
        %v1389 = vld [vmem:[%s8 + $0x18] sm:$0xff]
        %v1390 = vld [vmem:[%s9] sm:$0xff]
        %v1391 = vld [vmem:[%s9 + $0x8] sm:$0xff]
        %v1392 = vld [vmem:[%s9 + $0x10] sm:$0xff]
        %v1393 = vld [vmem:[%s9 + $0x18] sm:$0xff]
        %v1394 = vld [vmem:[%s10] sm:$0xff]
        %v1395 = vld [vmem:[%s10 + $0x8] sm:$0xff]
        %v1396 = vld [vmem:[%s10 + $0x10] sm:$0xff]
        %v1397 = vld [vmem:[%s10 + $0x18] sm:$0xff]
        %v1398 = vld [vmem:[%s11] sm:$0xff]
        %v1399 = vld [vmem:[%s11 + $0x8] sm:$0xff]
        %v1400 = vld [vmem:[%s11 + $0x10] sm:$0xff]
        %v1401 = vld [vmem:[%s11 + $0x18] sm:$0xff]
        %v1402 = vld [vmem:[#allocation8] sm:$0xff]
        %v1403 = vld [vmem:[#allocation8 + $0x8] sm:$0xff]
        %v1404 = vld [vmem:[#allocation8 + $0x10] sm:$0xff]
        %v1405 = vld [vmem:[#allocation8 + $0x18] sm:$0xff]
        loop: start=0, step=1, limit=2
        $region89: #{tpu_custom_call.1} parent=71 // loop_pre_header
          _
        $region90: #{tpu_custom_call.1} parent=71 // loop_header
          %s1407 = sphi 0, %s1411
          %p1408 = scmp.ge.s32.totalorder %s1407, 2
          %v1412 = vphi %v1341, %v3315
        $region91: #{tpu_custom_call.1} parent=71 // loop_header_branch
          %1410 = sbr.rel (%p1408) target = $region95
        $region92: #{tpu_custom_call.1} parent=71 // loop_body
          %vm1413 = vcmask 257024
          %v1414 = vsel %vm1413, %v1412, 0.0
          %1415 = vadd.xlane.f32.xlu0 %v1414
          %v1416 = vpop.xlane.xlu0 %1415
          %v1417 = vmul.f32 %v1416, %v592
          %v1418 = vsub.f32 %v1412, %v1417
          %v1419 = vmul.f32 %v1418, %v1418
          %v1420 = vsel %vm1413, %v1419, 0.0
          %1421 = vadd.xlane.f32.xlu0 %v1420
          %v1422 = vpop.xlane.xlu0 %1421
          %v1423 = vmul.f32 %v1422, %v592
          %v1424 = vadd.f32 %v1423, 1e-05
          %v1425 = vrsqrt.pop %v1424
          %v1426 = vmul.f32 %v1418, %v1425
          %v1427 = vmul.f32 %v1426, %v1345
          %v1428 = vadd.f32 %v1427, %v1349
          %v1430 = vsel %vm567, %v1428, 0
          %1432 = vmatprep.subr.mxu0 0.0
          %1433 = vmatpush1.msra.mxu0 %v1378
          %1434 = vmatprep.subr.mxu0 0.0
          %1435 = vmatpush1.msra.mxu0 %v1379
          %1436 = vmatprep.subr.mxu0 0.0
          %1437 = vmatpush1.msra.mxu0 %v1380
          %1438 = vmatprep.subr.mxu0 0.0
          %1439 = vmatpush1.msra.mxu0 %v1381
          %1440 = vmatprep.subr.mxu0 0.0
          %1441 = vmatpush1.msra.mxu0 0.0
          %1442 = vmatprep.subr.mxu0 0.0
          %1443 = vmatpush1.msra.mxu0 0.0
          %1444 = vmatprep.subr.mxu0 0.0
          %1445 = vmatpush1.msra.mxu0 0.0
          %1446 = vmatprep.subr.mxu0 0.0
          %1447 = vmatpush1.msra.mxu0 0.0
          %1448 = vmatprep.subr.mxu0 0.0
          %1449 = vmatpush1.msra.mxu0 0.0
          %1450 = vmatprep.subr.mxu0 0.0
          %1451 = vmatpush1.msra.mxu0 0.0
          %1452 = vmatprep.subr.mxu0 0.0
          %1453 = vmatpush1.msra.mxu0 0.0
          %1454 = vmatprep.subr.mxu0 0.0
          %1455 = vmatpush1.msra.mxu0 0.0
          %1456 = vmatprep.subr.mxu0 0.0
          %1457 = vmatpush1.msra.mxu0 0.0
          %1458 = vmatprep.subr.mxu0 0.0
          %1459 = vmatpush1.msra.mxu0 0.0
          %1460 = vmatprep.subr.mxu0 0.0
          %1461 = vmatpush1.msra.mxu0 0.0
          %1462 = vmatprep.subr.mxu0 0.0
          %1463 = vmatpush1.msra.mxu0 0.0
          %1464 = vmatprep.subr.mxu0 0.0
          %1465 = vmatpush1.msra.mxu0 0.0
          %1466 = vmatprep.subr.mxu0 0.0
          %1467 = vmatpush1.msra.mxu0 0.0
          %1468 = vmatprep.subr.mxu0 0.0
          %1469 = vmatpush1.msra.mxu0 0.0
          %1470 = vmatprep.subr.mxu0 0.0
          %1471 = vmatpush1.msra.mxu0 0.0
          %1472 = vmatprep.subr.mxu0 0.0
          %1473 = vmatpush1.msra.mxu0 0.0
          %1474 = vmatprep.subr.mxu0 0.0
          %1475 = vmatpush1.msra.mxu0 0.0
          %1476 = vmatprep.subr.mxu0 0.0
          %1477 = vmatpush1.msra.mxu0 0.0
          %1478 = vmatprep.subr.mxu0 0.0
          %1479 = vmatpush1.msra.mxu0 0.0
          %1480 = vmatprep.subr.mxu0 0.0
          %1481 = vmatpush1.msra.mxu0 0.0
          %1482 = vmatprep.subr.mxu0 0.0
          %1483 = vmatpush1.msra.mxu0 0.0
          %1484 = vmatprep.subr.mxu0 0.0
          %1485 = vmatpush1.msra.mxu0 0.0
          %1486 = vmatprep.subr.mxu0 0.0
          %1487 = vmatpush1.msra.mxu0 0.0
          %1488 = vmatprep.subr.mxu0 0.0
          %1489 = vmatpush1.msra.mxu0 0.0
          %1490 = vmatprep.subr.mxu0 0.0
          %1491 = vmatpush1.msra.mxu0 0.0
          %1492 = vmatprep.subr.mxu0 0.0
          %1493 = vmatpush1.msra.mxu0 0.0
          %1494 = vmatprep.subr.mxu0 0.0
          %1495 = vmatpush1.msra.mxu0 0.0
          %1496 = vmatprep.mubr.f32.mxu0 0.0
          %1497 = vmatmul.mubr.f32.gmra.mrb[0].mxu0 %v1430
          %v1498 = vpop.f32.mrb[0].mxu0
          %v1499 = vadd.f32 %v1353, %v1498
          %v1500 = vpop.f32.mrb[0].mxu0
          %1501 = vdwg.mxu0
          %v1502 = vmul.f32 %v1499, 0.5
          %v1503 = vmul.f32 %v1499, 0.70710677
          %vm1504 = vcmp.ge.f32.partialorder %v1503, 0.0
          %v1505 = vsel %vm1504, 1.0, -1.0
          %v1506 = vand.u32 2147483647, %v1503
          %v1507 = vmul.f32 %v1506, 0.3275911
          %v1508 = vadd.f32 %v1507, 1.0
          %v1509 = vrcp.pop %v1508
          %v1510 = vmul.f32 1.0, %v1509
          %v1511 = vmul.f32 %v1510, 1.0614054
          %v1512 = vadd.f32 %v1511, -1.4531521
          %v1513 = vmul.f32 %v1512, %v1510
          %v1514 = vadd.f32 %v1513, 1.4214138
          %v1515 = vmul.f32 %v1514, %v1510
          %v1516 = vadd.f32 %v1515, -0.28449672
          %v1517 = vmul.f32 %v1516, %v1510
          %v1518 = vadd.f32 %v1517, 0.2548296
          %v1519 = vmul.f32 %v1518, %v1510
          %v1520 = vsub.f32 0.0, %v1506
          %v1521 = vmul.f32 %v1520, %v1506
          %v1522 = vmul.f32 %v1521, 1.442695
          %v1523 = vpow.pop %v1522
          %v1524 = vmul.f32 %v1519, %v1523
          %v1525 = vsub.f32 1.0, %v1524
          %v1526 = vmul.f32 %v1505, %v1525
          %v1527 = vadd.f32 %v1526, 1.0
          %v1528 = vmul.f32 %v1502, %v1527
          %v1530 = vsel %vm567, %v1528, 0
          %1532 = vmatprep.subr.mxu0 0.0
          %1533 = vmatpush1.msra.mxu0 %v1382
          %1534 = vmatprep.subr.mxu0 0.0
          %1535 = vmatpush1.msra.mxu0 %v1383
          %1536 = vmatprep.subr.mxu0 0.0
          %1537 = vmatpush1.msra.mxu0 %v1384
          %1538 = vmatprep.subr.mxu0 0.0
          %1539 = vmatpush1.msra.mxu0 %v1385
          %1540 = vmatprep.subr.mxu0 0.0
          %1541 = vmatpush1.msra.mxu0 0.0
          %1542 = vmatprep.subr.mxu0 0.0
          %1543 = vmatpush1.msra.mxu0 0.0
          %1544 = vmatprep.subr.mxu0 0.0
          %1545 = vmatpush1.msra.mxu0 0.0
          %1546 = vmatprep.subr.mxu0 0.0
          %1547 = vmatpush1.msra.mxu0 0.0
          %1548 = vmatprep.subr.mxu0 0.0
          %1549 = vmatpush1.msra.mxu0 0.0
          %1550 = vmatprep.subr.mxu0 0.0
          %1551 = vmatpush1.msra.mxu0 0.0
          %1552 = vmatprep.subr.mxu0 0.0
          %1553 = vmatpush1.msra.mxu0 0.0
          %1554 = vmatprep.subr.mxu0 0.0
          %1555 = vmatpush1.msra.mxu0 0.0
          %1556 = vmatprep.subr.mxu0 0.0
          %1557 = vmatpush1.msra.mxu0 0.0
          %1558 = vmatprep.subr.mxu0 0.0
          %1559 = vmatpush1.msra.mxu0 0.0
          %1560 = vmatprep.subr.mxu0 0.0
          %1561 = vmatpush1.msra.mxu0 0.0
          %1562 = vmatprep.subr.mxu0 0.0
          %1563 = vmatpush1.msra.mxu0 0.0
          %1564 = vmatprep.subr.mxu0 0.0
          %1565 = vmatpush1.msra.mxu0 0.0
          %1566 = vmatprep.subr.mxu0 0.0
          %1567 = vmatpush1.msra.mxu0 0.0
          %1568 = vmatprep.subr.mxu0 0.0
          %1569 = vmatpush1.msra.mxu0 0.0
          %1570 = vmatprep.subr.mxu0 0.0
          %1571 = vmatpush1.msra.mxu0 0.0
          %1572 = vmatprep.subr.mxu0 0.0
          %1573 = vmatpush1.msra.mxu0 0.0
          %1574 = vmatprep.subr.mxu0 0.0
          %1575 = vmatpush1.msra.mxu0 0.0
          %1576 = vmatprep.subr.mxu0 0.0
          %1577 = vmatpush1.msra.mxu0 0.0
          %1578 = vmatprep.subr.mxu0 0.0
          %1579 = vmatpush1.msra.mxu0 0.0
          %1580 = vmatprep.subr.mxu0 0.0
          %1581 = vmatpush1.msra.mxu0 0.0
          %1582 = vmatprep.subr.mxu0 0.0
          %1583 = vmatpush1.msra.mxu0 0.0
          %1584 = vmatprep.subr.mxu0 0.0
          %1585 = vmatpush1.msra.mxu0 0.0
          %1586 = vmatprep.subr.mxu0 0.0
          %1587 = vmatpush1.msra.mxu0 0.0
          %1588 = vmatprep.subr.mxu0 0.0
          %1589 = vmatpush1.msra.mxu0 0.0
          %1590 = vmatprep.subr.mxu0 0.0
          %1591 = vmatpush1.msra.mxu0 0.0
          %1592 = vmatprep.subr.mxu0 0.0
          %1593 = vmatpush1.msra.mxu0 0.0
          %1594 = vmatprep.subr.mxu0 0.0
          %1595 = vmatpush1.msra.mxu0 0.0
          %1596 = vmatprep.mubr.f32.mxu0 0.0
          %1597 = vmatmul.mubr.f32.gmra.mrb[0].mxu0 %v1530
          %v1598 = vpop.f32.mrb[0].mxu0
          %v1599 = vadd.f32 0.0, %v1598
          %v1600 = vpop.f32.mrb[0].mxu0
          %1601 = vdwg.mxu0
          %vm1602 = vcmask 3072
          %v1603 = vsel %vm1602, %v1599, -inf
          %v1604 = vrot.slane %v1603, 4
          %v1605 = vmax.f32 %v1603, %v1604
          %v1606 = vrot.slane %v1605, 2
          %v1607 = vmax.f32 %v1605, %v1606
          %v1608 = vrot.slane %v1607, 1
          %v1609 = vmax.f32 %v1607, %v1608
          %v1610 = vsub.f32 %v1599, %v1609
          %v1611 = vmul.f32 %v1610, 1.442695
          %v1612 = vpow.pop %v1611
          %v1613 = vsel %vm1602, %v1612, 0.0
          %v1614 = vrot.slane %v1613, 4
          %v1615 = vadd.f32 %v1613, %v1614
          %v1616 = vrot.slane %v1615, 2
          %v1617 = vadd.f32 %v1615, %v1616
          %v1618 = vrot.slane %v1617, 1
          %v1619 = vadd.f32 %v1617, %v1618
          %v1620 = vrcp.pop %v1619
          %v1621 = vmul.f32 %v1612, %v1620
          %v1622 = vmul.f32 %v1621, 4.0
          %v1623 = vmax.f32 %v1622, 1e-30
          %v1624 = vlog2.pop %v1623
          %v1625 = vmul.f32 %v1624, 0.6931472
          %1626 = vmatprep.subr.mxu0 0.0
          %1627 = vmatpush1.msra.mxu0 %v1386
          %1628 = vmatprep.subr.mxu0 0.0
          %1629 = vmatpush1.msra.mxu0 %v1387
          %1630 = vmatprep.subr.mxu0 0.0
          %1631 = vmatpush1.msra.mxu0 %v1388
          %1632 = vmatprep.subr.mxu0 0.0
          %1633 = vmatpush1.msra.mxu0 %v1389
          %1634 = vmatprep.subr.mxu0 0.0
          %1635 = vmatpush1.msra.mxu0 0.0
          %1636 = vmatprep.subr.mxu0 0.0
          %1637 = vmatpush1.msra.mxu0 0.0
          %1638 = vmatprep.subr.mxu0 0.0
          %1639 = vmatpush1.msra.mxu0 0.0
          %1640 = vmatprep.subr.mxu0 0.0
          %1641 = vmatpush1.msra.mxu0 0.0
          %1642 = vmatprep.subr.mxu0 0.0
          %1643 = vmatpush1.msra.mxu0 0.0
          %1644 = vmatprep.subr.mxu0 0.0
          %1645 = vmatpush1.msra.mxu0 0.0
          %1646 = vmatprep.subr.mxu0 0.0
          %1647 = vmatpush1.msra.mxu0 0.0
          %1648 = vmatprep.subr.mxu0 0.0
          %1649 = vmatpush1.msra.mxu0 0.0
          %1650 = vmatprep.subr.mxu0 0.0
          %1651 = vmatpush1.msra.mxu0 0.0
          %1652 = vmatprep.subr.mxu0 0.0
          %1653 = vmatpush1.msra.mxu0 0.0
          %1654 = vmatprep.subr.mxu0 0.0
          %1655 = vmatpush1.msra.mxu0 0.0
          %1656 = vmatprep.subr.mxu0 0.0
          %1657 = vmatpush1.msra.mxu0 0.0
          %1658 = vmatprep.subr.mxu0 0.0
          %1659 = vmatpush1.msra.mxu0 0.0
          %1660 = vmatprep.subr.mxu0 0.0
          %1661 = vmatpush1.msra.mxu0 0.0
          %1662 = vmatprep.subr.mxu0 0.0
          %1663 = vmatpush1.msra.mxu0 0.0
          %1664 = vmatprep.subr.mxu0 0.0
          %1665 = vmatpush1.msra.mxu0 0.0
          %1666 = vmatprep.subr.mxu0 0.0
          %1667 = vmatpush1.msra.mxu0 0.0
          %1668 = vmatprep.subr.mxu0 0.0
          %1669 = vmatpush1.msra.mxu0 0.0
          %1670 = vmatprep.subr.mxu0 0.0
          %1671 = vmatpush1.msra.mxu0 0.0
          %1672 = vmatprep.subr.mxu0 0.0
          %1673 = vmatpush1.msra.mxu0 0.0
          %1674 = vmatprep.subr.mxu0 0.0
          %1675 = vmatpush1.msra.mxu0 0.0
          %1676 = vmatprep.subr.mxu0 0.0
          %1677 = vmatpush1.msra.mxu0 0.0
          %1678 = vmatprep.subr.mxu0 0.0
          %1679 = vmatpush1.msra.mxu0 0.0
          %1680 = vmatprep.subr.mxu0 0.0
          %1681 = vmatpush1.msra.mxu0 0.0
          %1682 = vmatprep.subr.mxu0 0.0
          %1683 = vmatpush1.msra.mxu0 0.0
          %1684 = vmatprep.subr.mxu0 0.0
          %1685 = vmatpush1.msra.mxu0 0.0
          %1686 = vmatprep.subr.mxu0 0.0
          %1687 = vmatpush1.msra.mxu0 0.0
          %1688 = vmatprep.subr.mxu0 0.0
          %1689 = vmatpush1.msra.mxu0 0.0
          %1690 = vmatprep.mubr.f32.mxu0 0.0
          %1691 = vmatmul.mubr.f32.gmra.mrb[0].mxu0 %v1430
          %v1692 = vpop.f32.mrb[0].mxu0
          %v1693 = vadd.f32 0.0, %v1692
          %v1694 = vpop.f32.mrb[0].mxu0
          %1695 = vdwg.mxu0
          %v1696 = vmul.f32 %v1693, %v1693
          %v1697 = vsel %vm1413, %v1696, 0.0
          %1698 = vadd.xlane.f32.xlu0 %v1697
          %v1699 = vpop.xlane.xlu0 %1698
          %v1700 = vadd.f32 %v1699, 1e-12
          %v1701 = vrsqrt.pop %v1700
          %v1702 = vmul.f32 %v1693, %v1701
          %v1704 = vsel %vm567, %v1702, 0
          %v1707 = vsel %vm567, %v878, 0
          %v1710 = vsel %vm567, %v879, 0
          %v1713 = vsel %vm567, %v880, 0
          %v1716 = vsel %vm567, %v881, 0
          %v1719 = vsel %vm567, %v882, 0
          %v1722 = vsel %vm567, %v883, 0
          %v1725 = vsel %vm567, %v884, 0
          %v1728 = vsel %vm567, %v885, 0
          %1730 = vmatprep.subr.mxu0 0.0
          %1731 = vmatpush1.xpose.msra.mxu0 %v1707
          %1732 = vmatprep.subr.mxu0 0.0
          %1733 = vmatpush1.xpose.msra.mxu0 %v1710
          %1734 = vmatprep.subr.mxu0 0.0
          %1735 = vmatpush1.xpose.msra.mxu0 %v1713
          %1736 = vmatprep.subr.mxu0 0.0
          %1737 = vmatpush1.xpose.msra.mxu0 %v1716
          %1738 = vmatprep.subr.mxu0 0.0
          %1739 = vmatpush1.xpose.msra.mxu0 %v1719
          %1740 = vmatprep.subr.mxu0 0.0
          %1741 = vmatpush1.xpose.msra.mxu0 %v1722
          %1742 = vmatprep.subr.mxu0 0.0
          %1743 = vmatpush1.xpose.msra.mxu0 %v1725
          %1744 = vmatprep.subr.mxu0 0.0
          %1745 = vmatpush1.xpose.msra.mxu0 %v1728
          %1746 = vmatprep.subr.mxu0 0.0
          %1747 = vmatpush1.xpose.msra.mxu0 0.0
          %1748 = vmatprep.subr.mxu0 0.0
          %1749 = vmatpush1.xpose.msra.mxu0 0.0
          %1750 = vmatprep.subr.mxu0 0.0
          %1751 = vmatpush1.xpose.msra.mxu0 0.0
          %1752 = vmatprep.subr.mxu0 0.0
          %1753 = vmatpush1.xpose.msra.mxu0 0.0
          %1754 = vmatprep.subr.mxu0 0.0
          %1755 = vmatpush1.xpose.msra.mxu0 0.0
          %1756 = vmatprep.subr.mxu0 0.0
          %1757 = vmatpush1.xpose.msra.mxu0 0.0
          %1758 = vmatprep.subr.mxu0 0.0
          %1759 = vmatpush1.xpose.msra.mxu0 0.0
          %1760 = vmatprep.subr.mxu0 0.0
          %1761 = vmatpush1.xpose.msra.mxu0 0.0
          %1762 = vmatprep.subr.mxu0 0.0
          %1763 = vmatpush1.xpose.msra.mxu0 0.0
          %1764 = vmatprep.subr.mxu0 0.0
          %1765 = vmatpush1.xpose.msra.mxu0 0.0
          %1766 = vmatprep.subr.mxu0 0.0
          %1767 = vmatpush1.xpose.msra.mxu0 0.0
          %1768 = vmatprep.subr.mxu0 0.0
          %1769 = vmatpush1.xpose.msra.mxu0 0.0
          %1770 = vmatprep.subr.mxu0 0.0
          %1771 = vmatpush1.xpose.msra.mxu0 0.0
          %1772 = vmatprep.subr.mxu0 0.0
          %1773 = vmatpush1.xpose.msra.mxu0 0.0
          %1774 = vmatprep.subr.mxu0 0.0
          %1775 = vmatpush1.xpose.msra.mxu0 0.0
          %1776 = vmatprep.subr.mxu0 0.0
          %1777 = vmatpush1.xpose.msra.mxu0 0.0
          %1778 = vmatprep.subr.mxu0 0.0
          %1779 = vmatpush1.xpose.msra.mxu0 0.0
          %1780 = vmatprep.subr.mxu0 0.0
          %1781 = vmatpush1.xpose.msra.mxu0 0.0
          %1782 = vmatprep.subr.mxu0 0.0
          %1783 = vmatpush1.xpose.msra.mxu0 0.0
          %1784 = vmatprep.subr.mxu0 0.0
          %1785 = vmatpush1.xpose.msra.mxu0 0.0
          %1786 = vmatprep.subr.mxu0 0.0
          %1787 = vmatpush1.xpose.msra.mxu0 0.0
          %1788 = vmatprep.subr.mxu0 0.0
          %1789 = vmatpush1.xpose.msra.mxu0 0.0
          %1790 = vmatprep.subr.mxu0 0.0
          %1791 = vmatpush1.xpose.msra.mxu0 0.0
          %1792 = vmatprep.subr.mxu0 0.0
          %1793 = vmatpush1.xpose.msra.mxu0 0.0
          %1794 = vmatprep.mubr.f32.mxu0 0.0
          %1795 = vmatmul.mubr.f32.gmra.mrb[0].mxu0 %v1704
          %v1796 = vpop.f32.mrb[0].mxu0
          %v1797 = vadd.f32 0.0, %v1796
          %v1798 = vpop.f32.mrb[0].mxu0
          %1799 = vdwg.mxu0
          %v1800 = vsub.f32 1.0, %v1797
          %v1801 = vmul.f32 %v1800, 4.0
          %v1802 = vmul.f32 %v1328, 0.001
          %v1803 = vadd.f32 %v1801, %v1802
          %v1804 = vsub.f32 0.0, %v1803
          %v1805 = vadd.f32 %v1804, 0.0
          %vm1806 = vcmask 519168
          %v1807 = vsel %vm1806, %v1805, -inf
          %v1808 = vrot.slane %v1807, 4
          %v1809 = vmax.f32 %v1807, %v1808
          %v1810 = vrot.slane %v1809, 2
          %v1811 = vmax.f32 %v1809, %v1810
          %v1812 = vrot.slane %v1811, 1
          %v1813 = vmax.f32 %v1811, %v1812
          %v1814 = vsub.f32 %v1805, %v1813
          %v1815 = vmul.f32 %v1814, 1.442695
          %v1816 = vpow.pop %v1815
          %v1817 = vsel %vm1806, %v1816, 0.0
          %v1818 = vrot.slane %v1817, 4
          %v1819 = vadd.f32 %v1817, %v1818
          %v1820 = vrot.slane %v1819, 2
          %v1821 = vadd.f32 %v1819, %v1820
          %v1822 = vrot.slane %v1821, 1
          %v1823 = vadd.f32 %v1821, %v1822
          %v1824 = vlog2.pop %v1823
          %v1825 = vmul.f32 %v1824, 0.6931472
          %v1826 = vadd.f32 %v1813, %v1825
          %v1827 = vsub.f32 %v1327, %v1826
          %v1828 = vlaneseq
          %v1829 = vshrl.u32 %v1828, 7
          %v1830 = vsub.s32 0, %v1829
          %v1831 = vrot.slane %v1827, %v1830
          %v1832 = vadd.f32 %v1804, %v1831
          %v1833 = vsel %vm1806, %v1832, -inf
          %1834 = vmax.xlane.f32.xlu0 %v1833
          %v1835 = vpop.xlane.xlu0 %1834
          %v1836 = vsub.f32 %v1832, %v1835
          %v1837 = vmul.f32 %v1836, 1.442695
          %v1838 = vpow.pop %v1837
          %v1839 = vsel %vm1806, %v1838, 0.0
          %1840 = vadd.xlane.f32.xlu0 %v1839
          %v1841 = vpop.xlane.xlu0 %1840
          %v1842 = vlog2.pop %v1841
          %v1843 = vmul.f32 %v1842, 0.6931472
          %v1844 = vadd.f32 %v1835, %v1843
          %v1845 = vsub.f32 %v1625, %v1844
          %1847 = vset.pattern.permute.xlu0 0
          %1848 = vperm.xlu0 %1847, %v1845
          %v1849 = vpop.permute.xlu0 %1848
          %v1851 = vadd.f32 %v1804, %v1849
          %v1852 = vsel %vm1806, %v1851, -inf
          %v1853 = vrot.slane %v1852, 4
          %v1854 = vmax.f32 %v1852, %v1853
          %v1855 = vrot.slane %v1854, 2
          %v1856 = vmax.f32 %v1854, %v1855
          %v1857 = vrot.slane %v1856, 1
          %v1858 = vmax.f32 %v1856, %v1857
          %v1859 = vsub.f32 %v1851, %v1858
          %v1860 = vmul.f32 %v1859, 1.442695
          %v1861 = vpow.pop %v1860
          %v1862 = vsel %vm1806, %v1861, 0.0
          %v1863 = vrot.slane %v1862, 4
          %v1864 = vadd.f32 %v1862, %v1863
          %v1865 = vrot.slane %v1864, 2
          %v1866 = vadd.f32 %v1864, %v1865
          %v1867 = vrot.slane %v1866, 1
          %v1868 = vadd.f32 %v1866, %v1867
          %v1869 = vlog2.pop %v1868
          %v1870 = vmul.f32 %v1869, 0.6931472
          %v1871 = vadd.f32 %v1858, %v1870
          %v1872 = vsub.f32 %v1327, %v1871
          %v1873 = vlaneseq
          %v1874 = vshrl.u32 %v1873, 7
          %v1875 = vsub.s32 0, %v1874
          %v1876 = vrot.slane %v1872, %v1875
          %v1877 = vadd.f32 %v1804, %v1876
          %v1878 = vsel %vm1806, %v1877, -inf
          %1879 = vmax.xlane.f32.xlu0 %v1878
          %v1880 = vpop.xlane.xlu0 %1879
          %v1881 = vsub.f32 %v1877, %v1880
          %v1882 = vmul.f32 %v1881, 1.442695
          %v1883 = vpow.pop %v1882
          %v1884 = vsel %vm1806, %v1883, 0.0
          %1885 = vadd.xlane.f32.xlu0 %v1884
          %v1886 = vpop.xlane.xlu0 %1885
          %v1887 = vlog2.pop %v1886
          %v1888 = vmul.f32 %v1887, 0.6931472
          %v1889 = vadd.f32 %v1880, %v1888
          %v1890 = vsub.f32 %v1625, %v1889
          %1892 = vset.pattern.permute.xlu0 0
          %1893 = vperm.xlu0 %1892, %v1890
          %v1894 = vpop.permute.xlu0 %1893
          %v1896 = vadd.f32 %v1804, %v1894
          %v1897 = vsel %vm1806, %v1896, -inf
          %v1898 = vrot.slane %v1897, 4
          %v1899 = vmax.f32 %v1897, %v1898
          %v1900 = vrot.slane %v1899, 2
          %v1901 = vmax.f32 %v1899, %v1900
          %v1902 = vrot.slane %v1901, 1
          %v1903 = vmax.f32 %v1901, %v1902
          %v1904 = vsub.f32 %v1896, %v1903
          %v1905 = vmul.f32 %v1904, 1.442695
          %v1906 = vpow.pop %v1905
          %v1907 = vsel %vm1806, %v1906, 0.0
          %v1908 = vrot.slane %v1907, 4
          %v1909 = vadd.f32 %v1907, %v1908
          %v1910 = vrot.slane %v1909, 2
          %v1911 = vadd.f32 %v1909, %v1910
          %v1912 = vrot.slane %v1911, 1
          %v1913 = vadd.f32 %v1911, %v1912
          %v1914 = vlog2.pop %v1913
          %v1915 = vmul.f32 %v1914, 0.6931472
          %v1916 = vadd.f32 %v1903, %v1915
          %v1917 = vsub.f32 %v1327, %v1916
          %v1918 = vlaneseq
          %v1919 = vshrl.u32 %v1918, 7
          %v1920 = vsub.s32 0, %v1919
          %v1921 = vrot.slane %v1917, %v1920
          %v1922 = vadd.f32 %v1804, %v1921
          %v1923 = vsel %vm1806, %v1922, -inf
          %1924 = vmax.xlane.f32.xlu0 %v1923
          %v1925 = vpop.xlane.xlu0 %1924
          %v1926 = vsub.f32 %v1922, %v1925
          %v1927 = vmul.f32 %v1926, 1.442695
          %v1928 = vpow.pop %v1927
          %v1929 = vsel %vm1806, %v1928, 0.0
          %1930 = vadd.xlane.f32.xlu0 %v1929
          %v1931 = vpop.xlane.xlu0 %1930
          %v1932 = vlog2.pop %v1931
          %v1933 = vmul.f32 %v1932, 0.6931472
          %v1934 = vadd.f32 %v1925, %v1933
          %v1935 = vsub.f32 %v1625, %v1934
          %1937 = vset.pattern.permute.xlu0 0
          %1938 = vperm.xlu0 %1937, %v1935
          %v1939 = vpop.permute.xlu0 %1938
          %v1941 = vadd.f32 %v1804, %v1939
          %v1942 = vsel %vm1806, %v1941, -inf
          %v1943 = vrot.slane %v1942, 4
          %v1944 = vmax.f32 %v1942, %v1943
          %v1945 = vrot.slane %v1944, 2
          %v1946 = vmax.f32 %v1944, %v1945
          %v1947 = vrot.slane %v1946, 1
          %v1948 = vmax.f32 %v1946, %v1947
          %v1949 = vsub.f32 %v1941, %v1948
          %v1950 = vmul.f32 %v1949, 1.442695
          %v1951 = vpow.pop %v1950
          %v1952 = vsel %vm1806, %v1951, 0.0
          %v1953 = vrot.slane %v1952, 4
          %v1954 = vadd.f32 %v1952, %v1953
          %v1955 = vrot.slane %v1954, 2
          %v1956 = vadd.f32 %v1954, %v1955
          %v1957 = vrot.slane %v1956, 1
          %v1958 = vadd.f32 %v1956, %v1957
          %v1959 = vlog2.pop %v1958
          %v1960 = vmul.f32 %v1959, 0.6931472
          %v1961 = vadd.f32 %v1948, %v1960
          %v1962 = vsub.f32 %v1327, %v1961
          %v1963 = vlaneseq
          %v1964 = vshrl.u32 %v1963, 7
          %v1965 = vsub.s32 0, %v1964
          %v1966 = vrot.slane %v1962, %v1965
          %v1967 = vadd.f32 %v1804, %v1966
          %v1968 = vsel %vm1806, %v1967, -inf
          %1969 = vmax.xlane.f32.xlu0 %v1968
          %v1970 = vpop.xlane.xlu0 %1969
          %v1971 = vsub.f32 %v1967, %v1970
          %v1972 = vmul.f32 %v1971, 1.442695
          %v1973 = vpow.pop %v1972
          %v1974 = vsel %vm1806, %v1973, 0.0
          %1975 = vadd.xlane.f32.xlu0 %v1974
          %v1976 = vpop.xlane.xlu0 %1975
          %v1977 = vlog2.pop %v1976
          %v1978 = vmul.f32 %v1977, 0.6931472
          %v1979 = vadd.f32 %v1970, %v1978
          %v1980 = vsub.f32 %v1625, %v1979
          %1982 = vset.pattern.permute.xlu0 0
          %1983 = vperm.xlu0 %1982, %v1980
          %v1984 = vpop.permute.xlu0 %1983
          %v1986 = vadd.f32 %v1804, %v1984
          %v1987 = vsel %vm1806, %v1986, -inf
          %v1988 = vrot.slane %v1987, 4
          %v1989 = vmax.f32 %v1987, %v1988
          %v1990 = vrot.slane %v1989, 2
          %v1991 = vmax.f32 %v1989, %v1990
          %v1992 = vrot.slane %v1991, 1
          %v1993 = vmax.f32 %v1991, %v1992
          %v1994 = vsub.f32 %v1986, %v1993
          %v1995 = vmul.f32 %v1994, 1.442695
          %v1996 = vpow.pop %v1995
          %v1997 = vsel %vm1806, %v1996, 0.0
          %v1998 = vrot.slane %v1997, 4
          %v1999 = vadd.f32 %v1997, %v1998
          %v2000 = vrot.slane %v1999, 2
          %v2001 = vadd.f32 %v1999, %v2000
          %v2002 = vrot.slane %v2001, 1
          %v2003 = vadd.f32 %v2001, %v2002
          %v2004 = vlog2.pop %v2003
          %v2005 = vmul.f32 %v2004, 0.6931472
          %v2006 = vadd.f32 %v1993, %v2005
          %v2007 = vsub.f32 %v1327, %v2006
          %v2008 = vlaneseq
          %v2009 = vshrl.u32 %v2008, 7
          %v2010 = vsub.s32 0, %v2009
          %v2011 = vrot.slane %v2007, %v2010
          %v2012 = vadd.f32 %v1804, %v2011
          %v2013 = vsel %vm1806, %v2012, -inf
          %2014 = vmax.xlane.f32.xlu0 %v2013
          %v2015 = vpop.xlane.xlu0 %2014
          %v2016 = vsub.f32 %v2012, %v2015
          %v2017 = vmul.f32 %v2016, 1.442695
          %v2018 = vpow.pop %v2017
          %v2019 = vsel %vm1806, %v2018, 0.0
          %2020 = vadd.xlane.f32.xlu0 %v2019
          %v2021 = vpop.xlane.xlu0 %2020
          %v2022 = vlog2.pop %v2021
          %v2023 = vmul.f32 %v2022, 0.6931472
          %v2024 = vadd.f32 %v2015, %v2023
          %v2025 = vsub.f32 %v1625, %v2024
          %2027 = vset.pattern.permute.xlu0 0
          %2028 = vperm.xlu0 %2027, %v2025
          %v2029 = vpop.permute.xlu0 %2028
          %v2031 = vadd.f32 %v2012, %v2029
          %v2032 = vmul.f32 %v2031, 1.442695
          %v2033 = vpow.pop %v2032
          %v2034 = vmax.f32 %v2033, 1e-20
          %v2035 = vmin.f32 %v2034, 1.0
          %vm2036 = vcmp.ge.f32.partialorder %v2033, 1e-20
          %vm2037 = vcmp.le.f32.partialorder %v2033, 1.0
          %vm2038 = vmand %vm2036, %vm2037
          %v2039 = vsel %vm2038, 1, 0
          %v2040 = vcvt.s32.f32 %v2039
          %v2041 = vlog2.pop %v2035
          %v2042 = vmul.f32 %v2041, 0.6931472
          %v2043 = vadd.f32 %v2042, 1.0
          %v2044 = vsub.f32 0.0, %v2043
          %v2045 = vmul.f32 %v2044, 0.00390625
          %v2046 = vmul.f32 %v2045, %v2040
          %v2047 = vmul.f32 %v2046, %v2033
          %v2048 = vsel %vm1806, %v2047, 0.0
          %v2049 = vrot.slane %v2048, 4
          %v2050 = vadd.f32 %v2048, %v2049
          %v2051 = vrot.slane %v2050, 2
          %v2052 = vadd.f32 %v2050, %v2051
          %v2053 = vrot.slane %v2052, 1
          %v2054 = vadd.f32 %v2052, %v2053
          %2055 = vadd.xlane.f32.xlu0 %v2048
          %v2056 = vpop.xlane.xlu0 %2055
          %v2057 = vsub.f32 0.0, %v2056
          %2059 = vset.pattern.permute.xlu0 0
          %2060 = vperm.xlu0 %2059, %v1625
          %v2061 = vpop.permute.xlu0 %2060
          %v2063 = vsub.f32 %v2031, %v2061
          %v2064 = vmul.f32 %v2063, 1.442695
          %v2065 = vpow.pop %v2064
          %v2066 = vmul.f32 %v2057, %v2065
          %v2067 = vadd.f32 %v2047, %v2066
          %v2068 = vsel %vm1806, %v2066, 0.0
          %v2069 = vrot.slane %v2068, 4
          %v2070 = vadd.f32 %v2068, %v2069
          %v2071 = vrot.slane %v2070, 2
          %v2072 = vadd.f32 %v2070, %v2071
          %v2073 = vrot.slane %v2072, 1
          %v2074 = vadd.f32 %v2072, %v2073
          %v2075 = vadd.f32 %v2074, %v2054
          %v2076 = vsub.f32 0.0, %v2075
          %v2077 = vadd.f32 %v1986, %v2011
          %v2078 = vlaneseq
          %v2079 = vshrl.u32 %v2078, 7
          %v2080 = vsub.s32 0, %v2079
          %v2081 = vrot.slane %v1327, %v2080
          %v2082 = vsub.f32 %v2077, %v2081
          %v2083 = vmul.f32 %v2082, 1.442695
          %v2084 = vpow.pop %v2083
          %v2085 = vmul.f32 %v2076, %v2084
          %v2086 = vadd.f32 %v2067, %v2085
          %v2087 = vsel %vm1806, %v2085, 0.0
          %2088 = vadd.xlane.f32.xlu0 %v2087
          %v2089 = vpop.xlane.xlu0 %2088
          %v2090 = vsub.f32 0.0, %v2089
          %v2091 = vadd.f32 %v1967, %v1984
          %v2092 = vsub.f32 %v2091, %v2061
          %v2093 = vmul.f32 %v2092, 1.442695
          %v2094 = vpow.pop %v2093
          %v2095 = vmul.f32 %v2090, %v2094
          %v2096 = vadd.f32 %v2086, %v2095
          %v2097 = vsel %vm1806, %v2095, 0.0
          %v2098 = vrot.slane %v2097, 4
          %v2099 = vadd.f32 %v2097, %v2098
          %v2100 = vrot.slane %v2099, 2
          %v2101 = vadd.f32 %v2099, %v2100
          %v2102 = vrot.slane %v2101, 1
          %v2103 = vadd.f32 %v2101, %v2102
          %v2104 = vsub.f32 0.0, %v2103
          %v2105 = vadd.f32 %v1941, %v1966
          %v2106 = vsub.f32 %v2105, %v2081
          %v2107 = vmul.f32 %v2106, 1.442695
          %v2108 = vpow.pop %v2107
          %v2109 = vmul.f32 %v2104, %v2108
          %v2110 = vadd.f32 %v2096, %v2109
          %v2111 = vsel %vm1806, %v2109, 0.0
          %2112 = vadd.xlane.f32.xlu0 %v2111
          %v2113 = vpop.xlane.xlu0 %2112
          %v2114 = vsub.f32 0.0, %v2113
          %v2115 = vadd.f32 %v1922, %v1939
          %v2116 = vsub.f32 %v2115, %v2061
          %v2117 = vmul.f32 %v2116, 1.442695
          %v2118 = vpow.pop %v2117
          %v2119 = vmul.f32 %v2114, %v2118
          %v2120 = vadd.f32 %v2110, %v2119
          %v2121 = vsel %vm1806, %v2119, 0.0
          %v2122 = vrot.slane %v2121, 4
          %v2123 = vadd.f32 %v2121, %v2122
          %v2124 = vrot.slane %v2123, 2
          %v2125 = vadd.f32 %v2123, %v2124
          %v2126 = vrot.slane %v2125, 1
          %v2127 = vadd.f32 %v2125, %v2126
          %v2128 = vsub.f32 0.0, %v2127
          %v2129 = vadd.f32 %v1896, %v1921
          %v2130 = vsub.f32 %v2129, %v2081
          %v2131 = vmul.f32 %v2130, 1.442695
          %v2132 = vpow.pop %v2131
          %v2133 = vmul.f32 %v2128, %v2132
          %v2134 = vadd.f32 %v2120, %v2133
          %v2135 = vsel %vm1806, %v2133, 0.0
          %2136 = vadd.xlane.f32.xlu0 %v2135
          %v2137 = vpop.xlane.xlu0 %2136
          %v2138 = vsub.f32 0.0, %v2137
          %v2139 = vadd.f32 %v1877, %v1894
          %v2140 = vsub.f32 %v2139, %v2061
          %v2141 = vmul.f32 %v2140, 1.442695
          %v2142 = vpow.pop %v2141
          %v2143 = vmul.f32 %v2138, %v2142
          %v2144 = vadd.f32 %v2134, %v2143
          %v2145 = vsel %vm1806, %v2143, 0.0
          %v2146 = vrot.slane %v2145, 4
          %v2147 = vadd.f32 %v2145, %v2146
          %v2148 = vrot.slane %v2147, 2
          %v2149 = vadd.f32 %v2147, %v2148
          %v2150 = vrot.slane %v2149, 1
          %v2151 = vadd.f32 %v2149, %v2150
          %v2152 = vsub.f32 0.0, %v2151
          %v2153 = vadd.f32 %v1851, %v1876
          %v2154 = vsub.f32 %v2153, %v2081
          %v2155 = vmul.f32 %v2154, 1.442695
          %v2156 = vpow.pop %v2155
          %v2157 = vmul.f32 %v2152, %v2156
          %v2158 = vadd.f32 %v2144, %v2157
          %v2159 = vsel %vm1806, %v2157, 0.0
          %2160 = vadd.xlane.f32.xlu0 %v2159
          %v2161 = vpop.xlane.xlu0 %2160
          %v2162 = vsub.f32 0.0, %v2161
          %v2163 = vadd.f32 %v1832, %v1849
          %v2164 = vsub.f32 %v2163, %v2061
          %v2165 = vmul.f32 %v2164, 1.442695
          %v2166 = vpow.pop %v2165
          %v2167 = vmul.f32 %v2162, %v2166
          %v2168 = vadd.f32 %v2158, %v2167
          %v2169 = vsel %vm1806, %v2167, 0.0
          %v2170 = vrot.slane %v2169, 4
          %v2171 = vadd.f32 %v2169, %v2170
          %v2172 = vrot.slane %v2171, 2
          %v2173 = vadd.f32 %v2171, %v2172
          %v2174 = vrot.slane %v2173, 1
          %v2175 = vadd.f32 %v2173, %v2174
          %v2176 = vsub.f32 0.0, %v2175
          %v2177 = vadd.f32 %v1805, %v1831
          %v2178 = vsub.f32 %v2177, %v2081
          %v2179 = vmul.f32 %v2178, 1.442695
          %v2180 = vpow.pop %v2179
          %v2181 = vmul.f32 %v2176, %v2180
          %v2182 = vadd.f32 %v2168, %v2181
          %v2183 = vsub.f32 0.0, %v2182
          %v2184 = vadd.f32 %v2183, 1e-20
          %v2185 = vmul.f32 %v2184, %v2184
          %v2186 = vsel %vm1806, %v2185, 0.0
          %2187 = vadd.xlane.f32.xlu0 %v2186
          %v2188 = vpop.xlane.xlu0 %2187
          %vm2189 = vcmask 1043456
          %v2190 = vsel %vm2189, %v2188, 0.0
          %v2191 = vrot.slane %v2190, 4
          %v2192 = vadd.f32 %v2190, %v2191
          %v2193 = vrot.slane %v2192, 2
          %v2194 = vadd.f32 %v2192, %v2193
          %v2195 = vrot.slane %v2194, 1
          %v2196 = vadd.f32 %v2194, %v2195
          %v2197 = vmax.f32 %v2196, 1e-24
          %v2198 = vrsqrt.pop %v2197
          %v2199 = vmul.f32 %v2184, %v2198
          %v2200 = vsub.f32 %v1803, %v2199
          %v2201 = vsub.f32 0.0, %v2200
          %v2202 = vadd.f32 %v2201, %v2029
          %v2203 = vsel %vm1806, %v2202, -inf
          %v2204 = vrot.slane %v2203, 4
          %v2205 = vmax.f32 %v2203, %v2204
          %v2206 = vrot.slane %v2205, 2
          %v2207 = vmax.f32 %v2205, %v2206
          %v2208 = vrot.slane %v2207, 1
          %v2209 = vmax.f32 %v2207, %v2208
          %v2210 = vsub.f32 %v2202, %v2209
          %v2211 = vmul.f32 %v2210, 1.442695
          %v2212 = vpow.pop %v2211
          %v2213 = vsel %vm1806, %v2212, 0.0
          %v2214 = vrot.slane %v2213, 4
          %v2215 = vadd.f32 %v2213, %v2214
          %v2216 = vrot.slane %v2215, 2
          %v2217 = vadd.f32 %v2215, %v2216
          %v2218 = vrot.slane %v2217, 1
          %v2219 = vadd.f32 %v2217, %v2218
          %v2220 = vlog2.pop %v2219
          %v2221 = vmul.f32 %v2220, 0.6931472
          %v2222 = vadd.f32 %v2209, %v2221
          %v2223 = vsub.f32 %v1327, %v2222
          %v2224 = vlaneseq
          %v2225 = vshrl.u32 %v2224, 7
          %v2226 = vsub.s32 0, %v2225
          %v2227 = vrot.slane %v2223, %v2226
          %v2228 = vadd.f32 %v2201, %v2227
          %v2229 = vsel %vm1806, %v2228, -inf
          %2230 = vmax.xlane.f32.xlu0 %v2229
          %v2231 = vpop.xlane.xlu0 %2230
          %v2232 = vsub.f32 %v2228, %v2231
          %v2233 = vmul.f32 %v2232, 1.442695
          %v2234 = vpow.pop %v2233
          %v2235 = vsel %vm1806, %v2234, 0.0
          %2236 = vadd.xlane.f32.xlu0 %v2235
          %v2237 = vpop.xlane.xlu0 %2236
          %v2238 = vlog2.pop %v2237
          %v2239 = vmul.f32 %v2238, 0.6931472
          %v2240 = vadd.f32 %v2231, %v2239
          %v2241 = vsub.f32 %v1625, %v2240
          %2243 = vset.pattern.permute.xlu0 0
          %2244 = vperm.xlu0 %2243, %v2241
          %v2245 = vpop.permute.xlu0 %2244
          %v2247 = vadd.f32 %v2201, %v2245
          %v2248 = vsel %vm1806, %v2247, -inf
          %v2249 = vrot.slane %v2248, 4
          %v2250 = vmax.f32 %v2248, %v2249
          %v2251 = vrot.slane %v2250, 2
          %v2252 = vmax.f32 %v2250, %v2251
          %v2253 = vrot.slane %v2252, 1
          %v2254 = vmax.f32 %v2252, %v2253
          %v2255 = vsub.f32 %v2247, %v2254
          %v2256 = vmul.f32 %v2255, 1.442695
          %v2257 = vpow.pop %v2256
          %v2258 = vsel %vm1806, %v2257, 0.0
          %v2259 = vrot.slane %v2258, 4
          %v2260 = vadd.f32 %v2258, %v2259
          %v2261 = vrot.slane %v2260, 2
          %v2262 = vadd.f32 %v2260, %v2261
          %v2263 = vrot.slane %v2262, 1
          %v2264 = vadd.f32 %v2262, %v2263
          %v2265 = vlog2.pop %v2264
          %v2266 = vmul.f32 %v2265, 0.6931472
          %v2267 = vadd.f32 %v2254, %v2266
          %v2268 = vsub.f32 %v1327, %v2267
          %v2269 = vlaneseq
          %v2270 = vshrl.u32 %v2269, 7
          %v2271 = vsub.s32 0, %v2270
          %v2272 = vrot.slane %v2268, %v2271
          %v2273 = vadd.f32 %v2201, %v2272
          %v2274 = vsel %vm1806, %v2273, -inf
          %2275 = vmax.xlane.f32.xlu0 %v2274
          %v2276 = vpop.xlane.xlu0 %2275
          %v2277 = vsub.f32 %v2273, %v2276
          %v2278 = vmul.f32 %v2277, 1.442695
          %v2279 = vpow.pop %v2278
          %v2280 = vsel %vm1806, %v2279, 0.0
          %2281 = vadd.xlane.f32.xlu0 %v2280
          %v2282 = vpop.xlane.xlu0 %2281
          %v2283 = vlog2.pop %v2282
          %v2284 = vmul.f32 %v2283, 0.6931472
          %v2285 = vadd.f32 %v2276, %v2284
          %v2286 = vsub.f32 %v1625, %v2285
          %2288 = vset.pattern.permute.xlu0 0
          %2289 = vperm.xlu0 %2288, %v2286
          %v2290 = vpop.permute.xlu0 %2289
          %v2292 = vadd.f32 %v2201, %v2290
          %v2293 = vsel %vm1806, %v2292, -inf
          %v2294 = vrot.slane %v2293, 4
          %v2295 = vmax.f32 %v2293, %v2294
          %v2296 = vrot.slane %v2295, 2
          %v2297 = vmax.f32 %v2295, %v2296
          %v2298 = vrot.slane %v2297, 1
          %v2299 = vmax.f32 %v2297, %v2298
          %v2300 = vsub.f32 %v2292, %v2299
          %v2301 = vmul.f32 %v2300, 1.442695
          %v2302 = vpow.pop %v2301
          %v2303 = vsel %vm1806, %v2302, 0.0
          %v2304 = vrot.slane %v2303, 4
          %v2305 = vadd.f32 %v2303, %v2304
          %v2306 = vrot.slane %v2305, 2
          %v2307 = vadd.f32 %v2305, %v2306
          %v2308 = vrot.slane %v2307, 1
          %v2309 = vadd.f32 %v2307, %v2308
          %v2310 = vlog2.pop %v2309
          %v2311 = vmul.f32 %v2310, 0.6931472
          %v2312 = vadd.f32 %v2299, %v2311
          %v2313 = vsub.f32 %v1327, %v2312
          %v2314 = vlaneseq
          %v2315 = vshrl.u32 %v2314, 7
          %v2316 = vsub.s32 0, %v2315
          %v2317 = vrot.slane %v2313, %v2316
          %v2318 = vadd.f32 %v2201, %v2317
          %v2319 = vsel %vm1806, %v2318, -inf
          %2320 = vmax.xlane.f32.xlu0 %v2319
          %v2321 = vpop.xlane.xlu0 %2320
          %v2322 = vsub.f32 %v2318, %v2321
          %v2323 = vmul.f32 %v2322, 1.442695
          %v2324 = vpow.pop %v2323
          %v2325 = vsel %vm1806, %v2324, 0.0
          %2326 = vadd.xlane.f32.xlu0 %v2325
          %v2327 = vpop.xlane.xlu0 %2326
          %v2328 = vlog2.pop %v2327
          %v2329 = vmul.f32 %v2328, 0.6931472
          %v2330 = vadd.f32 %v2321, %v2329
          %v2331 = vsub.f32 %v1625, %v2330
          %2333 = vset.pattern.permute.xlu0 0
          %2334 = vperm.xlu0 %2333, %v2331
          %v2335 = vpop.permute.xlu0 %2334
          %v2337 = vadd.f32 %v2201, %v2335
          %v2338 = vsel %vm1806, %v2337, -inf
          %v2339 = vrot.slane %v2338, 4
          %v2340 = vmax.f32 %v2338, %v2339
          %v2341 = vrot.slane %v2340, 2
          %v2342 = vmax.f32 %v2340, %v2341
          %v2343 = vrot.slane %v2342, 1
          %v2344 = vmax.f32 %v2342, %v2343
          %v2345 = vsub.f32 %v2337, %v2344
          %v2346 = vmul.f32 %v2345, 1.442695
          %v2347 = vpow.pop %v2346
          %v2348 = vsel %vm1806, %v2347, 0.0
          %v2349 = vrot.slane %v2348, 4
          %v2350 = vadd.f32 %v2348, %v2349
          %v2351 = vrot.slane %v2350, 2
          %v2352 = vadd.f32 %v2350, %v2351
          %v2353 = vrot.slane %v2352, 1
          %v2354 = vadd.f32 %v2352, %v2353
          %v2355 = vlog2.pop %v2354
          %v2356 = vmul.f32 %v2355, 0.6931472
          %v2357 = vadd.f32 %v2344, %v2356
          %v2358 = vsub.f32 %v1327, %v2357
          %v2359 = vlaneseq
          %v2360 = vshrl.u32 %v2359, 7
          %v2361 = vsub.s32 0, %v2360
          %v2362 = vrot.slane %v2358, %v2361
          %v2363 = vadd.f32 %v2201, %v2362
          %v2364 = vsel %vm1806, %v2363, -inf
          %2365 = vmax.xlane.f32.xlu0 %v2364
          %v2366 = vpop.xlane.xlu0 %2365
          %v2367 = vsub.f32 %v2363, %v2366
          %v2368 = vmul.f32 %v2367, 1.442695
          %v2369 = vpow.pop %v2368
          %v2370 = vsel %vm1806, %v2369, 0.0
          %2371 = vadd.xlane.f32.xlu0 %v2370
          %v2372 = vpop.xlane.xlu0 %2371
          %v2373 = vlog2.pop %v2372
          %v2374 = vmul.f32 %v2373, 0.6931472
          %v2375 = vadd.f32 %v2366, %v2374
          %v2376 = vsub.f32 %v1625, %v2375
          %2378 = vset.pattern.permute.xlu0 0
          %2379 = vperm.xlu0 %2378, %v2376
          %v2380 = vpop.permute.xlu0 %2379
          %v2382 = vadd.f32 %v2201, %v2380
          %v2383 = vsel %vm1806, %v2382, -inf
          %v2384 = vrot.slane %v2383, 4
          %v2385 = vmax.f32 %v2383, %v2384
          %v2386 = vrot.slane %v2385, 2
          %v2387 = vmax.f32 %v2385, %v2386
          %v2388 = vrot.slane %v2387, 1
          %v2389 = vmax.f32 %v2387, %v2388
          %v2390 = vsub.f32 %v2382, %v2389
          %v2391 = vmul.f32 %v2390, 1.442695
          %v2392 = vpow.pop %v2391
          %v2393 = vsel %vm1806, %v2392, 0.0
          %v2394 = vrot.slane %v2393, 4
          %v2395 = vadd.f32 %v2393, %v2394
          %v2396 = vrot.slane %v2395, 2
          %v2397 = vadd.f32 %v2395, %v2396
          %v2398 = vrot.slane %v2397, 1
          %v2399 = vadd.f32 %v2397, %v2398
          %v2400 = vlog2.pop %v2399
          %v2401 = vmul.f32 %v2400, 0.6931472
          %v2402 = vadd.f32 %v2389, %v2401
          %v2403 = vsub.f32 %v1327, %v2402
          %v2404 = vlaneseq
          %v2405 = vshrl.u32 %v2404, 7
          %v2406 = vsub.s32 0, %v2405
          %v2407 = vrot.slane %v2403, %v2406
          %v2408 = vadd.f32 %v2201, %v2407
          %v2409 = vsel %vm1806, %v2408, -inf
          %2410 = vmax.xlane.f32.xlu0 %v2409
          %v2411 = vpop.xlane.xlu0 %2410
          %v2412 = vsub.f32 %v2408, %v2411
          %v2413 = vmul.f32 %v2412, 1.442695
          %v2414 = vpow.pop %v2413
          %v2415 = vsel %vm1806, %v2414, 0.0
          %2416 = vadd.xlane.f32.xlu0 %v2415
          %v2417 = vpop.xlane.xlu0 %2416
          %v2418 = vlog2.pop %v2417
          %v2419 = vmul.f32 %v2418, 0.6931472
          %v2420 = vadd.f32 %v2411, %v2419
          %v2421 = vsub.f32 %v1625, %v2420
          %2423 = vset.pattern.permute.xlu0 0
          %2424 = vperm.xlu0 %2423, %v2421
          %v2425 = vpop.permute.xlu0 %2424
          %v2427 = vadd.f32 %v2408, %v2425
          %v2428 = vmul.f32 %v2427, 1.442695
          %v2429 = vpow.pop %v2428
          %v2430 = vmax.f32 %v2429, 1e-20
          %v2431 = vmin.f32 %v2430, 1.0
          %vm2432 = vcmp.ge.f32.partialorder %v2429, 1e-20
          %vm2433 = vcmp.le.f32.partialorder %v2429, 1.0
          %vm2434 = vmand %vm2432, %vm2433
          %v2435 = vsel %vm2434, 1, 0
          %v2436 = vcvt.s32.f32 %v2435
          %v2437 = vlog2.pop %v2431
          %v2438 = vmul.f32 %v2437, 0.6931472
          %v2439 = vadd.f32 %v2438, 1.0
          %v2440 = vsub.f32 0.0, %v2439
          %v2441 = vmul.f32 %v2440, 0.00390625
          %v2442 = vmul.f32 %v2441, %v2436
          %v2443 = vmul.f32 %v2442, %v2429
          %v2444 = vsel %vm1806, %v2443, 0.0
          %v2445 = vrot.slane %v2444, 4
          %v2446 = vadd.f32 %v2444, %v2445
          %v2447 = vrot.slane %v2446, 2
          %v2448 = vadd.f32 %v2446, %v2447
          %v2449 = vrot.slane %v2448, 1
          %v2450 = vadd.f32 %v2448, %v2449
          %2451 = vadd.xlane.f32.xlu0 %v2444
          %v2452 = vpop.xlane.xlu0 %2451
          %v2453 = vsub.f32 0.0, %v2452
          %v2454 = vsub.f32 %v2427, %v2061
          %v2455 = vmul.f32 %v2454, 1.442695
          %v2456 = vpow.pop %v2455
          %v2457 = vmul.f32 %v2453, %v2456
          %v2458 = vadd.f32 %v2443, %v2457
          %v2459 = vsel %vm1806, %v2457, 0.0
          %v2460 = vrot.slane %v2459, 4
          %v2461 = vadd.f32 %v2459, %v2460
          %v2462 = vrot.slane %v2461, 2
          %v2463 = vadd.f32 %v2461, %v2462
          %v2464 = vrot.slane %v2463, 1
          %v2465 = vadd.f32 %v2463, %v2464
          %v2466 = vadd.f32 %v2465, %v2450
          %v2467 = vsub.f32 0.0, %v2466
          %v2468 = vadd.f32 %v2382, %v2407
          %v2469 = vsub.f32 %v2468, %v2081
          %v2470 = vmul.f32 %v2469, 1.442695
          %v2471 = vpow.pop %v2470
          %v2472 = vmul.f32 %v2467, %v2471
          %v2473 = vadd.f32 %v2458, %v2472
          %v2474 = vsel %vm1806, %v2472, 0.0
          %2475 = vadd.xlane.f32.xlu0 %v2474
          %v2476 = vpop.xlane.xlu0 %2475
          %v2477 = vsub.f32 0.0, %v2476
          %v2478 = vadd.f32 %v2363, %v2380
          %v2479 = vsub.f32 %v2478, %v2061
          %v2480 = vmul.f32 %v2479, 1.442695
          %v2481 = vpow.pop %v2480
          %v2482 = vmul.f32 %v2477, %v2481
          %v2483 = vadd.f32 %v2473, %v2482
          %v2484 = vsel %vm1806, %v2482, 0.0
          %v2485 = vrot.slane %v2484, 4
          %v2486 = vadd.f32 %v2484, %v2485
          %v2487 = vrot.slane %v2486, 2
          %v2488 = vadd.f32 %v2486, %v2487
          %v2489 = vrot.slane %v2488, 1
          %v2490 = vadd.f32 %v2488, %v2489
          %v2491 = vsub.f32 0.0, %v2490
          %v2492 = vadd.f32 %v2337, %v2362
          %v2493 = vsub.f32 %v2492, %v2081
          %v2494 = vmul.f32 %v2493, 1.442695
          %v2495 = vpow.pop %v2494
          %v2496 = vmul.f32 %v2491, %v2495
          %v2497 = vadd.f32 %v2483, %v2496
          %v2498 = vsel %vm1806, %v2496, 0.0
          %2499 = vadd.xlane.f32.xlu0 %v2498
          %v2500 = vpop.xlane.xlu0 %2499
          %v2501 = vsub.f32 0.0, %v2500
          %v2502 = vadd.f32 %v2318, %v2335
          %v2503 = vsub.f32 %v2502, %v2061
          %v2504 = vmul.f32 %v2503, 1.442695
          %v2505 = vpow.pop %v2504
          %v2506 = vmul.f32 %v2501, %v2505
          %v2507 = vadd.f32 %v2497, %v2506
          %v2508 = vsel %vm1806, %v2506, 0.0
          %v2509 = vrot.slane %v2508, 4
          %v2510 = vadd.f32 %v2508, %v2509
          %v2511 = vrot.slane %v2510, 2
          %v2512 = vadd.f32 %v2510, %v2511
          %v2513 = vrot.slane %v2512, 1
          %v2514 = vadd.f32 %v2512, %v2513
          %v2515 = vsub.f32 0.0, %v2514
          %v2516 = vadd.f32 %v2292, %v2317
          %v2517 = vsub.f32 %v2516, %v2081
          %v2518 = vmul.f32 %v2517, 1.442695
          %v2519 = vpow.pop %v2518
          %v2520 = vmul.f32 %v2515, %v2519
          %v2521 = vadd.f32 %v2507, %v2520
          %v2522 = vsel %vm1806, %v2520, 0.0
          %2523 = vadd.xlane.f32.xlu0 %v2522
          %v2524 = vpop.xlane.xlu0 %2523
          %v2525 = vsub.f32 0.0, %v2524
          %v2526 = vadd.f32 %v2273, %v2290
          %v2527 = vsub.f32 %v2526, %v2061
          %v2528 = vmul.f32 %v2527, 1.442695
          %v2529 = vpow.pop %v2528
          %v2530 = vmul.f32 %v2525, %v2529
          %v2531 = vadd.f32 %v2521, %v2530
          %v2532 = vsel %vm1806, %v2530, 0.0
          %v2533 = vrot.slane %v2532, 4
          %v2534 = vadd.f32 %v2532, %v2533
          %v2535 = vrot.slane %v2534, 2
          %v2536 = vadd.f32 %v2534, %v2535
          %v2537 = vrot.slane %v2536, 1
          %v2538 = vadd.f32 %v2536, %v2537
          %v2539 = vsub.f32 0.0, %v2538
          %v2540 = vadd.f32 %v2247, %v2272
          %v2541 = vsub.f32 %v2540, %v2081
          %v2542 = vmul.f32 %v2541, 1.442695
          %v2543 = vpow.pop %v2542
          %v2544 = vmul.f32 %v2539, %v2543
          %v2545 = vadd.f32 %v2531, %v2544
          %v2546 = vsel %vm1806, %v2544, 0.0
          %2547 = vadd.xlane.f32.xlu0 %v2546
          %v2548 = vpop.xlane.xlu0 %2547
          %v2549 = vsub.f32 0.0, %v2548
          %v2550 = vadd.f32 %v2228, %v2245
          %v2551 = vsub.f32 %v2550, %v2061
          %v2552 = vmul.f32 %v2551, 1.442695
          %v2553 = vpow.pop %v2552
          %v2554 = vmul.f32 %v2549, %v2553
          %v2555 = vadd.f32 %v2545, %v2554
          %v2556 = vsel %vm1806, %v2554, 0.0
          %v2557 = vrot.slane %v2556, 4
          %v2558 = vadd.f32 %v2556, %v2557
          %v2559 = vrot.slane %v2558, 2
          %v2560 = vadd.f32 %v2558, %v2559
          %v2561 = vrot.slane %v2560, 1
          %v2562 = vadd.f32 %v2560, %v2561
          %v2563 = vsub.f32 0.0, %v2562
          %v2564 = vadd.f32 %v2202, %v2227
          %v2565 = vsub.f32 %v2564, %v2081
          %v2566 = vmul.f32 %v2565, 1.442695
          %v2567 = vpow.pop %v2566
          %v2568 = vmul.f32 %v2563, %v2567
          %v2569 = vadd.f32 %v2555, %v2568
          %v2570 = vsub.f32 0.0, %v2569
          %v2571 = vadd.f32 %v2570, 1e-20
          %v2572 = vmul.f32 %v2571, %v2571
          %v2573 = vsel %vm1806, %v2572, 0.0
          %2574 = vadd.xlane.f32.xlu0 %v2573
          %v2575 = vpop.xlane.xlu0 %2574
          %v2576 = vsel %vm2189, %v2575, 0.0
          %v2577 = vrot.slane %v2576, 4
          %v2578 = vadd.f32 %v2576, %v2577
          %v2579 = vrot.slane %v2578, 2
          %v2580 = vadd.f32 %v2578, %v2579
          %v2581 = vrot.slane %v2580, 1
          %v2582 = vadd.f32 %v2580, %v2581
          %v2583 = vmax.f32 %v2582, 1e-24
          %v2584 = vrsqrt.pop %v2583
          %v2585 = vmul.f32 %v2571, %v2584
          %v2586 = vsub.f32 %v2200, %v2585
          %v2587 = vsub.f32 0.0, %v2586
          %v2588 = vadd.f32 %v2587, %v2425
          %v2589 = vsel %vm1806, %v2588, -inf
          %v2590 = vrot.slane %v2589, 4
          %v2591 = vmax.f32 %v2589, %v2590
          %v2592 = vrot.slane %v2591, 2
          %v2593 = vmax.f32 %v2591, %v2592
          %v2594 = vrot.slane %v2593, 1
          %v2595 = vmax.f32 %v2593, %v2594
          %v2596 = vsub.f32 %v2588, %v2595
          %v2597 = vmul.f32 %v2596, 1.442695
          %v2598 = vpow.pop %v2597
          %v2599 = vsel %vm1806, %v2598, 0.0
          %v2600 = vrot.slane %v2599, 4
          %v2601 = vadd.f32 %v2599, %v2600
          %v2602 = vrot.slane %v2601, 2
          %v2603 = vadd.f32 %v2601, %v2602
          %v2604 = vrot.slane %v2603, 1
          %v2605 = vadd.f32 %v2603, %v2604
          %v2606 = vlog2.pop %v2605
          %v2607 = vmul.f32 %v2606, 0.6931472
          %v2608 = vadd.f32 %v2595, %v2607
          %v2609 = vsub.f32 %v1327, %v2608
          %v2610 = vlaneseq
          %v2611 = vshrl.u32 %v2610, 7
          %v2612 = vsub.s32 0, %v2611
          %v2613 = vrot.slane %v2609, %v2612
          %v2614 = vadd.f32 %v2587, %v2613
          %v2615 = vsel %vm1806, %v2614, -inf
          %2616 = vmax.xlane.f32.xlu0 %v2615
          %v2617 = vpop.xlane.xlu0 %2616
          %v2618 = vsub.f32 %v2614, %v2617
          %v2619 = vmul.f32 %v2618, 1.442695
          %v2620 = vpow.pop %v2619
          %v2621 = vsel %vm1806, %v2620, 0.0
          %2622 = vadd.xlane.f32.xlu0 %v2621
          %v2623 = vpop.xlane.xlu0 %2622
          %v2624 = vlog2.pop %v2623
          %v2625 = vmul.f32 %v2624, 0.6931472
          %v2626 = vadd.f32 %v2617, %v2625
          %v2627 = vsub.f32 %v1625, %v2626
          %2629 = vset.pattern.permute.xlu0 0
          %2630 = vperm.xlu0 %2629, %v2627
          %v2631 = vpop.permute.xlu0 %2630
          %v2633 = vadd.f32 %v2587, %v2631
          %v2634 = vsel %vm1806, %v2633, -inf
          %v2635 = vrot.slane %v2634, 4
          %v2636 = vmax.f32 %v2634, %v2635
          %v2637 = vrot.slane %v2636, 2
          %v2638 = vmax.f32 %v2636, %v2637
          %v2639 = vrot.slane %v2638, 1
          %v2640 = vmax.f32 %v2638, %v2639
          %v2641 = vsub.f32 %v2633, %v2640
          %v2642 = vmul.f32 %v2641, 1.442695
          %v2643 = vpow.pop %v2642
          %v2644 = vsel %vm1806, %v2643, 0.0
          %v2645 = vrot.slane %v2644, 4
          %v2646 = vadd.f32 %v2644, %v2645
          %v2647 = vrot.slane %v2646, 2
          %v2648 = vadd.f32 %v2646, %v2647
          %v2649 = vrot.slane %v2648, 1
          %v2650 = vadd.f32 %v2648, %v2649
          %v2651 = vlog2.pop %v2650
          %v2652 = vmul.f32 %v2651, 0.6931472
          %v2653 = vadd.f32 %v2640, %v2652
          %v2654 = vsub.f32 %v1327, %v2653
          %v2655 = vlaneseq
          %v2656 = vshrl.u32 %v2655, 7
          %v2657 = vsub.s32 0, %v2656
          %v2658 = vrot.slane %v2654, %v2657
          %v2659 = vadd.f32 %v2587, %v2658
          %v2660 = vsel %vm1806, %v2659, -inf
          %2661 = vmax.xlane.f32.xlu0 %v2660
          %v2662 = vpop.xlane.xlu0 %2661
          %v2663 = vsub.f32 %v2659, %v2662
          %v2664 = vmul.f32 %v2663, 1.442695
          %v2665 = vpow.pop %v2664
          %v2666 = vsel %vm1806, %v2665, 0.0
          %2667 = vadd.xlane.f32.xlu0 %v2666
          %v2668 = vpop.xlane.xlu0 %2667
          %v2669 = vlog2.pop %v2668
          %v2670 = vmul.f32 %v2669, 0.6931472
          %v2671 = vadd.f32 %v2662, %v2670
          %v2672 = vsub.f32 %v1625, %v2671
          %2674 = vset.pattern.permute.xlu0 0
          %2675 = vperm.xlu0 %2674, %v2672
          %v2676 = vpop.permute.xlu0 %2675
          %v2678 = vadd.f32 %v2587, %v2676
          %v2679 = vsel %vm1806, %v2678, -inf
          %v2680 = vrot.slane %v2679, 4
          %v2681 = vmax.f32 %v2679, %v2680
          %v2682 = vrot.slane %v2681, 2
          %v2683 = vmax.f32 %v2681, %v2682
          %v2684 = vrot.slane %v2683, 1
          %v2685 = vmax.f32 %v2683, %v2684
          %v2686 = vsub.f32 %v2678, %v2685
          %v2687 = vmul.f32 %v2686, 1.442695
          %v2688 = vpow.pop %v2687
          %v2689 = vsel %vm1806, %v2688, 0.0
          %v2690 = vrot.slane %v2689, 4
          %v2691 = vadd.f32 %v2689, %v2690
          %v2692 = vrot.slane %v2691, 2
          %v2693 = vadd.f32 %v2691, %v2692
          %v2694 = vrot.slane %v2693, 1
          %v2695 = vadd.f32 %v2693, %v2694
          %v2696 = vlog2.pop %v2695
          %v2697 = vmul.f32 %v2696, 0.6931472
          %v2698 = vadd.f32 %v2685, %v2697
          %v2699 = vsub.f32 %v1327, %v2698
          %v2700 = vlaneseq
          %v2701 = vshrl.u32 %v2700, 7
          %v2702 = vsub.s32 0, %v2701
          %v2703 = vrot.slane %v2699, %v2702
          %v2704 = vadd.f32 %v2587, %v2703
          %v2705 = vsel %vm1806, %v2704, -inf
          %2706 = vmax.xlane.f32.xlu0 %v2705
          %v2707 = vpop.xlane.xlu0 %2706
          %v2708 = vsub.f32 %v2704, %v2707
          %v2709 = vmul.f32 %v2708, 1.442695
          %v2710 = vpow.pop %v2709
          %v2711 = vsel %vm1806, %v2710, 0.0
          %2712 = vadd.xlane.f32.xlu0 %v2711
          %v2713 = vpop.xlane.xlu0 %2712
          %v2714 = vlog2.pop %v2713
          %v2715 = vmul.f32 %v2714, 0.6931472
          %v2716 = vadd.f32 %v2707, %v2715
          %v2717 = vsub.f32 %v1625, %v2716
          %2719 = vset.pattern.permute.xlu0 0
          %2720 = vperm.xlu0 %2719, %v2717
          %v2721 = vpop.permute.xlu0 %2720
          %v2723 = vadd.f32 %v2587, %v2721
          %v2724 = vsel %vm1806, %v2723, -inf
          %v2725 = vrot.slane %v2724, 4
          %v2726 = vmax.f32 %v2724, %v2725
          %v2727 = vrot.slane %v2726, 2
          %v2728 = vmax.f32 %v2726, %v2727
          %v2729 = vrot.slane %v2728, 1
          %v2730 = vmax.f32 %v2728, %v2729
          %v2731 = vsub.f32 %v2723, %v2730
          %v2732 = vmul.f32 %v2731, 1.442695
          %v2733 = vpow.pop %v2732
          %v2734 = vsel %vm1806, %v2733, 0.0
          %v2735 = vrot.slane %v2734, 4
          %v2736 = vadd.f32 %v2734, %v2735
          %v2737 = vrot.slane %v2736, 2
          %v2738 = vadd.f32 %v2736, %v2737
          %v2739 = vrot.slane %v2738, 1
          %v2740 = vadd.f32 %v2738, %v2739
          %v2741 = vlog2.pop %v2740
          %v2742 = vmul.f32 %v2741, 0.6931472
          %v2743 = vadd.f32 %v2730, %v2742
          %v2744 = vsub.f32 %v1327, %v2743
          %v2745 = vlaneseq
          %v2746 = vshrl.u32 %v2745, 7
          %v2747 = vsub.s32 0, %v2746
          %v2748 = vrot.slane %v2744, %v2747
          %v2749 = vadd.f32 %v2587, %v2748
          %v2750 = vsel %vm1806, %v2749, -inf
          %2751 = vmax.xlane.f32.xlu0 %v2750
          %v2752 = vpop.xlane.xlu0 %2751
          %v2753 = vsub.f32 %v2749, %v2752
          %v2754 = vmul.f32 %v2753, 1.442695
          %v2755 = vpow.pop %v2754
          %v2756 = vsel %vm1806, %v2755, 0.0
          %2757 = vadd.xlane.f32.xlu0 %v2756
          %v2758 = vpop.xlane.xlu0 %2757
          %v2759 = vlog2.pop %v2758
          %v2760 = vmul.f32 %v2759, 0.6931472
          %v2761 = vadd.f32 %v2752, %v2760
          %v2762 = vsub.f32 %v1625, %v2761
          %2764 = vset.pattern.permute.xlu0 0
          %2765 = vperm.xlu0 %2764, %v2762
          %v2766 = vpop.permute.xlu0 %2765
          %v2768 = vadd.f32 %v2587, %v2766
          %v2769 = vsel %vm1806, %v2768, -inf
          %v2770 = vrot.slane %v2769, 4
          %v2771 = vmax.f32 %v2769, %v2770
          %v2772 = vrot.slane %v2771, 2
          %v2773 = vmax.f32 %v2771, %v2772
          %v2774 = vrot.slane %v2773, 1
          %v2775 = vmax.f32 %v2773, %v2774
          %v2776 = vsub.f32 %v2768, %v2775
          %v2777 = vmul.f32 %v2776, 1.442695
          %v2778 = vpow.pop %v2777
          %v2779 = vsel %vm1806, %v2778, 0.0
          %v2780 = vrot.slane %v2779, 4
          %v2781 = vadd.f32 %v2779, %v2780
          %v2782 = vrot.slane %v2781, 2
          %v2783 = vadd.f32 %v2781, %v2782
          %v2784 = vrot.slane %v2783, 1
          %v2785 = vadd.f32 %v2783, %v2784
          %v2786 = vlog2.pop %v2785
          %v2787 = vmul.f32 %v2786, 0.6931472
          %v2788 = vadd.f32 %v2775, %v2787
          %v2789 = vsub.f32 %v1327, %v2788
          %v2790 = vlaneseq
          %v2791 = vshrl.u32 %v2790, 7
          %v2792 = vsub.s32 0, %v2791
          %v2793 = vrot.slane %v2789, %v2792
          %v2794 = vadd.f32 %v2587, %v2793
          %v2795 = vsel %vm1806, %v2794, -inf
          %2796 = vmax.xlane.f32.xlu0 %v2795
          %v2797 = vpop.xlane.xlu0 %2796
          %v2798 = vsub.f32 %v2794, %v2797
          %v2799 = vmul.f32 %v2798, 1.442695
          %v2800 = vpow.pop %v2799
          %v2801 = vsel %vm1806, %v2800, 0.0
          %2802 = vadd.xlane.f32.xlu0 %v2801
          %v2803 = vpop.xlane.xlu0 %2802
          %v2804 = vlog2.pop %v2803
          %v2805 = vmul.f32 %v2804, 0.6931472
          %v2806 = vadd.f32 %v2797, %v2805
          %v2807 = vsub.f32 %v1625, %v2806
          %2809 = vset.pattern.permute.xlu0 0
          %2810 = vperm.xlu0 %2809, %v2807
          %v2811 = vpop.permute.xlu0 %2810
          %v2813 = vadd.f32 %v2794, %v2811
          %v2814 = vmul.f32 %v2813, 1.442695
          %v2815 = vpow.pop %v2814
          %2824 = vrot.lane.b32.xlu0 %v792, 96
          %v2825 = vpop.permute.xlu0 %2824
          %2826 = vrot.lane.b32.xlu0 %v797, 96
          %v2827 = vpop.permute.xlu0 %2826
          %2828 = vrot.lane.b32.xlu0 %v802, 96
          %v2829 = vpop.permute.xlu0 %2828
          %2830 = vrot.lane.b32.xlu0 %v807, 96
          %v2831 = vpop.permute.xlu0 %2830
          %2832 = vrot.lane.b32.xlu0 %v812, 96
          %v2833 = vpop.permute.xlu0 %2832
          %2834 = vrot.lane.b32.xlu0 %v817, 96
          %v2835 = vpop.permute.xlu0 %2834
          %2836 = vrot.lane.b32.xlu0 %v822, 96
          %v2837 = vpop.permute.xlu0 %2836
          %2838 = vrot.lane.b32.xlu0 %v827, 96
          %v2839 = vpop.permute.xlu0 %2838
          %vm2848 = vcmask 523264
          %v2850 = vsel %vm2848, %v2815, 0
          %2852 = vmatprep.subr.mxu0 0.0
          %2853 = vmatpush1.msra.mxu0 %v2825
          %2854 = vmatprep.subr.mxu0 0.0
          %2855 = vmatpush1.msra.mxu0 %v2827
          %2856 = vmatprep.subr.mxu0 0.0
          %2857 = vmatpush1.msra.mxu0 %v2829
          %2858 = vmatprep.subr.mxu0 0.0
          %2859 = vmatpush1.msra.mxu0 %v2831
          %2860 = vmatprep.subr.mxu0 0.0
          %2861 = vmatpush1.msra.mxu0 %v2833
          %2862 = vmatprep.subr.mxu0 0.0
          %2863 = vmatpush1.msra.mxu0 %v2835
          %2864 = vmatprep.subr.mxu0 0.0
          %2865 = vmatpush1.msra.mxu0 %v2837
          %2866 = vmatprep.subr.mxu0 0.0
          %2867 = vmatpush1.msra.mxu0 %v2839
          %2868 = vmatprep.subr.mxu0 0.0
          %2869 = vmatpush1.msra.mxu0 0.0
          %2870 = vmatprep.subr.mxu0 0.0
          %2871 = vmatpush1.msra.mxu0 0.0
          %2872 = vmatprep.subr.mxu0 0.0
          %2873 = vmatpush1.msra.mxu0 0.0
          %2874 = vmatprep.subr.mxu0 0.0
          %2875 = vmatpush1.msra.mxu0 0.0
          %2876 = vmatprep.subr.mxu0 0.0
          %2877 = vmatpush1.msra.mxu0 0.0
          %2878 = vmatprep.subr.mxu0 0.0
          %2879 = vmatpush1.msra.mxu0 0.0
          %2880 = vmatprep.subr.mxu0 0.0
          %2881 = vmatpush1.msra.mxu0 0.0
          %2882 = vmatprep.subr.mxu0 0.0
          %2883 = vmatpush1.msra.mxu0 0.0
          %2884 = vmatprep.subr.mxu0 0.0
          %2885 = vmatpush1.msra.mxu0 0.0
          %2886 = vmatprep.subr.mxu0 0.0
          %2887 = vmatpush1.msra.mxu0 0.0
          %2888 = vmatprep.subr.mxu0 0.0
          %2889 = vmatpush1.msra.mxu0 0.0
          %2890 = vmatprep.subr.mxu0 0.0
          %2891 = vmatpush1.msra.mxu0 0.0
          %2892 = vmatprep.subr.mxu0 0.0
          %2893 = vmatpush1.msra.mxu0 0.0
          %2894 = vmatprep.subr.mxu0 0.0
          %2895 = vmatpush1.msra.mxu0 0.0
          %2896 = vmatprep.subr.mxu0 0.0
          %2897 = vmatpush1.msra.mxu0 0.0
          %2898 = vmatprep.subr.mxu0 0.0
          %2899 = vmatpush1.msra.mxu0 0.0
          %2900 = vmatprep.subr.mxu0 0.0
          %2901 = vmatpush1.msra.mxu0 0.0
          %2902 = vmatprep.subr.mxu0 0.0
          %2903 = vmatpush1.msra.mxu0 0.0
          %2904 = vmatprep.subr.mxu0 0.0
          %2905 = vmatpush1.msra.mxu0 0.0
          %2906 = vmatprep.subr.mxu0 0.0
          %2907 = vmatpush1.msra.mxu0 0.0
          %2908 = vmatprep.subr.mxu0 0.0
          %2909 = vmatpush1.msra.mxu0 0.0
          %2910 = vmatprep.subr.mxu0 0.0
          %2911 = vmatpush1.msra.mxu0 0.0
          %2912 = vmatprep.subr.mxu0 0.0
          %2913 = vmatpush1.msra.mxu0 0.0
          %2914 = vmatprep.subr.mxu0 0.0
          %2915 = vmatpush1.msra.mxu0 0.0
          %2916 = vmatprep.mubr.f32.mxu0 0.0
          %2917 = vmatmul.mubr.f32.gmra.mrb[0].mxu0 %v2850
          %v2918 = vpop.f32.mrb[0].mxu0
          %v2919 = vadd.f32 0.0, %v2918
          %v2920 = vpop.f32.mrb[0].mxu0
          %2921 = vdwg.mxu0
          %v2923 = vsel %vm567, %v2919, 0
          %2925 = vmatprep.subr.mxu0 0.0
          %2926 = vmatpush1.msra.mxu0 %v1390
          %2927 = vmatprep.subr.mxu0 0.0
          %2928 = vmatpush1.msra.mxu0 %v1391
          %2929 = vmatprep.subr.mxu0 0.0
          %2930 = vmatpush1.msra.mxu0 %v1392
          %2931 = vmatprep.subr.mxu0 0.0
          %2932 = vmatpush1.msra.mxu0 %v1393
          %2933 = vmatprep.subr.mxu0 0.0
          %2934 = vmatpush1.msra.mxu0 0.0
          %2935 = vmatprep.subr.mxu0 0.0
          %2936 = vmatpush1.msra.mxu0 0.0
          %2937 = vmatprep.subr.mxu0 0.0
          %2938 = vmatpush1.msra.mxu0 0.0
          %2939 = vmatprep.subr.mxu0 0.0
          %2940 = vmatpush1.msra.mxu0 0.0
          %2941 = vmatprep.subr.mxu0 0.0
          %2942 = vmatpush1.msra.mxu0 0.0
          %2943 = vmatprep.subr.mxu0 0.0
          %2944 = vmatpush1.msra.mxu0 0.0
          %2945 = vmatprep.subr.mxu0 0.0
          %2946 = vmatpush1.msra.mxu0 0.0
          %2947 = vmatprep.subr.mxu0 0.0
          %2948 = vmatpush1.msra.mxu0 0.0
          %2949 = vmatprep.subr.mxu0 0.0
          %2950 = vmatpush1.msra.mxu0 0.0
          %2951 = vmatprep.subr.mxu0 0.0
          %2952 = vmatpush1.msra.mxu0 0.0
          %2953 = vmatprep.subr.mxu0 0.0
          %2954 = vmatpush1.msra.mxu0 0.0
          %2955 = vmatprep.subr.mxu0 0.0
          %2956 = vmatpush1.msra.mxu0 0.0
          %2957 = vmatprep.subr.mxu0 0.0
          %2958 = vmatpush1.msra.mxu0 0.0
          %2959 = vmatprep.subr.mxu0 0.0
          %2960 = vmatpush1.msra.mxu0 0.0
          %2961 = vmatprep.subr.mxu0 0.0
          %2962 = vmatpush1.msra.mxu0 0.0
          %2963 = vmatprep.subr.mxu0 0.0
          %2964 = vmatpush1.msra.mxu0 0.0
          %2965 = vmatprep.subr.mxu0 0.0
          %2966 = vmatpush1.msra.mxu0 0.0
          %2967 = vmatprep.subr.mxu0 0.0
          %2968 = vmatpush1.msra.mxu0 0.0
          %2969 = vmatprep.subr.mxu0 0.0
          %2970 = vmatpush1.msra.mxu0 0.0
          %2971 = vmatprep.subr.mxu0 0.0
          %2972 = vmatpush1.msra.mxu0 0.0
          %2973 = vmatprep.subr.mxu0 0.0
          %2974 = vmatpush1.msra.mxu0 0.0
          %2975 = vmatprep.subr.mxu0 0.0
          %2976 = vmatpush1.msra.mxu0 0.0
          %2977 = vmatprep.subr.mxu0 0.0
          %2978 = vmatpush1.msra.mxu0 0.0
          %2979 = vmatprep.subr.mxu0 0.0
          %2980 = vmatpush1.msra.mxu0 0.0
          %2981 = vmatprep.subr.mxu0 0.0
          %2982 = vmatpush1.msra.mxu0 0.0
          %2983 = vmatprep.subr.mxu0 0.0
          %2984 = vmatpush1.msra.mxu0 0.0
          %2985 = vmatprep.subr.mxu0 0.0
          %2986 = vmatpush1.msra.mxu0 0.0
          %2987 = vmatprep.subr.mxu0 0.0
          %2988 = vmatpush1.msra.mxu0 0.0
          %2989 = vmatprep.mubr.f32.mxu0 0.0
          %2990 = vmatmul.mubr.f32.gmra.mrb[0].mxu0 %v2923
          %v2991 = vpop.f32.mrb[0].mxu0
          %v2992 = vadd.f32 %v1357, %v2991
          %v2993 = vpop.f32.mrb[0].mxu0
          %2994 = vdwg.mxu0
          %v2996 = vsel %vm567, %v1412, 0
          %2998 = vmatprep.subr.mxu0 0.0
          %2999 = vmatpush1.msra.mxu0 %v1394
          %3000 = vmatprep.subr.mxu0 0.0
          %3001 = vmatpush1.msra.mxu0 %v1395
          %3002 = vmatprep.subr.mxu0 0.0
          %3003 = vmatpush1.msra.mxu0 %v1396
          %3004 = vmatprep.subr.mxu0 0.0
          %3005 = vmatpush1.msra.mxu0 %v1397
          %3006 = vmatprep.subr.mxu0 0.0
          %3007 = vmatpush1.msra.mxu0 0.0
          %3008 = vmatprep.subr.mxu0 0.0
          %3009 = vmatpush1.msra.mxu0 0.0
          %3010 = vmatprep.subr.mxu0 0.0
          %3011 = vmatpush1.msra.mxu0 0.0
          %3012 = vmatprep.subr.mxu0 0.0
          %3013 = vmatpush1.msra.mxu0 0.0
          %3014 = vmatprep.subr.mxu0 0.0
          %3015 = vmatpush1.msra.mxu0 0.0
          %3016 = vmatprep.subr.mxu0 0.0
          %3017 = vmatpush1.msra.mxu0 0.0
          %3018 = vmatprep.subr.mxu0 0.0
          %3019 = vmatpush1.msra.mxu0 0.0
          %3020 = vmatprep.subr.mxu0 0.0
          %3021 = vmatpush1.msra.mxu0 0.0
          %3022 = vmatprep.subr.mxu0 0.0
          %3023 = vmatpush1.msra.mxu0 0.0
          %3024 = vmatprep.subr.mxu0 0.0
          %3025 = vmatpush1.msra.mxu0 0.0
          %3026 = vmatprep.subr.mxu0 0.0
          %3027 = vmatpush1.msra.mxu0 0.0
          %3028 = vmatprep.subr.mxu0 0.0
          %3029 = vmatpush1.msra.mxu0 0.0
          %3030 = vmatprep.subr.mxu0 0.0
          %3031 = vmatpush1.msra.mxu0 0.0
          %3032 = vmatprep.subr.mxu0 0.0
          %3033 = vmatpush1.msra.mxu0 0.0
          %3034 = vmatprep.subr.mxu0 0.0
          %3035 = vmatpush1.msra.mxu0 0.0
          %3036 = vmatprep.subr.mxu0 0.0
          %3037 = vmatpush1.msra.mxu0 0.0
          %3038 = vmatprep.subr.mxu0 0.0
          %3039 = vmatpush1.msra.mxu0 0.0
          %3040 = vmatprep.subr.mxu0 0.0
          %3041 = vmatpush1.msra.mxu0 0.0
          %3042 = vmatprep.subr.mxu0 0.0
          %3043 = vmatpush1.msra.mxu0 0.0
          %3044 = vmatprep.subr.mxu0 0.0
          %3045 = vmatpush1.msra.mxu0 0.0
          %3046 = vmatprep.subr.mxu0 0.0
          %3047 = vmatpush1.msra.mxu0 0.0
          %3048 = vmatprep.subr.mxu0 0.0
          %3049 = vmatpush1.msra.mxu0 0.0
          %3050 = vmatprep.subr.mxu0 0.0
          %3051 = vmatpush1.msra.mxu0 0.0
          %3052 = vmatprep.subr.mxu0 0.0
          %3053 = vmatpush1.msra.mxu0 0.0
          %3054 = vmatprep.subr.mxu0 0.0
          %3055 = vmatpush1.msra.mxu0 0.0
          %3056 = vmatprep.subr.mxu0 0.0
          %3057 = vmatpush1.msra.mxu0 0.0
          %3058 = vmatprep.subr.mxu0 0.0
          %3059 = vmatpush1.msra.mxu0 0.0
          %3060 = vmatprep.subr.mxu0 0.0
          %3061 = vmatpush1.msra.mxu0 0.0
          %3062 = vmatprep.mubr.f32.mxu0 0.0
          %3063 = vmatmul.mubr.f32.gmra.mrb[0].mxu0 %v2996
          %v3064 = vpop.f32.mrb[0].mxu0
          %v3065 = vadd.f32 %v1361, %v3064
          %v3066 = vpop.f32.mrb[0].mxu0
          %3067 = vdwg.mxu0
          %v3068 = vadd.f32 %v2992, %v3065
          %v3069 = vxor.u32 %v3068, 2147483648
          %v3070 = vmul.f32 %v3069, 1.442695
          %v3071 = vpow.pop %v3070
          %v3072 = vadd.f32 %v3071, 1.0
          %v3073 = vrcp.pop %v3072
          %v3074 = vmul.f32 1.0, %v3073
          %3076 = vrot.lane.b32.xlu0 %v3065, 64
          %v3077 = vpop.permute.xlu0 %3076
          %v3079 = vmul.f32 %v3074, %v3077
          %3081 = vrot.lane.b32.xlu0 %v3079, 64
          %v3082 = vpop.permute.xlu0 %3081
          %v3084 = vadd.f32 %v2992, %v3082
          %v3085 = vtanh.pop %v3084
          %v3086 = vsub.f32 1.0, %v3074
          %3088 = vrot.lane.b32.xlu0 %v3085, 96
          %v3089 = vpop.permute.xlu0 %3088
          %v3091 = vmul.f32 %v3086, %v3089
          %3092 = vrot.lane.b32.xlu0 %v1412, 32
          %v3093 = vpop.permute.xlu0 %3092
          %v3095 = vmul.f32 %v3074, %v3093
          %v3096 = vadd.f32 %v3091, %v3095
          %3098 = vrot.lane.b32.xlu0 %v3096, 96
          %v3099 = vpop.permute.xlu0 %3098
          %v3101 = vsel %vm1413, %v3099, 0.0
          %3102 = vadd.xlane.f32.xlu0 %v3101
          %v3103 = vpop.xlane.xlu0 %3102
          %v3104 = vmul.f32 %v3103, %v592
          %v3105 = vsub.f32 %v3096, %v3104
          %v3106 = vmul.f32 %v3105, %v3105
          %3108 = vrot.lane.b32.xlu0 %v3106, 96
          %v3109 = vpop.permute.xlu0 %3108
          %v3111 = vsel %vm1413, %v3109, 0.0
          %3112 = vadd.xlane.f32.xlu0 %v3111
          %v3113 = vpop.xlane.xlu0 %3112
          %v3114 = vmul.f32 %v3113, %v592
          %v3115 = vadd.f32 %v3114, 1e-05
          %v3116 = vrsqrt.pop %v3115
          %v3117 = vmul.f32 %v3105, %v3116
          %3119 = vrot.lane.b32.xlu0 %v1365, 32
          %v3120 = vpop.permute.xlu0 %3119
          %v3122 = vmul.f32 %v3117, %v3120
          %3124 = vrot.lane.b32.xlu0 %v1369, 32
          %v3125 = vpop.permute.xlu0 %3124
          %v3127 = vadd.f32 %v3122, %v3125
          %3129 = vrot.lane.b32.xlu0 %v3127, 96
          %v3130 = vpop.permute.xlu0 %3129
          %v3131 = vsel %vm567, %v3130, 0
          %3133 = vmatprep.subr.mxu0 0.0
          %3134 = vmatpush1.msra.mxu0 %v1398
          %3135 = vmatprep.subr.mxu0 0.0
          %3136 = vmatpush1.msra.mxu0 %v1399
          %3137 = vmatprep.subr.mxu0 0.0
          %3138 = vmatpush1.msra.mxu0 %v1400
          %3139 = vmatprep.subr.mxu0 0.0
          %3140 = vmatpush1.msra.mxu0 %v1401
          %3141 = vmatprep.subr.mxu0 0.0
          %3142 = vmatpush1.msra.mxu0 0.0
          %3143 = vmatprep.subr.mxu0 0.0
          %3144 = vmatpush1.msra.mxu0 0.0
          %3145 = vmatprep.subr.mxu0 0.0
          %3146 = vmatpush1.msra.mxu0 0.0
          %3147 = vmatprep.subr.mxu0 0.0
          %3148 = vmatpush1.msra.mxu0 0.0
          %3149 = vmatprep.subr.mxu0 0.0
          %3150 = vmatpush1.msra.mxu0 0.0
          %3151 = vmatprep.subr.mxu0 0.0
          %3152 = vmatpush1.msra.mxu0 0.0
          %3153 = vmatprep.subr.mxu0 0.0
          %3154 = vmatpush1.msra.mxu0 0.0
          %3155 = vmatprep.subr.mxu0 0.0
          %3156 = vmatpush1.msra.mxu0 0.0
          %3157 = vmatprep.subr.mxu0 0.0
          %3158 = vmatpush1.msra.mxu0 0.0
          %3159 = vmatprep.subr.mxu0 0.0
          %3160 = vmatpush1.msra.mxu0 0.0
          %3161 = vmatprep.subr.mxu0 0.0
          %3162 = vmatpush1.msra.mxu0 0.0
          %3163 = vmatprep.subr.mxu0 0.0
          %3164 = vmatpush1.msra.mxu0 0.0
          %3165 = vmatprep.subr.mxu0 0.0
          %3166 = vmatpush1.msra.mxu0 0.0
          %3167 = vmatprep.subr.mxu0 0.0
          %3168 = vmatpush1.msra.mxu0 0.0
          %3169 = vmatprep.subr.mxu0 0.0
          %3170 = vmatpush1.msra.mxu0 0.0
          %3171 = vmatprep.subr.mxu0 0.0
          %3172 = vmatpush1.msra.mxu0 0.0
          %3173 = vmatprep.subr.mxu0 0.0
          %3174 = vmatpush1.msra.mxu0 0.0
          %3175 = vmatprep.subr.mxu0 0.0
          %3176 = vmatpush1.msra.mxu0 0.0
          %3177 = vmatprep.subr.mxu0 0.0
          %3178 = vmatpush1.msra.mxu0 0.0
          %3179 = vmatprep.subr.mxu0 0.0
          %3180 = vmatpush1.msra.mxu0 0.0
          %3181 = vmatprep.subr.mxu0 0.0
          %3182 = vmatpush1.msra.mxu0 0.0
          %3183 = vmatprep.subr.mxu0 0.0
          %3184 = vmatpush1.msra.mxu0 0.0
          %3185 = vmatprep.subr.mxu0 0.0
          %3186 = vmatpush1.msra.mxu0 0.0
          %3187 = vmatprep.subr.mxu0 0.0
          %3188 = vmatpush1.msra.mxu0 0.0
          %3189 = vmatprep.subr.mxu0 0.0
          %3190 = vmatpush1.msra.mxu0 0.0
          %3191 = vmatprep.subr.mxu0 0.0
          %3192 = vmatpush1.msra.mxu0 0.0
          %3193 = vmatprep.subr.mxu0 0.0
          %3194 = vmatpush1.msra.mxu0 0.0
          %3195 = vmatprep.subr.mxu0 0.0
          %3196 = vmatpush1.msra.mxu0 0.0
          %3197 = vmatprep.mubr.f32.mxu0 0.0
          %3198 = vmatmul.mubr.f32.gmra.mrb[0].mxu0 %v3131
          %v3199 = vpop.f32.mrb[0].mxu0
          %v3200 = vadd.f32 %v1373, %v3199
          %v3201 = vpop.f32.mrb[0].mxu0
          %3202 = vdwg.mxu0
          %v3203 = vmul.f32 %v3200, 0.5
          %v3204 = vmul.f32 %v3200, 0.70710677
          %vm3205 = vcmp.ge.f32.partialorder %v3204, 0.0
          %v3206 = vsel %vm3205, 1.0, -1.0
          %v3207 = vand.u32 2147483647, %v3204
          %v3208 = vmul.f32 %v3207, 0.3275911
          %v3209 = vadd.f32 %v3208, 1.0
          %v3210 = vrcp.pop %v3209
          %v3211 = vmul.f32 1.0, %v3210
          %v3212 = vmul.f32 %v3211, 1.0614054
          %v3213 = vadd.f32 %v3212, -1.4531521
          %v3214 = vmul.f32 %v3213, %v3211
          %v3215 = vadd.f32 %v3214, 1.4214138
          %v3216 = vmul.f32 %v3215, %v3211
          %v3217 = vadd.f32 %v3216, -0.28449672
          %v3218 = vmul.f32 %v3217, %v3211
          %v3219 = vadd.f32 %v3218, 0.2548296
          %v3220 = vmul.f32 %v3219, %v3211
          %v3221 = vsub.f32 0.0, %v3207
          %v3222 = vmul.f32 %v3221, %v3207
          %v3223 = vmul.f32 %v3222, 1.442695
          %v3224 = vpow.pop %v3223
          %v3225 = vmul.f32 %v3220, %v3224
          %v3226 = vsub.f32 1.0, %v3225
          %v3227 = vmul.f32 %v3206, %v3226
          %v3228 = vadd.f32 %v3227, 1.0
          %v3229 = vmul.f32 %v3203, %v3228
          %v3231 = vsel %vm567, %v3229, 0
          %3233 = vmatprep.subr.mxu0 0.0
          %3234 = vmatpush1.msra.mxu0 %v1402
          %3235 = vmatprep.subr.mxu0 0.0
          %3236 = vmatpush1.msra.mxu0 %v1403
          %3237 = vmatprep.subr.mxu0 0.0
          %3238 = vmatpush1.msra.mxu0 %v1404
          %3239 = vmatprep.subr.mxu0 0.0
          %3240 = vmatpush1.msra.mxu0 %v1405
          %3241 = vmatprep.subr.mxu0 0.0
          %3242 = vmatpush1.msra.mxu0 0.0
          %3243 = vmatprep.subr.mxu0 0.0
          %3244 = vmatpush1.msra.mxu0 0.0
          %3245 = vmatprep.subr.mxu0 0.0
          %3246 = vmatpush1.msra.mxu0 0.0
          %3247 = vmatprep.subr.mxu0 0.0
          %3248 = vmatpush1.msra.mxu0 0.0
          %3249 = vmatprep.subr.mxu0 0.0
          %3250 = vmatpush1.msra.mxu0 0.0
          %3251 = vmatprep.subr.mxu0 0.0
          %3252 = vmatpush1.msra.mxu0 0.0
          %3253 = vmatprep.subr.mxu0 0.0
          %3254 = vmatpush1.msra.mxu0 0.0
          %3255 = vmatprep.subr.mxu0 0.0
          %3256 = vmatpush1.msra.mxu0 0.0
          %3257 = vmatprep.subr.mxu0 0.0
          %3258 = vmatpush1.msra.mxu0 0.0
          %3259 = vmatprep.subr.mxu0 0.0
          %3260 = vmatpush1.msra.mxu0 0.0
          %3261 = vmatprep.subr.mxu0 0.0
          %3262 = vmatpush1.msra.mxu0 0.0
          %3263 = vmatprep.subr.mxu0 0.0
          %3264 = vmatpush1.msra.mxu0 0.0
          %3265 = vmatprep.subr.mxu0 0.0
          %3266 = vmatpush1.msra.mxu0 0.0
          %3267 = vmatprep.subr.mxu0 0.0
          %3268 = vmatpush1.msra.mxu0 0.0
          %3269 = vmatprep.subr.mxu0 0.0
          %3270 = vmatpush1.msra.mxu0 0.0
          %3271 = vmatprep.subr.mxu0 0.0
          %3272 = vmatpush1.msra.mxu0 0.0
          %3273 = vmatprep.subr.mxu0 0.0
          %3274 = vmatpush1.msra.mxu0 0.0
          %3275 = vmatprep.subr.mxu0 0.0
          %3276 = vmatpush1.msra.mxu0 0.0
          %3277 = vmatprep.subr.mxu0 0.0
          %3278 = vmatpush1.msra.mxu0 0.0
          %3279 = vmatprep.subr.mxu0 0.0
          %3280 = vmatpush1.msra.mxu0 0.0
          %3281 = vmatprep.subr.mxu0 0.0
          %3282 = vmatpush1.msra.mxu0 0.0
          %3283 = vmatprep.subr.mxu0 0.0
          %3284 = vmatpush1.msra.mxu0 0.0
          %3285 = vmatprep.subr.mxu0 0.0
          %3286 = vmatpush1.msra.mxu0 0.0
          %3287 = vmatprep.subr.mxu0 0.0
          %3288 = vmatpush1.msra.mxu0 0.0
          %3289 = vmatprep.subr.mxu0 0.0
          %3290 = vmatpush1.msra.mxu0 0.0
          %3291 = vmatprep.subr.mxu0 0.0
          %3292 = vmatpush1.msra.mxu0 0.0
          %3293 = vmatprep.subr.mxu0 0.0
          %3294 = vmatpush1.msra.mxu0 0.0
          %3295 = vmatprep.subr.mxu0 0.0
          %3296 = vmatpush1.msra.mxu0 0.0
          %3297 = vmatprep.mubr.f32.mxu0 0.0
          %3298 = vmatmul.mubr.f32.gmra.mrb[0].mxu0 %v3231
          %v3299 = vpop.f32.mrb[0].mxu0
          %v3300 = vadd.f32 0.0, %v3299
          %v3301 = vpop.f32.mrb[0].mxu0
          %3302 = vdwg.mxu0
          %3304 = vrot.lane.b32.xlu0 %v3300, 32
          %v3305 = vpop.permute.xlu0 %3304
          %v3307 = vadd.f32 %v3096, %v3305
          %3309 = vrot.lane.b32.xlu0 %v1377, 32
          %v3310 = vpop.permute.xlu0 %3309
          %v3312 = vadd.f32 %v3307, %v3310
          %3314 = vrot.lane.b32.xlu0 %v3312, 96
          %v3315 = vpop.permute.xlu0 %3314
        $region93: #{tpu_custom_call.1} parent=71 // loop_footer
          %s1411 = sadd.s32 1, %s1407
        $region94: #{tpu_custom_call.1} parent=71 // loop_footer_branch
          %1406 = sbr.rel target = $region90
        $region95: #{tpu_custom_call.1} parent=71 // loop_exit
          _
        %vm3317 = vcmask 257024
        %3318 = vst.msk [vmem:[%s537] sm:$0xf] %vm3317, %v1412
        %s3319 = sand.u32 %s330, 1
        %s3320 = scalar_lea.sflag [#allocation4], %s3319
        %s3321 = sand.u32 %s330, 1
        %s3322 = smul.addr %s3321, 4
        %s3323 = scalar_lea.vmem [#allocation10], %s3322
        // Predicated region
        $region96: #{tpu_custom_call.1} parent=71 // pred_check
          %p3324 = pneg %p340
        $region97: #{tpu_custom_call.1} parent=71 // pred_check_branch
          %3326 = sbr.rel (%p3324) target = $region99
        $region98: #{tpu_custom_call.1} parent=71 // pred_region
          %s3328 = ssub.s32 64, 64
          %3329 = vsyncadd %s3320, %s3328
          %s3330 = smul.addr %s34, 64
          %s3331 = scalar_lea.hbm %s13, %s3330
          %s3333 = sshll.u32 %s3323, 4
          %s3334 = int_to_ptr.vmem [resolvable:$true] %s3333
          %3336 = dma.vmem_to_hbm [thread:$0]  %s3334, 64, %s3331, %s3320
        $region99: #{tpu_custom_call.1} parent=71 // pred_fallthru
          _
      $region72: #{tpu_custom_call.1} parent=5 // pred_fallthru
        _
      %p3337 = scmp.le.s32.totalorder 2, %s29
      // Predicated region
      $region100: #{tpu_custom_call.1} parent=5 // pred_check
        %p3338 = pneg %p3337
      $region101: #{tpu_custom_call.1} parent=5 // pred_check_branch
        %3340 = sbr.rel (%p3338) target = $region103
      $region102: #{tpu_custom_call.1} parent=5 // pred_region
        %s3341 = ssub.s32 %s29, 2
        // Predicated region
        $region104: #{tpu_custom_call.1} parent=102 // pred_check
          %p3342 = pneg %p346
        $region105: #{tpu_custom_call.1} parent=102 // pred_check_branch
          %3344 = sbr.rel (%p3342) target = $region107
        $region106: #{tpu_custom_call.1} parent=102 // pred_region
          %s3345 = sand.u32 %s331, 1
          %s3346 = scalar_lea.sflag [#allocation4], %s3345
          %s3347 = sand.u32 %s331, 1
          %s3348 = smul.addr %s3347, 4
          %s3349 = scalar_lea.vmem [#allocation10], %s3348
          %3350 = dma.done %s3346, 64
        $region107: #{tpu_custom_call.1} parent=102 // pred_fallthru
          _
      $region103: #{tpu_custom_call.1} parent=5 // pred_fallthru
        _
    $region6: #{tpu_custom_call.1} parent=1 // loop_footer
      %s33 = sadd.s32 1, %s29
    $region7: #{tpu_custom_call.1} parent=1 // loop_footer_branch
      %28 = sbr.rel target = $region3
    $region8: #{tpu_custom_call.1} parent=1 // loop_exit
      _
    %3351 = vsyncpa [#allocation3], 1
    %s3352 = scalar_lea.sflag [#allocation3], 1
    %3353 = vsyncpa %s3352, 1
    %3354 = vsyncpa [#allocation6], 1
    %s3355 = scalar_lea.sflag [#allocation6], 1
    %3356 = vsyncpa %s3355, 1
    %3357 = vsyncpa [#allocation9], 1
    %3358 = vsyncpa [#allocation4], 1
    %s3359 = scalar_lea.sflag [#allocation4], 1
    %3360 = vsyncpa %s3359, 1

</llo_original>
